<compile_context>
chip_gen: v5e
topology: v5e:2x2
jax: 0.10.0
libtpu: 0.0.40
codegen_flags: <defaults>
</compile_context>

<pallas_src>
import functools

import jax
import jax.numpy as jnp
from jax import lax
from jax.experimental import pallas as pl
from jax.experimental.pallas import tpu as pltpu

PAD_H, PAD_W = 2, 3
DIL_H, DIL_W = 2, 3
LPAD_W = 8                  # left W pad rounded up to a sublane multiple (>= PAD_W)
W_OFF = LPAD_W - PAD_W      # tap column offset inside the scratch
BN_EPS = 1e-5


# ----------------------------- helpers -------------------------------------


def _bn_fold_single_pass(x_nhwc, gamma, beta, eps=BN_EPS):
    """Training-mode BN stats over (N,H,W), one pass: var = E[x^2] - E[x]^2."""
    cnt = jnp.float32(x_nhwc.shape[0] * x_nhwc.shape[1] * x_nhwc.shape[2])
    s = jnp.sum(x_nhwc, axis=(0, 1, 2))
    ss = jnp.sum(x_nhwc * x_nhwc, axis=(0, 1, 2))
    mean = s / cnt
    var = jnp.maximum(ss / cnt - mean * mean, 0.0)   # biased, like torch fwd
    scale = gamma * lax.rsqrt(var + eps)
    bias = beta - mean * scale
    return scale, bias


def _full_spec(shape):
    zeros = (0,) * len(shape)
    return pl.BlockSpec(shape, lambda n, _z=zeros: _z)


def _pick_batch_block(n_batch):
    """Images per grid step: whole batch on single-TC v5e/v6e, split in two on v7x."""
    try:
        kind = jax.devices()[0].device_kind.lower()
    except Exception:  # pragma: no cover
        kind = ""
    two_tc = "v7" in kind          # v7x: 2 TensorCores per chip
    if two_tc and n_batch >= 2 and n_batch % 2 == 0:
        return n_batch // 2        # keep 2 "parallel" steps so both TCs get work
    return n_batch                 # one step: amortize launch + MXU weight pushes


def _zero_halo(pad_ref, H, W):
    """Zero only the halo border of the (bn, Hp, Wpa, C) pad scratch."""
    bn, Hp, Wpa, Cc = pad_ref.shape
    f32 = jnp.float32
    pad_ref[:, 0:PAD_H, :, :] = jnp.zeros((bn, PAD_H, Wpa, Cc), f32)
    pad_ref[:, PAD_H + H:Hp, :, :] = jnp.zeros((bn, Hp - PAD_H - H, Wpa, Cc), f32)
    pad_ref[:, PAD_H:PAD_H + H, 0:LPAD_W, :] = jnp.zeros((bn, H, LPAD_W, Cc), f32)
    pad_ref[:, PAD_H:PAD_H + H, LPAD_W + W:Wpa, :] = (
        jnp.zeros((bn, H, Wpa - LPAD_W - W, Cc), f32))


def _depthwise_dilated(pad_ref, pv_ref, row0, H, W):
    """3x3 depthwise conv, dilation (2,3), reading the zero-padded VMEM scratch.

    Per-channel tap weights live in rows [row0, row0+9) of pv_ref.  The
    depthwise bias is folded into the following (fused) 1x1 bias.  The interior
    sits at (PAD_H, LPAD_W); taps for output pixel (i, j) read padded rows
    i + ki*DIL_H and cols j + W_OFF + kj*DIL_W (PAD==DIL in this module).
    """
    acc = None
    for ki in range(3):
        for kj in range(3):
            tap = pad_ref[:, ki * DIL_H: ki * DIL_H + H,
                          W_OFF + kj * DIL_W: W_OFF + kj * DIL_W + W, :]
            term = tap * pv_ref[row0 + 3 * ki + kj, :]
            acc = term if acc is None else acc + term
    return acc


# ------------------------------ kernels -------------------------------------


def stage1_kernel(x_ref, pv_ref, w12_ref, b12_ref, v_ref, stats_ref, pad_ref,
                  *, H, W):
    # x_ref:   (bn, H, W, C)  f32 input block.
    # pv_ref:  (11, C) packed params: row0=BN1 scale, row1=BN1 bias, rows2..10 dw taps.
    # w12_ref: (C, 2C) bf16 fused 1x1 weight; b12_ref: (1, 2C) f32 fused bias.
    # v_ref:   (bn, H, W, 2C) bf16 intermediate output.
    # stats_ref: (2, 2C) f32 per-step sum / sum-of-squares of v (for BN2).
    bn = x_ref.shape[0]
    C = x_ref.shape[-1]
    C2 = v_ref.shape[-1]
    # BN1 + ReLU (folded scale/bias), written into the interior of the pad
    # scratch; only the halo border is re-zeroed each step.
    a = jnp.maximum(x_ref[...] * pv_ref[0, :] + pv_ref[1, :], 0.0)
    _zero_halo(pad_ref, H, W)
    pad_ref[:, PAD_H:PAD_H + H, LPAD_W:LPAD_W + W, :] = a
    # dilated depthwise 3x3 (bias folded into b12).
    t = _depthwise_dilated(pad_ref, pv_ref, 2, H, W)            # (bn, H, W, C) f32
    # fused 1x1 (C -> 2C -> 2C collapsed): one bf16 MXU matmul, f32 accumulate.
    lhs = t.reshape(bn * H * W, C).astype(jnp.bfloat16)
    v = jnp.dot(lhs, w12_ref[...],
                preferred_element_type=jnp.float32) + b12_ref[0, :]
    # Per-step BN2 statistics so the wrapper never re-reads v from HBM.
    stats_ref[...] = jnp.concatenate(
        [jnp.sum(v, axis=0, keepdims=True),
         jnp.sum(v * v, axis=0, keepdims=True)], axis=0)
    v_ref[...] = v.reshape(bn, H, W, C2).astype(v_ref.dtype)    # bf16 store


def stage2_kernel(v_ref, x_ref, pv_ref, w34_ref, wskip_ref, bf_ref, out_ref,
                  pad_ref, *, H, W):
    # v_ref: (bn, H, W, 2C) bf16 stage-1 output; x_ref: (bn, H, W, C) f32 input.
    # pv_ref: (11, 2C) packed BN2 scale/bias + 9 dw taps.
    # w34_ref: (2C, C) bf16 fused 1x1; wskip_ref: (C, C) bf16 skip 1x1.
    # bf_ref: (1, C) f32 fused bias (dw2_b@W34 + p3_b@W4 + p4_b + skip_b).
    bn = x_ref.shape[0]
    C = x_ref.shape[-1]
    C2 = v_ref.shape[-1]
    # BN2 + ReLU into the zero-halo pad scratch (f32 VPU path: safe on v5e).
    a = jnp.maximum(v_ref[...].astype(jnp.float32) * pv_ref[0, :] + pv_ref[1, :],
                    0.0)
    _zero_halo(pad_ref, H, W)
    pad_ref[:, PAD_H:PAD_H + H, LPAD_W:LPAD_W + W, :] = a
    # dilated depthwise 3x3, groups = 2C (bias folded into bf).
    t = _depthwise_dilated(pad_ref, pv_ref, 2, H, W)            # (bn, H, W, 2C)
    # Two separate MXU dots (no K-concat): out = t@W34 + x@W_skip + bias.
    o = jnp.dot(t.reshape(bn * H * W, C2).astype(jnp.bfloat16), w34_ref[...],
                preferred_element_type=jnp.float32)
    o = o + jnp.dot(x_ref[...].reshape(bn * H * W, C).astype(jnp.bfloat16),
                    wskip_ref[...], preferred_element_type=jnp.float32)
    o = o + bf_ref[0, :]
    out_ref[...] = o.reshape(bn, H, W, C).astype(out_ref.dtype)


# ------------------------------ wrapper -------------------------------------


def ups_res_block(x, params):
    """UpsResBlock forward; x is NHWC f32, returns NHWC f32."""
    x = x.astype(jnp.float32)
    N, H, W, C = x.shape
    C2 = 2 * C
    Hp = H + 2 * PAD_H
    Wpa = W + LPAD_W + PAD_W          # sublane-aligned interior at col LPAD_W
    f32 = jnp.float32

    bn = _pick_batch_block(N)         # images per grid step
    steps = N // bn

    # ---- fold the purely linear ops (wrapper-side, f32) ----
    # stage 1: dw-bias -> 1x1 (C->2C) -> 1x1 (2C->2C) collapsed into one matmul
    w12 = params['p1_w'] @ params['p2_w']                                # (C, 2C)
    b12 = (params['dw1_b'] @ w12 + params['p1_b'] @ params['p2_w']
           + params['p2_b'])                                             # (2C,)
    # stage 2: dw-bias -> 1x1 (2C->2C) -> 1x1 (2C->C); skip 1x1 kept separate
    w34 = params['p3_w'] @ params['p4_w']                                # (2C, C)
    bf = (params['dw2_b'] @ w34 + params['p3_b'] @ params['p4_w']
          + params['p4_b'] + params['skip_b'])                           # (C,)

    # ---- BN1 (training-mode batch stats), single pass over x ----
    s1, b1 = _bn_fold_single_pass(x, params['bn1_gamma'], params['bn1_beta'])
    pv1 = jnp.concatenate(
        [s1[None], b1[None], params['dw1_w'].reshape(9, C)], axis=0)     # (11, C)

    stage1 = pl.pallas_call(
        functools.partial(stage1_kernel, H=H, W=W),
        out_shape=(jax.ShapeDtypeStruct((N, H, W, C2), jnp.bfloat16),
                   jax.ShapeDtypeStruct((steps, 2, C2), f32)),
        grid=(steps,),
        in_specs=[
            pl.BlockSpec((bn, H, W, C), lambda n: (n, 0, 0, 0)),
            _full_spec((11, C)),
            _full_spec((C, C2)),
            _full_spec((1, C2)),
        ],
        out_specs=(
            pl.BlockSpec((bn, H, W, C2), lambda n: (n, 0, 0, 0)),
            pl.BlockSpec((None, 2, C2), lambda n: (n, 0, 0)),
        ),
        scratch_shapes=[pltpu.VMEM((bn, Hp, Wpa, C), f32)],
        compiler_params=pltpu.CompilerParams(dimension_semantics=("parallel",)),
    )
    v, stats = stage1(x, pv1, w12.astype(jnp.bfloat16), b12.reshape(1, C2))

    # ---- BN2 scale/bias from the kernel-emitted sum / sum-of-squares ----
    tot = jnp.sum(stats, axis=0)                    # (2, 2C)
    cnt = jnp.float32(N * H * W)
    mean2 = tot[0] / cnt
    var2 = jnp.maximum(tot[1] / cnt - mean2 * mean2, 0.0)   # biased variance
    s2 = params['bn2_gamma'] * lax.rsqrt(var2 + BN_EPS)
    b2 = params['bn2_beta'] - mean2 * s2
    pv2 = jnp.concatenate(
        [s2[None], b2[None], params['dw2_w'].reshape(9, C2)], axis=0)    # (11, 2C)

    stage2 = pl.pallas_call(
        functools.partial(stage2_kernel, H=H, W=W),
        out_shape=jax.ShapeDtypeStruct((N, H, W, C), f32),
        grid=(steps,),
        in_specs=[
            pl.BlockSpec((bn, H, W, C2), lambda n: (n, 0, 0, 0)),
            pl.BlockSpec((bn, H, W, C), lambda n: (n, 0, 0, 0)),
            _full_spec((11, C2)),
            _full_spec((C2, C)),
            _full_spec((C, C)),
            _full_spec((1, C)),
        ],
        out_specs=pl.BlockSpec((bn, H, W, C), lambda n: (n, 0, 0, 0)),
        scratch_shapes=[pltpu.VMEM((bn, Hp, Wpa, C2), f32)],
        compiler_params=pltpu.CompilerParams(dimension_semantics=("parallel",)),
    )
    out = stage2(v, x, pv2, w34.astype(jnp.bfloat16),
                 params['skip_w'].astype(jnp.bfloat16), bf.reshape(1, C))
    return out


def ups_res_block_nchw(x_nchw, params):
    """Compatibility shim for NCHW callers (the transposes it adds are exactly
    the HBM traffic the NHWC entry point avoids; prefer ups_res_block)."""
    x = jnp.transpose(x_nchw, (0, 2, 3, 1))
    return jnp.transpose(ups_res_block(x, params), (0, 3, 1, 2))


# ---------------------------- params & reference ----------------------------


def init_params(key, C):
    C2 = 2 * C
    ks = jax.random.split(key, 18)

    def w(k, shape, scale=0.1):
        return scale * jax.random.normal(k, shape, jnp.float32)

    # 1x1 conv weights stored as (C_in, C_out) == torch weight[:, :, 0, 0].T
    # depthwise 3x3 weights stored as (kh, kw, C)
    return dict(
        skip_w=w(ks[0], (C, C)), skip_b=w(ks[1], (C,)),
        bn1_gamma=1.0 + 0.1 * jax.random.normal(ks[2], (C,), jnp.float32),
        bn1_beta=0.1 * jax.random.normal(ks[3], (C,), jnp.float32),
        dw1_w=w(ks[4], (3, 3, C)), dw1_b=w(ks[5], (C,)),
        p1_w=w(ks[6], (C, C2)), p1_b=w(ks[7], (C2,)),
        p2_w=w(ks[8], (C2, C2)), p2_b=w(ks[9], (C2,)),
        bn2_gamma=1.0 + 0.1 * jax.random.normal(ks[10], (C2,), jnp.float32),
        bn2_beta=0.1 * jax.random.normal(ks[11], (C2,), jnp.float32),
        dw2_w=w(ks[12], (3, 3, C2)), dw2_b=w(ks[13], (C2,)),
        p3_w=w(ks[14], (C2, C2)), p3_b=w(ks[15], (C2,)),
        p4_w=w(ks[16], (C2, C)), p4_b=w(ks[17], (C,)),
    )


def reference(x, params):
    """Pure-JAX NHWC reference mirroring the PyTorch module (unfused, f32 HIGHEST)."""
    x = x.astype(jnp.float32)
    hp = lax.Precision.HIGHEST

    def conv1x1(h, wt, b):
        return jnp.einsum('nhwc,cd->nhwd', h, wt, precision=hp) + b

    def dwconv(h, wt, b):
        cc = h.shape[-1]
        y = lax.conv_general_dilated(
            h, wt.reshape(3, 3, 1, cc), (1, 1),
            ((PAD_H, PAD_H), (PAD_W, PAD_W)),
            rhs_dilation=(DIL_H, DIL_W),
            dimension_numbers=('NHWC', 'HWIO', 'NHWC'),
            feature_group_count=cc, precision=hp)
        return y + b

    def bn_relu(h, gamma, beta):
        mean = jnp.mean(h, axis=(0, 1, 2))
        var = jnp.mean((h - mean) ** 2, axis=(0, 1, 2))
        s = gamma / jnp.sqrt(var + BN_EPS)
        b = beta - mean * s
        return jnp.maximum(h * s + b, 0.0)

    h = bn_relu(x, params['bn1_gamma'], params['bn1_beta'])
    h = dwconv(h, params['dw1_w'], params['dw1_b'])
    h = conv1x1(h, params['p1_w'], params['p1_b'])
    h = conv1x1(h, params['p2_w'], params['p2_b'])
    h = bn_relu(h, params['bn2_gamma'], params['bn2_beta'])
    h = dwconv(h, params['dw2_w'], params['dw2_b'])
    h = conv1x1(h, params['p3_w'], params['p3_b'])
    h = conv1x1(h, params['p4_w'], params['p4_b'])
    skip = conv1x1(x, params['skip_w'], params['skip_b'])
    return h + skip


# -------------------------------- main ---------------------------------------


if __name__ == "__main__":
    key = jax.random.PRNGKey(0)
    kx, kp = jax.random.split(key)

    # NHWC end-to-end; n_chan = out_chan = groups = 64 (module defaults),
    # small batch/spatial.
    N, H, W, C = 2, 16, 16, 64
    x = jax.random.normal(kx, (N, H, W, C), jnp.float32)
    params = init_params(kp, C)

    out = jax.block_until_ready(ups_res_block(x, params))
    ref = jax.block_until_ready(reference(x, params))

    assert out.shape == (N, H, W, C), out.shape
    err = float(jnp.max(jnp.abs(out - ref)))
    scale = float(jnp.max(jnp.abs(ref))) + 1e-6
    assert err < 2e-2 * scale, f"mismatch: max|err|={err} vs scale={scale}"

    print("KERNEL_OK")
</pallas_src>

<mosaic_0001>
module attributes {stable_mosaic.version = 11 : i64} {
  func.func @stage1_kernel(%arg0: i32, %arg1: memref<2x16x16x64xf32, #tpu.memory_space<vmem>>, %arg2: memref<11x64xf32, #tpu.memory_space<vmem>>, %arg3: memref<64x128xbf16, #tpu.memory_space<vmem>>, %arg4: memref<1x128xf32, #tpu.memory_space<vmem>>, %arg5: memref<2x16x16x128xbf16, #tpu.memory_space<vmem>>, %arg6: memref<1x2x128xf32, #tpu.memory_space<vmem>>, %arg7: memref<2x20x27x64xf32, #tpu.memory_space<vmem>>) attributes {dimension_semantics = [#tpu.dimension_semantics<parallel>], iteration_bounds = array<i64: 1>, scalar_prefetch = 0 : i64, scratch_operands = 1 : i64, tpu.core_type = #tpu.core_type<tc>, window_params = [{transform_indices = @transform_0, window_bounds = array<i64: 2, 16, 16, 64>}, {pipeline_mode = #tpu.pipeline_mode<synchronous>, transform_indices = @transform_1, window_bounds = array<i64: 11, 64>}, {pipeline_mode = #tpu.pipeline_mode<synchronous>, transform_indices = @transform_2, window_bounds = array<i64: 64, 128>}, {pipeline_mode = #tpu.pipeline_mode<synchronous>, transform_indices = @transform_3, window_bounds = array<i64: 1, 128>}, {transform_indices = @transform_4, window_bounds = array<i64: 2, 16, 16, 128>}, {transform_indices = @transform_5, window_bounds = array<i64: 1, 2, 128>}]} {
    %c0 = arith.constant 0 : index
    %c0_0 = arith.constant 0 : index
    %c0_1 = arith.constant 0 : index
    %c0_2 = arith.constant 0 : index
    %0 = vector.load %arg1[%c0, %c0_0, %c0_1, %c0_2] : memref<2x16x16x64xf32, #tpu.memory_space<vmem>>, vector<2x16x16x64xf32>
    %c0_3 = arith.constant 0 : index
    %c0_4 = arith.constant 0 : index
    %1 = vector.load %arg2[%c0_3, %c0_4] : memref<11x64xf32, #tpu.memory_space<vmem>>, vector<1x64xf32>
    %2 = vector.shape_cast %1 : vector<1x64xf32> to vector<64xf32>
    %3 = vector.shape_cast %2 : vector<64xf32> to vector<1x1x1x64xf32>
    %4 = vector.broadcast %3 : vector<1x1x1x64xf32> to vector<2x16x16x64xf32>
    %5 = arith.mulf %0, %4 : vector<2x16x16x64xf32>
    %c1 = arith.constant 1 : index
    %c0_5 = arith.constant 0 : index
    %6 = vector.load %arg2[%c1, %c0_5] : memref<11x64xf32, #tpu.memory_space<vmem>>, vector<1x64xf32>
    %7 = vector.shape_cast %6 : vector<1x64xf32> to vector<64xf32>
    %8 = vector.shape_cast %7 : vector<64xf32> to vector<1x1x1x64xf32>
    %9 = vector.broadcast %8 : vector<1x1x1x64xf32> to vector<2x16x16x64xf32>
    %10 = arith.addf %5, %9 : vector<2x16x16x64xf32>
    %cst = arith.constant 0.000000e+00 : f32
    %11 = vector.broadcast %cst : f32 to vector<2x16x16x64xf32>
    %12 = arith.maximumf %10, %11 : vector<2x16x16x64xf32>
    %cst_6 = arith.constant 0.000000e+00 : f32
    %13 = vector.broadcast %cst_6 : f32 to vector<2x2x27x64xf32>
    %c0_7 = arith.constant 0 : index
    %c0_8 = arith.constant 0 : index
    %c0_9 = arith.constant 0 : index
    %c0_10 = arith.constant 0 : index
    %14 = vector.load %arg7[%c0_7, %c0_8, %c0_9, %c0_10] : memref<2x20x27x64xf32, #tpu.memory_space<vmem>>, vector<2x2x27x64xf32>
    tpu.vector_store %arg7[%c0_7, %c0_8, %c0_9, %c0_10], %13 {strides = array<i32>} : memref<2x20x27x64xf32, #tpu.memory_space<vmem>>, vector<2x2x27x64xf32>,
    %cst_11 = arith.constant 0.000000e+00 : f32
    %15 = vector.broadcast %cst_11 : f32 to vector<2x2x27x64xf32>
    %c0_12 = arith.constant 0 : index
    %c18 = arith.constant 18 : index
    %c0_13 = arith.constant 0 : index
    %c0_14 = arith.constant 0 : index
    %16 = vector.load %arg7[%c0_12, %c18, %c0_13, %c0_14] : memref<2x20x27x64xf32, #tpu.memory_space<vmem>>, vector<2x2x27x64xf32>
    tpu.vector_store %arg7[%c0_12, %c18, %c0_13, %c0_14], %15 {strides = array<i32>} : memref<2x20x27x64xf32, #tpu.memory_space<vmem>>, vector<2x2x27x64xf32>,
    %cst_15 = arith.constant 0.000000e+00 : f32
    %17 = vector.broadcast %cst_15 : f32 to vector<2x16x8x64xf32>
    %c0_16 = arith.constant 0 : index
    %c2 = arith.constant 2 : index
    %c0_17 = arith.constant 0 : index
    %c0_18 = arith.constant 0 : index
    %18 = vector.load %arg7[%c0_16, %c2, %c0_17, %c0_18] : memref<2x20x27x64xf32, #tpu.memory_space<vmem>>, vector<2x16x8x64xf32>
    tpu.vector_store %arg7[%c0_16, %c2, %c0_17, %c0_18], %17 {strides = array<i32>} : memref<2x20x27x64xf32, #tpu.memory_space<vmem>>, vector<2x16x8x64xf32>,
    %cst_19 = arith.constant 0.000000e+00 : f32
    %19 = vector.broadcast %cst_19 : f32 to vector<2x16x3x64xf32>
    %c0_20 = arith.constant 0 : index
    %c2_21 = arith.constant 2 : index
    %c24 = arith.constant 24 : index
    %c0_22 = arith.constant 0 : index
    %20 = vector.load %arg7[%c0_20, %c2_21, %c24, %c0_22] : memref<2x20x27x64xf32, #tpu.memory_space<vmem>>, vector<2x16x3x64xf32>
    tpu.vector_store %arg7[%c0_20, %c2_21, %c24, %c0_22], %19 {strides = array<i32>} : memref<2x20x27x64xf32, #tpu.memory_space<vmem>>, vector<2x16x3x64xf32>,
    %c0_23 = arith.constant 0 : index
    %c2_24 = arith.constant 2 : index
    %c8 = arith.constant 8 : index
    %c0_25 = arith.constant 0 : index
    %21 = vector.load %arg7[%c0_23, %c2_24, %c8, %c0_25] : memref<2x20x27x64xf32, #tpu.memory_space<vmem>>, vector<2x16x16x64xf32>
    tpu.vector_store %arg7[%c0_23, %c2_24, %c8, %c0_25], %12 {strides = array<i32>} : memref<2x20x27x64xf32, #tpu.memory_space<vmem>>, vector<2x16x16x64xf32>,
    %c0_26 = arith.constant 0 : index
    %c0_27 = arith.constant 0 : index
    %c5 = arith.constant 5 : index
    %c0_28 = arith.constant 0 : index
    %22 = vector.load %arg7[%c0_26, %c0_27, %c5, %c0_28] : memref<2x20x27x64xf32, #tpu.memory_space<vmem>>, vector<2x16x16x64xf32>
    %c2_29 = arith.constant 2 : index
    %c0_30 = arith.constant 0 : index
    %23 = vector.load %arg2[%c2_29, %c0_30] : memref<11x64xf32, #tpu.memory_space<vmem>>, vector<1x64xf32>
    %24 = vector.shape_cast %23 : vector<1x64xf32> to vector<64xf32>
    %25 = vector.shape_cast %24 : vector<64xf32> to vector<1x1x1x64xf32>
    %26 = vector.broadcast %25 : vector<1x1x1x64xf32> to vector<2x16x16x64xf32>
    %27 = arith.mulf %22, %26 : vector<2x16x16x64xf32>
    %c0_31 = arith.constant 0 : index
    %c0_32 = arith.constant 0 : index
    %c8_33 = arith.constant 8 : index
    %c0_34 = arith.constant 0 : index
    %28 = vector.load %arg7[%c0_31, %c0_32, %c8_33, %c0_34] : memref<2x20x27x64xf32, #tpu.memory_space<vmem>>, vector<2x16x16x64xf32>
    %c3 = arith.constant 3 : index
    %c0_35 = arith.constant 0 : index
    %29 = vector.load %arg2[%c3, %c0_35] : memref<11x64xf32, #tpu.memory_space<vmem>>, vector<1x64xf32>
    %30 = vector.shape_cast %29 : vector<1x64xf32> to vector<64xf32>
    %31 = vector.shape_cast %30 : vector<64xf32> to vector<1x1x1x64xf32>
    %32 = vector.broadcast %31 : vector<1x1x1x64xf32> to vector<2x16x16x64xf32>
    %33 = arith.mulf %28, %32 : vector<2x16x16x64xf32>
    %34 = arith.addf %27, %33 : vector<2x16x16x64xf32>
    %c0_36 = arith.constant 0 : index
    %c0_37 = arith.constant 0 : index
    %c11 = arith.constant 11 : index
    %c0_38 = arith.constant 0 : index
    %35 = vector.load %arg7[%c0_36, %c0_37, %c11, %c0_38] : memref<2x20x27x64xf32, #tpu.memory_space<vmem>>, vector<2x16x16x64xf32>
    %c4 = arith.constant 4 : index
    %c0_39 = arith.constant 0 : index
    %36 = vector.load %arg2[%c4, %c0_39] : memref<11x64xf32, #tpu.memory_space<vmem>>, vector<1x64xf32>
    %37 = vector.shape_cast %36 : vector<1x64xf32> to vector<64xf32>
    %38 = vector.shape_cast %37 : vector<64xf32> to vector<1x1x1x64xf32>
    %39 = vector.broadcast %38 : vector<1x1x1x64xf32> to vector<2x16x16x64xf32>
    %40 = arith.mulf %35, %39 : vector<2x16x16x64xf32>
    %41 = arith.addf %34, %40 : vector<2x16x16x64xf32>
    %c0_40 = arith.constant 0 : index
    %c2_41 = arith.constant 2 : index
    %c5_42 = arith.constant 5 : index
    %c0_43 = arith.constant 0 : index
    %42 = vector.load %arg7[%c0_40, %c2_41, %c5_42, %c0_43] : memref<2x20x27x64xf32, #tpu.memory_space<vmem>>, vector<2x16x16x64xf32>
    %c5_44 = arith.constant 5 : index
    %c0_45 = arith.constant 0 : index
    %43 = vector.load %arg2[%c5_44, %c0_45] : memref<11x64xf32, #tpu.memory_space<vmem>>, vector<1x64xf32>
    %44 = vector.shape_cast %43 : vector<1x64xf32> to vector<64xf32>
    %45 = vector.shape_cast %44 : vector<64xf32> to vector<1x1x1x64xf32>
    %46 = vector.broadcast %45 : vector<1x1x1x64xf32> to vector<2x16x16x64xf32>
    %47 = arith.mulf %42, %46 : vector<2x16x16x64xf32>
    %48 = arith.addf %41, %47 : vector<2x16x16x64xf32>
    %c0_46 = arith.constant 0 : index
    %c2_47 = arith.constant 2 : index
    %c8_48 = arith.constant 8 : index
    %c0_49 = arith.constant 0 : index
    %49 = vector.load %arg7[%c0_46, %c2_47, %c8_48, %c0_49] : memref<2x20x27x64xf32, #tpu.memory_space<vmem>>, vector<2x16x16x64xf32>
    %c6 = arith.constant 6 : index
    %c0_50 = arith.constant 0 : index
    %50 = vector.load %arg2[%c6, %c0_50] : memref<11x64xf32, #tpu.memory_space<vmem>>, vector<1x64xf32>
    %51 = vector.shape_cast %50 : vector<1x64xf32> to vector<64xf32>
    %52 = vector.shape_cast %51 : vector<64xf32> to vector<1x1x1x64xf32>
    %53 = vector.broadcast %52 : vector<1x1x1x64xf32> to vector<2x16x16x64xf32>
    %54 = arith.mulf %49, %53 : vector<2x16x16x64xf32>
    %55 = arith.addf %48, %54 : vector<2x16x16x64xf32>
    %c0_51 = arith.constant 0 : index
    %c2_52 = arith.constant 2 : index
    %c11_53 = arith.constant 11 : index
    %c0_54 = arith.constant 0 : index
    %56 = vector.load %arg7[%c0_51, %c2_52, %c11_53, %c0_54] : memref<2x20x27x64xf32, #tpu.memory_space<vmem>>, vector<2x16x16x64xf32>
    %c7 = arith.constant 7 : index
    %c0_55 = arith.constant 0 : index
    %57 = vector.load %arg2[%c7, %c0_55] : memref<11x64xf32, #tpu.memory_space<vmem>>, vector<1x64xf32>
    %58 = vector.shape_cast %57 : vector<1x64xf32> to vector<64xf32>
    %59 = vector.shape_cast %58 : vector<64xf32> to vector<1x1x1x64xf32>
    %60 = vector.broadcast %59 : vector<1x1x1x64xf32> to vector<2x16x16x64xf32>
    %61 = arith.mulf %56, %60 : vector<2x16x16x64xf32>
    %62 = arith.addf %55, %61 : vector<2x16x16x64xf32>
    %c0_56 = arith.constant 0 : index
    %c4_57 = arith.constant 4 : index
    %c5_58 = arith.constant 5 : index
    %c0_59 = arith.constant 0 : index
    %63 = vector.load %arg7[%c0_56, %c4_57, %c5_58, %c0_59] : memref<2x20x27x64xf32, #tpu.memory_space<vmem>>, vector<2x16x16x64xf32>
    %c8_60 = arith.constant 8 : index
    %c0_61 = arith.constant 0 : index
    %64 = vector.load %arg2[%c8_60, %c0_61] : memref<11x64xf32, #tpu.memory_space<vmem>>, vector<1x64xf32>
    %65 = vector.shape_cast %64 : vector<1x64xf32> to vector<64xf32>
    %66 = vector.shape_cast %65 : vector<64xf32> to vector<1x1x1x64xf32>
    %67 = vector.broadcast %66 : vector<1x1x1x64xf32> to vector<2x16x16x64xf32>
    %68 = arith.mulf %63, %67 : vector<2x16x16x64xf32>
    %69 = arith.addf %62, %68 : vector<2x16x16x64xf32>
    %c0_62 = arith.constant 0 : index
    %c4_63 = arith.constant 4 : index
    %c8_64 = arith.constant 8 : index
    %c0_65 = arith.constant 0 : index
    %70 = vector.load %arg7[%c0_62, %c4_63, %c8_64, %c0_65] : memref<2x20x27x64xf32, #tpu.memory_space<vmem>>, vector<2x16x16x64xf32>
    %c9 = arith.constant 9 : index
    %c0_66 = arith.constant 0 : index
    %71 = vector.load %arg2[%c9, %c0_66] : memref<11x64xf32, #tpu.memory_space<vmem>>, vector<1x64xf32>
    %72 = vector.shape_cast %71 : vector<1x64xf32> to vector<64xf32>
    %73 = vector.shape_cast %72 : vector<64xf32> to vector<1x1x1x64xf32>
    %74 = vector.broadcast %73 : vector<1x1x1x64xf32> to vector<2x16x16x64xf32>
    %75 = arith.mulf %70, %74 : vector<2x16x16x64xf32>
    %76 = arith.addf %69, %75 : vector<2x16x16x64xf32>
    %c0_67 = arith.constant 0 : index
    %c4_68 = arith.constant 4 : index
    %c11_69 = arith.constant 11 : index
    %c0_70 = arith.constant 0 : index
    %77 = vector.load %arg7[%c0_67, %c4_68, %c11_69, %c0_70] : memref<2x20x27x64xf32, #tpu.memory_space<vmem>>, vector<2x16x16x64xf32>
    %c10 = arith.constant 10 : index
    %c0_71 = arith.constant 0 : index
    %78 = vector.load %arg2[%c10, %c0_71] : memref<11x64xf32, #tpu.memory_space<vmem>>, vector<1x64xf32>
    %79 = vector.shape_cast %78 : vector<1x64xf32> to vector<64xf32>
    %80 = vector.shape_cast %79 : vector<64xf32> to vector<1x1x1x64xf32>
    %81 = vector.broadcast %80 : vector<1x1x1x64xf32> to vector<2x16x16x64xf32>
    %82 = arith.mulf %77, %81 : vector<2x16x16x64xf32>
    %83 = arith.addf %76, %82 : vector<2x16x16x64xf32>
    %84 = vector.shape_cast %83 : vector<2x16x16x64xf32> to vector<512x64xf32>
    %85 = arith.truncf %84 : vector<512x64xf32> to vector<512x64xbf16>
    %c0_72 = arith.constant 0 : index
    %c0_73 = arith.constant 0 : index
    %86 = vector.load %arg3[%c0_72, %c0_73] : memref<64x128xbf16, #tpu.memory_space<vmem>>, vector<64x128xbf16>
    %cst_74 = arith.constant dense<0.000000e+00> : vector<512x128xf32>
    %87 = tpu.matmul %85, %86, %cst_74 {dimension_numbers = #tpu.dot_dimension_numbers<[1], [0], [0], [1], [0, 0, 1, 1], [], []>} : vector<512x64xbf16>, vector<64x128xbf16>, vector<512x128xf32> -> vector<512x128xf32>
    %c0_75 = arith.constant 0 : index
    %c0_76 = arith.constant 0 : index
    %88 = vector.load %arg4[%c0_75, %c0_76] : memref<1x128xf32, #tpu.memory_space<vmem>>, vector<1x128xf32>
    %89 = vector.shape_cast %88 : vector<1x128xf32> to vector<128xf32>
    %90 = vector.shape_cast %89 : vector<128xf32> to vector<1x128xf32>
    %91 = vector.broadcast %90 : vector<1x128xf32> to vector<512x128xf32>
    %92 = arith.addf %87, %91 : vector<512x128xf32>
    %cst_77 = arith.constant dense<0.000000e+00> : vector<128xf32>
    %93 = vector.multi_reduction <add>, %92, %cst_77 [0] : vector<512x128xf32> to vector<128xf32>
    %94 = vector.shape_cast %93 : vector<128xf32> to vector<1x128xf32>
    %95 = arith.mulf %92, %92 : vector<512x128xf32>
    %cst_78 = arith.constant dense<0.000000e+00> : vector<128xf32>
    %96 = vector.multi_reduction <add>, %95, %cst_78 [0] : vector<512x128xf32> to vector<128xf32>
    %97 = vector.shape_cast %96 : vector<128xf32> to vector<1x128xf32>
    %98 = tpu.concatenate %94, %97 in 0 : vector<1x128xf32>, vector<1x128xf32> -> vector<2x128xf32>
    %c0_79 = arith.constant 0 : index
    %c0_80 = arith.constant 0 : index
    %c0_81 = arith.constant 0 : index
    %99 = vector.load %arg6[%c0_79, %c0_80, %c0_81] : memref<1x2x128xf32, #tpu.memory_space<vmem>>, vector<1x2x128xf32>
    %100 = vector.shape_cast %99 : vector<1x2x128xf32> to vector<2x128xf32>
    %101 = vector.shape_cast %98 : vector<2x128xf32> to vector<1x2x128xf32>
    tpu.vector_store %arg6[%c0_79, %c0_80, %c0_81], %101 {strides = array<i32>} : memref<1x2x128xf32, #tpu.memory_space<vmem>>, vector<1x2x128xf32>,
    %102 = vector.shape_cast %92 : vector<512x128xf32> to vector<2x16x16x128xf32>
    %103 = arith.truncf %102 : vector<2x16x16x128xf32> to vector<2x16x16x128xbf16>
    %c0_82 = arith.constant 0 : index
    %c0_83 = arith.constant 0 : index
    %c0_84 = arith.constant 0 : index
    %c0_85 = arith.constant 0 : index
    %104 = vector.load %arg5[%c0_82, %c0_83, %c0_84, %c0_85] : memref<2x16x16x128xbf16, #tpu.memory_space<vmem>>, vector<2x16x16x128xbf16>
    tpu.vector_store %arg5[%c0_82, %c0_83, %c0_84, %c0_85], %103 {strides = array<i32>} : memref<2x16x16x128xbf16, #tpu.memory_space<vmem>>, vector<2x16x16x128xbf16>,
    return
  }
  func.func @transform_0(%arg0: i32) -> (i32, i32, i32, i32) {
    %c0_i32 = arith.constant 0 : i32
    %c0_i32_0 = arith.constant 0 : i32
    %c0_i32_1 = arith.constant 0 : i32
    %c0_i32_2 = arith.constant 0 : i32
    return %arg0, %c0_i32, %c0_i32_0, %c0_i32_1 : i32, i32, i32, i32
  }
  func.func @transform_1(%arg0: i32) -> (i32, i32) {
    %c0_i32 = arith.constant 0 : i32
    %c0_i32_0 = arith.constant 0 : i32
    %c0_i32_1 = arith.constant 0 : i32
    return %c0_i32, %c0_i32_0 : i32, i32
  }
  func.func @transform_2(%arg0: i32) -> (i32, i32) {
    %c0_i32 = arith.constant 0 : i32
    %c0_i32_0 = arith.constant 0 : i32
    %c0_i32_1 = arith.constant 0 : i32
    return %c0_i32, %c0_i32_0 : i32, i32
  }
  func.func @transform_3(%arg0: i32) -> (i32, i32) {
    %c0_i32 = arith.constant 0 : i32
    %c0_i32_0 = arith.constant 0 : i32
    %c0_i32_1 = arith.constant 0 : i32
    return %c0_i32, %c0_i32_0 : i32, i32
  }
  func.func @transform_4(%arg0: i32) -> (i32, i32, i32, i32) {
    %c0_i32 = arith.constant 0 : i32
    %c0_i32_0 = arith.constant 0 : i32
    %c0_i32_1 = arith.constant 0 : i32
    %c0_i32_2 = arith.constant 0 : i32
    return %arg0, %c0_i32, %c0_i32_0, %c0_i32_1 : i32, i32, i32, i32
  }
  func.func @transform_5(%arg0: i32) -> (i32, i32, i32) {
    %c0_i32 = arith.constant 0 : i32
    %c0_i32_0 = arith.constant 0 : i32
    %c0_i32_1 = arith.constant 0 : i32
    return %arg0, %c0_i32, %c0_i32_0 : i32, i32, i32
  }
}

</mosaic_0001>

<llo_original>
// kernel: tpu_custom_call.1
$region0: #{tpu_custom_call.1}
  #allocation0 [shape = 'u32[]', space=smem, size = 0x4, offset = 0x4, fixed_abs, tag = 'smem constant byte address 0x4 - core index']
  #allocation1 [shape = 'u32[72,128]{1,0:T(1,128)}', space=vmem, size = 0x9000, scoped, tag = 'internal scratch']
  #allocation2 [shape = 'f32[2,20,27,64]{3,2,1,0:T(8,128)}', space=vmem, size = 0xa0000, scoped, tag = 'scratch operand']
  %s0 = inlined_call_operand.hbm [shape: f32[2,16,16,64], index: 0, kind: input, shape index: {}]
  %s1 = inlined_call_operand.hbm [shape: f32[11,64], index: 1, kind: input, shape index: {}]
  %s2 = inlined_call_operand.hbm [shape: bf16[64,128], index: 2, kind: input, shape index: {}]
  %s3 = inlined_call_operand.vmem [shape: f32[1,128], index: 3, kind: input, shape index: {}]
  %s4 = inlined_call_operand.hbm [shape: bf16[2,16,16,128], index: 4, kind: output, shape index: {0}]
  %s5 = inlined_call_operand.hbm [shape: f32[1,2,128], index: 5, kind: output, shape index: {1}]
  %6 = xla_tuple %s4, %s5
  %s7 = sld [smem:[#allocation0]]
  $region46: #{tpu_custom_call.1} parent=0
    _
  %s9 = ssub.s32 1, %s7
  %s10 = scalar_select 0, %s9, %s7
  $region1: #{tpu_custom_call.1} parent=0
    #allocation3 [shape = 'u8[262144]{0}', space=vmem, size = 0x40000, scoped, tag = 'input window, operand 0, single buffered']
    #allocation4 [shape = 's32[1]{0}', space=sflag, size = 0x4, scoped, tag = 'scoped memory for tpu_custom_call.1']
    #allocation5 [shape = 's32[1]{0}', space=sflag, size = 0x4, scoped, tag = 'scoped memory for tpu_custom_call.1']
    #allocation6 [shape = 'u8[8192]{0}', space=vmem, size = 0x2000, scoped, tag = 'input window, operand 1, single buffered']
    #allocation7 [shape = 's32[1]{0}', space=sflag, size = 0x4, scoped, tag = 'scoped memory for tpu_custom_call.1']
    #allocation8 [shape = 'u8[16384]{0}', space=vmem, size = 0x4000, scoped, tag = 'input window, operand 2, single buffered']
    #allocation9 [shape = 'u8[131072]{0}', space=vmem, size = 0x20000, scoped, tag = 'output window, operand 0, single buffered']
    #allocation10 [shape = 'u8[1024]{0}', space=vmem, size = 0x400, scoped, tag = 'output window, operand 1, single buffered']
    #allocation11 [shape = 's32[1]{0}', space=sflag, size = 0x4, scoped, tag = 'scoped memory for tpu_custom_call.1']
    %11 = vsyncpa [#allocation4], 0
    %12 = vsyncpa [#allocation7], 0
    %13 = vsyncpa [#allocation5], 0
    %14 = vsyncpa [#allocation11], 0
    // Predicated region
    $region2: #{tpu_custom_call.1} parent=1 // pred_check
      _
    $region3: #{tpu_custom_call.1} parent=1 // pred_check_branch
      %16 = sbr.rel (0) target = $region5
    $region4: #{tpu_custom_call.1} parent=1 // pred_region
      %18 = vsyncadd [#allocation4], 0
      %s19 = sshll.u32 %s0, 4
      %s20 = int_to_ptr.hbm [resolvable:$true] %s19
      %s21 = sshll.u32 [#allocation3], 4
      %s22 = int_to_ptr.vmem [resolvable:$true] %s21
      %27 = dma.hbm_to_vmem [thread:$0]  %s20, 8192, %s22, [#allocation4], 128, 128, 8
    $region5: #{tpu_custom_call.1} parent=1 // pred_fallthru
      _
    // Predicated region
    $region6: #{tpu_custom_call.1} parent=1 // pred_check
      _
    $region7: #{tpu_custom_call.1} parent=1 // pred_check_branch
      %29 = sbr.rel (0) target = $region9
    $region8: #{tpu_custom_call.1} parent=1 // pred_region
      %31 = vsyncadd [#allocation7], 0
      %s32 = sshll.u32 %s1, 4
      %s33 = int_to_ptr.hbm [resolvable:$true] %s32
      %s34 = sshll.u32 [#allocation6], 4
      %s35 = int_to_ptr.vmem [resolvable:$true] %s34
      %40 = dma.hbm_to_vmem [thread:$0]  %s33, 256, %s35, [#allocation7], 128, 128, 8
    $region9: #{tpu_custom_call.1} parent=1 // pred_fallthru
      _
    // Predicated region
    $region10: #{tpu_custom_call.1} parent=1 // pred_check
      _
    $region11: #{tpu_custom_call.1} parent=1 // pred_check_branch
      %42 = sbr.rel (0) target = $region13
    $region12: #{tpu_custom_call.1} parent=1 // pred_region
      %44 = vsyncadd [#allocation7], 0
      %s45 = sshll.u32 %s2, 4
      %s46 = int_to_ptr.hbm [resolvable:$true] %s45
      %s47 = sshll.u32 [#allocation8], 4
      %s48 = int_to_ptr.vmem [resolvable:$true] %s47
      %53 = dma.hbm_to_vmem [thread:$0]  %s46, 512, %s48, [#allocation7], 64, 64, 4
    $region13: #{tpu_custom_call.1} parent=1 // pred_fallthru
      _
    // Predicated region
    $region14: #{tpu_custom_call.1} parent=1 // pred_check
      _
    $region15: #{tpu_custom_call.1} parent=1 // pred_check_branch
      %55 = sbr.rel (0) target = $region17
    $region16: #{tpu_custom_call.1} parent=1 // pred_region
      _
    $region17: #{tpu_custom_call.1} parent=1 // pred_fallthru
      _
    // Predicated region
    $region18: #{tpu_custom_call.1} parent=1 // pred_check
      _
    $region19: #{tpu_custom_call.1} parent=1 // pred_check_branch
      %57 = sbr.rel (0) target = $region21
    $region20: #{tpu_custom_call.1} parent=1 // pred_region
      %59 = dma.done [#allocation4], 8192
    $region21: #{tpu_custom_call.1} parent=1 // pred_fallthru
      _
    // Predicated region
    $region22: #{tpu_custom_call.1} parent=1 // pred_check
      _
    $region23: #{tpu_custom_call.1} parent=1 // pred_check_branch
      %61 = sbr.rel (0) target = $region25
    $region24: #{tpu_custom_call.1} parent=1 // pred_region
      %63 = dma.done [#allocation7], 256
    $region25: #{tpu_custom_call.1} parent=1 // pred_fallthru
      _
    // Predicated region
    $region26: #{tpu_custom_call.1} parent=1 // pred_check
      _
    $region27: #{tpu_custom_call.1} parent=1 // pred_check_branch
      %65 = sbr.rel (0) target = $region29
    $region28: #{tpu_custom_call.1} parent=1 // pred_region
      %67 = dma.done [#allocation7], 512
    $region29: #{tpu_custom_call.1} parent=1 // pred_fallthru
      _
    %v69 = vld [vmem:[#allocation3] sm:$0xff]
    %v70 = vld [vmem:[#allocation3 + $0x8] sm:$0xff]
    %v71 = vld [vmem:[#allocation3 + $0x10] sm:$0xff]
    %v72 = vld [vmem:[#allocation3 + $0x18] sm:$0xff]
    %v73 = vld [vmem:[#allocation3 + $0x20] sm:$0xff]
    %v74 = vld [vmem:[#allocation3 + $0x28] sm:$0xff]
    %v75 = vld [vmem:[#allocation3 + $0x30] sm:$0xff]
    %v76 = vld [vmem:[#allocation3 + $0x38] sm:$0xff]
    %v77 = vld [vmem:[#allocation3 + $0x40] sm:$0xff]
    %v78 = vld [vmem:[#allocation3 + $0x48] sm:$0xff]
    %v79 = vld [vmem:[#allocation3 + $0x50] sm:$0xff]
    %v80 = vld [vmem:[#allocation3 + $0x58] sm:$0xff]
    %v81 = vld [vmem:[#allocation3 + $0x60] sm:$0xff]
    %v82 = vld [vmem:[#allocation3 + $0x68] sm:$0xff]
    %v83 = vld [vmem:[#allocation3 + $0x70] sm:$0xff]
    %v84 = vld [vmem:[#allocation3 + $0x78] sm:$0xff]
    %v85 = vld [vmem:[#allocation3 + $0x80] sm:$0xff]
    %v86 = vld [vmem:[#allocation3 + $0x88] sm:$0xff]
    %v87 = vld [vmem:[#allocation3 + $0x90] sm:$0xff]
    %v88 = vld [vmem:[#allocation3 + $0x98] sm:$0xff]
    %v89 = vld [vmem:[#allocation3 + $0xa0] sm:$0xff]
    %v90 = vld [vmem:[#allocation3 + $0xa8] sm:$0xff]
    %v91 = vld [vmem:[#allocation3 + $0xb0] sm:$0xff]
    %v92 = vld [vmem:[#allocation3 + $0xb8] sm:$0xff]
    %v93 = vld [vmem:[#allocation3 + $0xc0] sm:$0xff]
    %v94 = vld [vmem:[#allocation3 + $0xc8] sm:$0xff]
    %v95 = vld [vmem:[#allocation3 + $0xd0] sm:$0xff]
    %v96 = vld [vmem:[#allocation3 + $0xd8] sm:$0xff]
    %v97 = vld [vmem:[#allocation3 + $0xe0] sm:$0xff]
    %v98 = vld [vmem:[#allocation3 + $0xe8] sm:$0xff]
    %v99 = vld [vmem:[#allocation3 + $0xf0] sm:$0xff]
    %v100 = vld [vmem:[#allocation3 + $0xf8] sm:$0xff]
    %v101 = vld [vmem:[#allocation3 + $0x100] sm:$0xff]
    %v102 = vld [vmem:[#allocation3 + $0x108] sm:$0xff]
    %v103 = vld [vmem:[#allocation3 + $0x110] sm:$0xff]
    %v104 = vld [vmem:[#allocation3 + $0x118] sm:$0xff]
    %v105 = vld [vmem:[#allocation3 + $0x120] sm:$0xff]
    %v106 = vld [vmem:[#allocation3 + $0x128] sm:$0xff]
    %v107 = vld [vmem:[#allocation3 + $0x130] sm:$0xff]
    %v108 = vld [vmem:[#allocation3 + $0x138] sm:$0xff]
    %v109 = vld [vmem:[#allocation3 + $0x140] sm:$0xff]
    %v110 = vld [vmem:[#allocation3 + $0x148] sm:$0xff]
    %v111 = vld [vmem:[#allocation3 + $0x150] sm:$0xff]
    %v112 = vld [vmem:[#allocation3 + $0x158] sm:$0xff]
    %v113 = vld [vmem:[#allocation3 + $0x160] sm:$0xff]
    %v114 = vld [vmem:[#allocation3 + $0x168] sm:$0xff]
    %v115 = vld [vmem:[#allocation3 + $0x170] sm:$0xff]
    %v116 = vld [vmem:[#allocation3 + $0x178] sm:$0xff]
    %v117 = vld [vmem:[#allocation3 + $0x180] sm:$0xff]
    %v118 = vld [vmem:[#allocation3 + $0x188] sm:$0xff]
    %v119 = vld [vmem:[#allocation3 + $0x190] sm:$0xff]
    %v120 = vld [vmem:[#allocation3 + $0x198] sm:$0xff]
    %v121 = vld [vmem:[#allocation3 + $0x1a0] sm:$0xff]
    %v122 = vld [vmem:[#allocation3 + $0x1a8] sm:$0xff]
    %v123 = vld [vmem:[#allocation3 + $0x1b0] sm:$0xff]
    %v124 = vld [vmem:[#allocation3 + $0x1b8] sm:$0xff]
    %v125 = vld [vmem:[#allocation3 + $0x1c0] sm:$0xff]
    %v126 = vld [vmem:[#allocation3 + $0x1c8] sm:$0xff]
    %v127 = vld [vmem:[#allocation3 + $0x1d0] sm:$0xff]
    %v128 = vld [vmem:[#allocation3 + $0x1d8] sm:$0xff]
    %v129 = vld [vmem:[#allocation3 + $0x1e0] sm:$0xff]
    %v130 = vld [vmem:[#allocation3 + $0x1e8] sm:$0xff]
    %v131 = vld [vmem:[#allocation3 + $0x1f0] sm:$0xff]
    %v132 = vld [vmem:[#allocation3 + $0x1f8] sm:$0xff]
    %v133 = vld [vmem:[#allocation6] sm:$0x1]
    %v134 = vperm.slane %v133, 0
    %v135 = vmul.f32 %v69, %v134
    %v136 = vmul.f32 %v70, %v134
    %v137 = vmul.f32 %v71, %v134
    %v138 = vmul.f32 %v72, %v134
    %v139 = vmul.f32 %v73, %v134
    %v140 = vmul.f32 %v74, %v134
    %v141 = vmul.f32 %v75, %v134
    %v142 = vmul.f32 %v76, %v134
    %v143 = vmul.f32 %v77, %v134
    %v144 = vmul.f32 %v78, %v134
    %v145 = vmul.f32 %v79, %v134
    %v146 = vmul.f32 %v80, %v134
    %v147 = vmul.f32 %v81, %v134
    %v148 = vmul.f32 %v82, %v134
    %v149 = vmul.f32 %v83, %v134
    %v150 = vmul.f32 %v84, %v134
    %v151 = vmul.f32 %v85, %v134
    %v152 = vmul.f32 %v86, %v134
    %v153 = vmul.f32 %v87, %v134
    %v154 = vmul.f32 %v88, %v134
    %v155 = vmul.f32 %v89, %v134
    %v156 = vmul.f32 %v90, %v134
    %v157 = vmul.f32 %v91, %v134
    %v158 = vmul.f32 %v92, %v134
    %v159 = vmul.f32 %v93, %v134
    %v160 = vmul.f32 %v94, %v134
    %v161 = vmul.f32 %v95, %v134
    %v162 = vmul.f32 %v96, %v134
    %v163 = vmul.f32 %v97, %v134
    %v164 = vmul.f32 %v98, %v134
    %v165 = vmul.f32 %v99, %v134
    %v166 = vmul.f32 %v100, %v134
    %v167 = vmul.f32 %v101, %v134
    %v168 = vmul.f32 %v102, %v134
    %v169 = vmul.f32 %v103, %v134
    %v170 = vmul.f32 %v104, %v134
    %v171 = vmul.f32 %v105, %v134
    %v172 = vmul.f32 %v106, %v134
    %v173 = vmul.f32 %v107, %v134
    %v174 = vmul.f32 %v108, %v134
    %v175 = vmul.f32 %v109, %v134
    %v176 = vmul.f32 %v110, %v134
    %v177 = vmul.f32 %v111, %v134
    %v178 = vmul.f32 %v112, %v134
    %v179 = vmul.f32 %v113, %v134
    %v180 = vmul.f32 %v114, %v134
    %v181 = vmul.f32 %v115, %v134
    %v182 = vmul.f32 %v116, %v134
    %v183 = vmul.f32 %v117, %v134
    %v184 = vmul.f32 %v118, %v134
    %v185 = vmul.f32 %v119, %v134
    %v186 = vmul.f32 %v120, %v134
    %v187 = vmul.f32 %v121, %v134
    %v188 = vmul.f32 %v122, %v134
    %v189 = vmul.f32 %v123, %v134
    %v190 = vmul.f32 %v124, %v134
    %v191 = vmul.f32 %v125, %v134
    %v192 = vmul.f32 %v126, %v134
    %v193 = vmul.f32 %v127, %v134
    %v194 = vmul.f32 %v128, %v134
    %v195 = vmul.f32 %v129, %v134
    %v196 = vmul.f32 %v130, %v134
    %v197 = vmul.f32 %v131, %v134
    %v198 = vmul.f32 %v132, %v134
    %v199 = vld [vmem:[#allocation6 + $0x1] sm:$0x1]
    %v200 = vperm.slane %v199, 0
    %v201 = vadd.f32 %v135, %v200
    %v202 = vadd.f32 %v136, %v200
    %v203 = vadd.f32 %v137, %v200
    %v204 = vadd.f32 %v138, %v200
    %v205 = vadd.f32 %v139, %v200
    %v206 = vadd.f32 %v140, %v200
    %v207 = vadd.f32 %v141, %v200
    %v208 = vadd.f32 %v142, %v200
    %v209 = vadd.f32 %v143, %v200
    %v210 = vadd.f32 %v144, %v200
    %v211 = vadd.f32 %v145, %v200
    %v212 = vadd.f32 %v146, %v200
    %v213 = vadd.f32 %v147, %v200
    %v214 = vadd.f32 %v148, %v200
    %v215 = vadd.f32 %v149, %v200
    %v216 = vadd.f32 %v150, %v200
    %v217 = vadd.f32 %v151, %v200
    %v218 = vadd.f32 %v152, %v200
    %v219 = vadd.f32 %v153, %v200
    %v220 = vadd.f32 %v154, %v200
    %v221 = vadd.f32 %v155, %v200
    %v222 = vadd.f32 %v156, %v200
    %v223 = vadd.f32 %v157, %v200
    %v224 = vadd.f32 %v158, %v200
    %v225 = vadd.f32 %v159, %v200
    %v226 = vadd.f32 %v160, %v200
    %v227 = vadd.f32 %v161, %v200
    %v228 = vadd.f32 %v162, %v200
    %v229 = vadd.f32 %v163, %v200
    %v230 = vadd.f32 %v164, %v200
    %v231 = vadd.f32 %v165, %v200
    %v232 = vadd.f32 %v166, %v200
    %v233 = vadd.f32 %v167, %v200
    %v234 = vadd.f32 %v168, %v200
    %v235 = vadd.f32 %v169, %v200
    %v236 = vadd.f32 %v170, %v200
    %v237 = vadd.f32 %v171, %v200
    %v238 = vadd.f32 %v172, %v200
    %v239 = vadd.f32 %v173, %v200
    %v240 = vadd.f32 %v174, %v200
    %v241 = vadd.f32 %v175, %v200
    %v242 = vadd.f32 %v176, %v200
    %v243 = vadd.f32 %v177, %v200
    %v244 = vadd.f32 %v178, %v200
    %v245 = vadd.f32 %v179, %v200
    %v246 = vadd.f32 %v180, %v200
    %v247 = vadd.f32 %v181, %v200
    %v248 = vadd.f32 %v182, %v200
    %v249 = vadd.f32 %v183, %v200
    %v250 = vadd.f32 %v184, %v200
    %v251 = vadd.f32 %v185, %v200
    %v252 = vadd.f32 %v186, %v200
    %v253 = vadd.f32 %v187, %v200
    %v254 = vadd.f32 %v188, %v200
    %v255 = vadd.f32 %v189, %v200
    %v256 = vadd.f32 %v190, %v200
    %v257 = vadd.f32 %v191, %v200
    %v258 = vadd.f32 %v192, %v200
    %v259 = vadd.f32 %v193, %v200
    %v260 = vadd.f32 %v194, %v200
    %v261 = vadd.f32 %v195, %v200
    %v262 = vadd.f32 %v196, %v200
    %v263 = vadd.f32 %v197, %v200
    %v264 = vadd.f32 %v198, %v200
    %v265 = vmax.f32 %v201, 0.0
    %v266 = vmax.f32 %v202, 0.0
    %v267 = vmax.f32 %v203, 0.0
    %v268 = vmax.f32 %v204, 0.0
    %v269 = vmax.f32 %v205, 0.0
    %v270 = vmax.f32 %v206, 0.0
    %v271 = vmax.f32 %v207, 0.0
    %v272 = vmax.f32 %v208, 0.0
    %v273 = vmax.f32 %v209, 0.0
    %v274 = vmax.f32 %v210, 0.0
    %v275 = vmax.f32 %v211, 0.0
    %v276 = vmax.f32 %v212, 0.0
    %v277 = vmax.f32 %v213, 0.0
    %v278 = vmax.f32 %v214, 0.0
    %v279 = vmax.f32 %v215, 0.0
    %v280 = vmax.f32 %v216, 0.0
    %v281 = vmax.f32 %v217, 0.0
    %v282 = vmax.f32 %v218, 0.0
    %v283 = vmax.f32 %v219, 0.0
    %v284 = vmax.f32 %v220, 0.0
    %v285 = vmax.f32 %v221, 0.0
    %v286 = vmax.f32 %v222, 0.0
    %v287 = vmax.f32 %v223, 0.0
    %v288 = vmax.f32 %v224, 0.0
    %v289 = vmax.f32 %v225, 0.0
    %v290 = vmax.f32 %v226, 0.0
    %v291 = vmax.f32 %v227, 0.0
    %v292 = vmax.f32 %v228, 0.0
    %v293 = vmax.f32 %v229, 0.0
    %v294 = vmax.f32 %v230, 0.0
    %v295 = vmax.f32 %v231, 0.0
    %v296 = vmax.f32 %v232, 0.0
    %v297 = vmax.f32 %v233, 0.0
    %v298 = vmax.f32 %v234, 0.0
    %v299 = vmax.f32 %v235, 0.0
    %v300 = vmax.f32 %v236, 0.0
    %v301 = vmax.f32 %v237, 0.0
    %v302 = vmax.f32 %v238, 0.0
    %v303 = vmax.f32 %v239, 0.0
    %v304 = vmax.f32 %v240, 0.0
    %v305 = vmax.f32 %v241, 0.0
    %v306 = vmax.f32 %v242, 0.0
    %v307 = vmax.f32 %v243, 0.0
    %v308 = vmax.f32 %v244, 0.0
    %v309 = vmax.f32 %v245, 0.0
    %v310 = vmax.f32 %v246, 0.0
    %v311 = vmax.f32 %v247, 0.0
    %v312 = vmax.f32 %v248, 0.0
    %v313 = vmax.f32 %v249, 0.0
    %v314 = vmax.f32 %v250, 0.0
    %v315 = vmax.f32 %v251, 0.0
    %v316 = vmax.f32 %v252, 0.0
    %v317 = vmax.f32 %v253, 0.0
    %v318 = vmax.f32 %v254, 0.0
    %v319 = vmax.f32 %v255, 0.0
    %v320 = vmax.f32 %v256, 0.0
    %v321 = vmax.f32 %v257, 0.0
    %v322 = vmax.f32 %v258, 0.0
    %v323 = vmax.f32 %v259, 0.0
    %v324 = vmax.f32 %v260, 0.0
    %v325 = vmax.f32 %v261, 0.0
    %v326 = vmax.f32 %v262, 0.0
    %v327 = vmax.f32 %v263, 0.0
    %v328 = vmax.f32 %v264, 0.0
    %vm329 = vcmask 523264
    %330 = vst.msk [vmem:[#allocation2] sm:$0xff] %vm329, 0.0
    %331 = vst.msk [vmem:[#allocation2 + $0x8] sm:$0xff] %vm329, 0.0
    %332 = vst.msk [vmem:[#allocation2 + $0x10] sm:$0xff] %vm329, 0.0
    %vm333 = vcmask 518144
    %334 = vst.msk [vmem:[#allocation2 + $0x18] sm:$0x7] %vm333, 0.0
    %335 = vst.msk [vmem:[#allocation2 + $0x20] sm:$0xff] %vm329, 0.0
    %336 = vst.msk [vmem:[#allocation2 + $0x28] sm:$0xff] %vm329, 0.0
    %337 = vst.msk [vmem:[#allocation2 + $0x30] sm:$0xff] %vm329, 0.0
    %338 = vst.msk [vmem:[#allocation2 + $0x38] sm:$0x7] %vm333, 0.0
    %339 = vst.msk [vmem:[#allocation2 + $0x280] sm:$0xff] %vm329, 0.0
    %340 = vst.msk [vmem:[#allocation2 + $0x288] sm:$0xff] %vm329, 0.0
    %341 = vst.msk [vmem:[#allocation2 + $0x290] sm:$0xff] %vm329, 0.0
    %342 = vst.msk [vmem:[#allocation2 + $0x298] sm:$0x7] %vm333, 0.0
    %343 = vst.msk [vmem:[#allocation2 + $0x2a0] sm:$0xff] %vm329, 0.0
    %344 = vst.msk [vmem:[#allocation2 + $0x2a8] sm:$0xff] %vm329, 0.0
    %345 = vst.msk [vmem:[#allocation2 + $0x2b0] sm:$0xff] %vm329, 0.0
    %346 = vst.msk [vmem:[#allocation2 + $0x2b8] sm:$0x7] %vm333, 0.0
    %s347 = scalar_lea.vmem [#allocation2], 576
    %348 = vst.msk [vmem:[%s347] sm:$0xff] %vm329, 0.0
    %349 = vst.msk [vmem:[%s347 + $0x8] sm:$0xff] %vm329, 0.0
    %350 = vst.msk [vmem:[%s347 + $0x10] sm:$0xff] %vm329, 0.0
    %351 = vst.msk [vmem:[%s347 + $0x18] sm:$0x7] %vm333, 0.0
    %352 = vst.msk [vmem:[%s347 + $0x20] sm:$0xff] %vm329, 0.0
    %353 = vst.msk [vmem:[%s347 + $0x28] sm:$0xff] %vm329, 0.0
    %354 = vst.msk [vmem:[%s347 + $0x30] sm:$0xff] %vm329, 0.0
    %355 = vst.msk [vmem:[%s347 + $0x38] sm:$0x7] %vm333, 0.0
    %356 = vst.msk [vmem:[%s347 + $0x280] sm:$0xff] %vm329, 0.0
    %357 = vst.msk [vmem:[%s347 + $0x288] sm:$0xff] %vm329, 0.0
    %358 = vst.msk [vmem:[%s347 + $0x290] sm:$0xff] %vm329, 0.0
    %359 = vst.msk [vmem:[%s347 + $0x298] sm:$0x7] %vm333, 0.0
    %360 = vst.msk [vmem:[%s347 + $0x2a0] sm:$0xff] %vm329, 0.0
    %361 = vst.msk [vmem:[%s347 + $0x2a8] sm:$0xff] %vm329, 0.0
    %362 = vst.msk [vmem:[%s347 + $0x2b0] sm:$0xff] %vm329, 0.0
    %363 = vst.msk [vmem:[%s347 + $0x2b8] sm:$0x7] %vm333, 0.0
    %s364 = scalar_lea.vmem [#allocation2], 64
    %365 = vst.msk [vmem:[%s364] sm:$0xff] %vm329, 0.0
    %366 = vst.msk [vmem:[%s364 + $0x20] sm:$0xff] %vm329, 0.0
    %367 = vst.msk [vmem:[%s364 + $0x40] sm:$0xff] %vm329, 0.0
    %368 = vst.msk [vmem:[%s364 + $0x60] sm:$0xff] %vm329, 0.0
    %369 = vst.msk [vmem:[%s364 + $0x80] sm:$0xff] %vm329, 0.0
    %370 = vst.msk [vmem:[%s364 + $0xa0] sm:$0xff] %vm329, 0.0
    %371 = vst.msk [vmem:[%s364 + $0xc0] sm:$0xff] %vm329, 0.0
    %372 = vst.msk [vmem:[%s364 + $0xe0] sm:$0xff] %vm329, 0.0
    %373 = vst.msk [vmem:[%s364 + $0x100] sm:$0xff] %vm329, 0.0
    %374 = vst.msk [vmem:[%s364 + $0x120] sm:$0xff] %vm329, 0.0
    %375 = vst.msk [vmem:[%s364 + $0x140] sm:$0xff] %vm329, 0.0
    %376 = vst.msk [vmem:[%s364 + $0x160] sm:$0xff] %vm329, 0.0
    %377 = vst.msk [vmem:[%s364 + $0x180] sm:$0xff] %vm329, 0.0
    %378 = vst.msk [vmem:[%s364 + $0x1a0] sm:$0xff] %vm329, 0.0
    %379 = vst.msk [vmem:[%s364 + $0x1c0] sm:$0xff] %vm329, 0.0
    %380 = vst.msk [vmem:[%s364 + $0x1e0] sm:$0xff] %vm329, 0.0
    %381 = vst.msk [vmem:[%s364 + $0x280] sm:$0xff] %vm329, 0.0
    %382 = vst.msk [vmem:[%s364 + $0x2a0] sm:$0xff] %vm329, 0.0
    %383 = vst.msk [vmem:[%s364 + $0x2c0] sm:$0xff] %vm329, 0.0
    %384 = vst.msk [vmem:[%s364 + $0x2e0] sm:$0xff] %vm329, 0.0
    %385 = vst.msk [vmem:[%s364 + $0x300] sm:$0xff] %vm329, 0.0
    %386 = vst.msk [vmem:[%s364 + $0x320] sm:$0xff] %vm329, 0.0
    %387 = vst.msk [vmem:[%s364 + $0x340] sm:$0xff] %vm329, 0.0
    %388 = vst.msk [vmem:[%s364 + $0x360] sm:$0xff] %vm329, 0.0
    %389 = vst.msk [vmem:[%s364 + $0x380] sm:$0xff] %vm329, 0.0
    %390 = vst.msk [vmem:[%s364 + $0x3a0] sm:$0xff] %vm329, 0.0
    %391 = vst.msk [vmem:[%s364 + $0x3c0] sm:$0xff] %vm329, 0.0
    %392 = vst.msk [vmem:[%s364 + $0x3e0] sm:$0xff] %vm329, 0.0
    %393 = vst.msk [vmem:[%s364 + $0x400] sm:$0xff] %vm329, 0.0
    %394 = vst.msk [vmem:[%s364 + $0x420] sm:$0xff] %vm329, 0.0
    %395 = vst.msk [vmem:[%s364 + $0x440] sm:$0xff] %vm329, 0.0
    %396 = vst.msk [vmem:[%s364 + $0x460] sm:$0xff] %vm329, 0.0
    %397 = vst.msk [vmem:[%s364 + $0x18] sm:$0x7] %vm333, 0.0
    %398 = vst.msk [vmem:[%s364 + $0x38] sm:$0x7] %vm333, 0.0
    %399 = vst.msk [vmem:[%s364 + $0x58] sm:$0x7] %vm333, 0.0
    %400 = vst.msk [vmem:[%s364 + $0x78] sm:$0x7] %vm333, 0.0
    %401 = vst.msk [vmem:[%s364 + $0x98] sm:$0x7] %vm333, 0.0
    %402 = vst.msk [vmem:[%s364 + $0xb8] sm:$0x7] %vm333, 0.0
    %403 = vst.msk [vmem:[%s364 + $0xd8] sm:$0x7] %vm333, 0.0
    %404 = vst.msk [vmem:[%s364 + $0xf8] sm:$0x7] %vm333, 0.0
    %405 = vst.msk [vmem:[%s364 + $0x118] sm:$0x7] %vm333, 0.0
    %406 = vst.msk [vmem:[%s364 + $0x138] sm:$0x7] %vm333, 0.0
    %407 = vst.msk [vmem:[%s364 + $0x158] sm:$0x7] %vm333, 0.0
    %408 = vst.msk [vmem:[%s364 + $0x178] sm:$0x7] %vm333, 0.0
    %409 = vst.msk [vmem:[%s364 + $0x198] sm:$0x7] %vm333, 0.0
    %410 = vst.msk [vmem:[%s364 + $0x1b8] sm:$0x7] %vm333, 0.0
    %411 = vst.msk [vmem:[%s364 + $0x1d8] sm:$0x7] %vm333, 0.0
    %412 = vst.msk [vmem:[%s364 + $0x1f8] sm:$0x7] %vm333, 0.0
    %413 = vst.msk [vmem:[%s364 + $0x298] sm:$0x7] %vm333, 0.0
    %414 = vst.msk [vmem:[%s364 + $0x2b8] sm:$0x7] %vm333, 0.0
    %415 = vst.msk [vmem:[%s364 + $0x2d8] sm:$0x7] %vm333, 0.0
    %416 = vst.msk [vmem:[%s364 + $0x2f8] sm:$0x7] %vm333, 0.0
    %417 = vst.msk [vmem:[%s364 + $0x318] sm:$0x7] %vm333, 0.0
    %418 = vst.msk [vmem:[%s364 + $0x338] sm:$0x7] %vm333, 0.0
    %419 = vst.msk [vmem:[%s364 + $0x358] sm:$0x7] %vm333, 0.0
    %420 = vst.msk [vmem:[%s364 + $0x378] sm:$0x7] %vm333, 0.0
    %421 = vst.msk [vmem:[%s364 + $0x398] sm:$0x7] %vm333, 0.0
    %422 = vst.msk [vmem:[%s364 + $0x3b8] sm:$0x7] %vm333, 0.0
    %423 = vst.msk [vmem:[%s364 + $0x3d8] sm:$0x7] %vm333, 0.0
    %424 = vst.msk [vmem:[%s364 + $0x3f8] sm:$0x7] %vm333, 0.0
    %425 = vst.msk [vmem:[%s364 + $0x418] sm:$0x7] %vm333, 0.0
    %426 = vst.msk [vmem:[%s364 + $0x438] sm:$0x7] %vm333, 0.0
    %427 = vst.msk [vmem:[%s364 + $0x458] sm:$0x7] %vm333, 0.0
    %428 = vst.msk [vmem:[%s364 + $0x478] sm:$0x7] %vm333, 0.0
    %429 = vst.msk [vmem:[%s364 + $0x8] sm:$0xff] %vm329, %v265
    %430 = vst.msk [vmem:[%s364 + $0x10] sm:$0xff] %vm329, %v266
    %431 = vst.msk [vmem:[%s364 + $0x28] sm:$0xff] %vm329, %v267
    %432 = vst.msk [vmem:[%s364 + $0x30] sm:$0xff] %vm329, %v268
    %433 = vst.msk [vmem:[%s364 + $0x48] sm:$0xff] %vm329, %v269
    %434 = vst.msk [vmem:[%s364 + $0x50] sm:$0xff] %vm329, %v270
    %435 = vst.msk [vmem:[%s364 + $0x68] sm:$0xff] %vm329, %v271
    %436 = vst.msk [vmem:[%s364 + $0x70] sm:$0xff] %vm329, %v272
    %437 = vst.msk [vmem:[%s364 + $0x88] sm:$0xff] %vm329, %v273
    %438 = vst.msk [vmem:[%s364 + $0x90] sm:$0xff] %vm329, %v274
    %439 = vst.msk [vmem:[%s364 + $0xa8] sm:$0xff] %vm329, %v275
    %440 = vst.msk [vmem:[%s364 + $0xb0] sm:$0xff] %vm329, %v276
    %441 = vst.msk [vmem:[%s364 + $0xc8] sm:$0xff] %vm329, %v277
    %442 = vst.msk [vmem:[%s364 + $0xd0] sm:$0xff] %vm329, %v278
    %443 = vst.msk [vmem:[%s364 + $0xe8] sm:$0xff] %vm329, %v279
    %444 = vst.msk [vmem:[%s364 + $0xf0] sm:$0xff] %vm329, %v280
    %445 = vst.msk [vmem:[%s364 + $0x108] sm:$0xff] %vm329, %v281
    %446 = vst.msk [vmem:[%s364 + $0x110] sm:$0xff] %vm329, %v282
    %447 = vst.msk [vmem:[%s364 + $0x128] sm:$0xff] %vm329, %v283
    %448 = vst.msk [vmem:[%s364 + $0x130] sm:$0xff] %vm329, %v284
    %449 = vst.msk [vmem:[%s364 + $0x148] sm:$0xff] %vm329, %v285
    %450 = vst.msk [vmem:[%s364 + $0x150] sm:$0xff] %vm329, %v286
    %451 = vst.msk [vmem:[%s364 + $0x168] sm:$0xff] %vm329, %v287
    %452 = vst.msk [vmem:[%s364 + $0x170] sm:$0xff] %vm329, %v288
    %453 = vst.msk [vmem:[%s364 + $0x188] sm:$0xff] %vm329, %v289
    %454 = vst.msk [vmem:[%s364 + $0x190] sm:$0xff] %vm329, %v290
    %455 = vst.msk [vmem:[%s364 + $0x1a8] sm:$0xff] %vm329, %v291
    %456 = vst.msk [vmem:[%s364 + $0x1b0] sm:$0xff] %vm329, %v292
    %457 = vst.msk [vmem:[%s364 + $0x1c8] sm:$0xff] %vm329, %v293
    %458 = vst.msk [vmem:[%s364 + $0x1d0] sm:$0xff] %vm329, %v294
    %459 = vst.msk [vmem:[%s364 + $0x1e8] sm:$0xff] %vm329, %v295
    %460 = vst.msk [vmem:[%s364 + $0x1f0] sm:$0xff] %vm329, %v296
    %461 = vst.msk [vmem:[%s364 + $0x288] sm:$0xff] %vm329, %v297
    %462 = vst.msk [vmem:[%s364 + $0x290] sm:$0xff] %vm329, %v298
    %463 = vst.msk [vmem:[%s364 + $0x2a8] sm:$0xff] %vm329, %v299
    %464 = vst.msk [vmem:[%s364 + $0x2b0] sm:$0xff] %vm329, %v300
    %465 = vst.msk [vmem:[%s364 + $0x2c8] sm:$0xff] %vm329, %v301
    %466 = vst.msk [vmem:[%s364 + $0x2d0] sm:$0xff] %vm329, %v302
    %467 = vst.msk [vmem:[%s364 + $0x2e8] sm:$0xff] %vm329, %v303
    %468 = vst.msk [vmem:[%s364 + $0x2f0] sm:$0xff] %vm329, %v304
    %469 = vst.msk [vmem:[%s364 + $0x308] sm:$0xff] %vm329, %v305
    %470 = vst.msk [vmem:[%s364 + $0x310] sm:$0xff] %vm329, %v306
    %471 = vst.msk [vmem:[%s364 + $0x328] sm:$0xff] %vm329, %v307
    %472 = vst.msk [vmem:[%s364 + $0x330] sm:$0xff] %vm329, %v308
    %473 = vst.msk [vmem:[%s364 + $0x348] sm:$0xff] %vm329, %v309
    %474 = vst.msk [vmem:[%s364 + $0x350] sm:$0xff] %vm329, %v310
    %475 = vst.msk [vmem:[%s364 + $0x368] sm:$0xff] %vm329, %v311
    %476 = vst.msk [vmem:[%s364 + $0x370] sm:$0xff] %vm329, %v312
    %477 = vst.msk [vmem:[%s364 + $0x388] sm:$0xff] %vm329, %v313
    %478 = vst.msk [vmem:[%s364 + $0x390] sm:$0xff] %vm329, %v314
    %479 = vst.msk [vmem:[%s364 + $0x3a8] sm:$0xff] %vm329, %v315
    %480 = vst.msk [vmem:[%s364 + $0x3b0] sm:$0xff] %vm329, %v316
    %481 = vst.msk [vmem:[%s364 + $0x3c8] sm:$0xff] %vm329, %v317
    %482 = vst.msk [vmem:[%s364 + $0x3d0] sm:$0xff] %vm329, %v318
    %483 = vst.msk [vmem:[%s364 + $0x3e8] sm:$0xff] %vm329, %v319
    %484 = vst.msk [vmem:[%s364 + $0x3f0] sm:$0xff] %vm329, %v320
    %485 = vst.msk [vmem:[%s364 + $0x408] sm:$0xff] %vm329, %v321
    %486 = vst.msk [vmem:[%s364 + $0x410] sm:$0xff] %vm329, %v322
    %487 = vst.msk [vmem:[%s364 + $0x428] sm:$0xff] %vm329, %v323
    %488 = vst.msk [vmem:[%s364 + $0x430] sm:$0xff] %vm329, %v324
    %489 = vst.msk [vmem:[%s364 + $0x448] sm:$0xff] %vm329, %v325
    %490 = vst.msk [vmem:[%s364 + $0x450] sm:$0xff] %vm329, %v326
    %491 = vst.msk [vmem:[%s364 + $0x468] sm:$0xff] %vm329, %v327
    %492 = vst.msk [vmem:[%s364 + $0x470] sm:$0xff] %vm329, %v328
    %v493 = vld [vmem:[#allocation2 + $0x5] sm:$0xff]
    %v494 = vld [vmem:[#allocation2 + $0xd] sm:$0xff]
    %v495 = vld [vmem:[#allocation2 + $0x25] sm:$0xff]
    %v496 = vld [vmem:[#allocation2 + $0x2d] sm:$0xff]
    %v497 = vld [vmem:[#allocation2 + $0x45] sm:$0xff]
    %v498 = vld [vmem:[#allocation2 + $0x4d] sm:$0xff]
    %v499 = vld [vmem:[#allocation2 + $0x65] sm:$0xff]
    %v500 = vld [vmem:[#allocation2 + $0x6d] sm:$0xff]
    %v501 = vld [vmem:[#allocation2 + $0x85] sm:$0xff]
    %v502 = vld [vmem:[#allocation2 + $0x8d] sm:$0xff]
    %v503 = vld [vmem:[#allocation2 + $0xa5] sm:$0xff]
    %v504 = vld [vmem:[#allocation2 + $0xad] sm:$0xff]
    %v505 = vld [vmem:[#allocation2 + $0xc5] sm:$0xff]
    %v506 = vld [vmem:[#allocation2 + $0xcd] sm:$0xff]
    %v507 = vld [vmem:[#allocation2 + $0xe5] sm:$0xff]
    %v508 = vld [vmem:[#allocation2 + $0xed] sm:$0xff]
    %v509 = vld [vmem:[#allocation2 + $0x105] sm:$0xff]
    %v510 = vld [vmem:[#allocation2 + $0x10d] sm:$0xff]
    %v511 = vld [vmem:[#allocation2 + $0x125] sm:$0xff]
    %v512 = vld [vmem:[#allocation2 + $0x12d] sm:$0xff]
    %v513 = vld [vmem:[#allocation2 + $0x145] sm:$0xff]
    %v514 = vld [vmem:[#allocation2 + $0x14d] sm:$0xff]
    %v515 = vld [vmem:[#allocation2 + $0x165] sm:$0xff]
    %v516 = vld [vmem:[#allocation2 + $0x16d] sm:$0xff]
    %v517 = vld [vmem:[#allocation2 + $0x185] sm:$0xff]
    %v518 = vld [vmem:[#allocation2 + $0x18d] sm:$0xff]
    %v519 = vld [vmem:[#allocation2 + $0x1a5] sm:$0xff]
    %v520 = vld [vmem:[#allocation2 + $0x1ad] sm:$0xff]
    %v521 = vld [vmem:[#allocation2 + $0x1c5] sm:$0xff]
    %v522 = vld [vmem:[#allocation2 + $0x1cd] sm:$0xff]
    %v523 = vld [vmem:[#allocation2 + $0x1e5] sm:$0xff]
    %v524 = vld [vmem:[#allocation2 + $0x1ed] sm:$0xff]
    %v525 = vld [vmem:[#allocation2 + $0x285] sm:$0xff]
    %v526 = vld [vmem:[#allocation2 + $0x28d] sm:$0xff]
    %v527 = vld [vmem:[#allocation2 + $0x2a5] sm:$0xff]
    %v528 = vld [vmem:[#allocation2 + $0x2ad] sm:$0xff]
    %v529 = vld [vmem:[#allocation2 + $0x2c5] sm:$0xff]
    %v530 = vld [vmem:[#allocation2 + $0x2cd] sm:$0xff]
    %v531 = vld [vmem:[#allocation2 + $0x2e5] sm:$0xff]
    %v532 = vld [vmem:[#allocation2 + $0x2ed] sm:$0xff]
    %v533 = vld [vmem:[#allocation2 + $0x305] sm:$0xff]
    %v534 = vld [vmem:[#allocation2 + $0x30d] sm:$0xff]
    %v535 = vld [vmem:[#allocation2 + $0x325] sm:$0xff]
    %v536 = vld [vmem:[#allocation2 + $0x32d] sm:$0xff]
    %v537 = vld [vmem:[#allocation2 + $0x345] sm:$0xff]
    %v538 = vld [vmem:[#allocation2 + $0x34d] sm:$0xff]
    %v539 = vld [vmem:[#allocation2 + $0x365] sm:$0xff]
    %v540 = vld [vmem:[#allocation2 + $0x36d] sm:$0xff]
    %v541 = vld [vmem:[#allocation2 + $0x385] sm:$0xff]
    %v542 = vld [vmem:[#allocation2 + $0x38d] sm:$0xff]
    %v543 = vld [vmem:[#allocation2 + $0x3a5] sm:$0xff]
    %v544 = vld [vmem:[#allocation2 + $0x3ad] sm:$0xff]
    %v545 = vld [vmem:[#allocation2 + $0x3c5] sm:$0xff]
    %v546 = vld [vmem:[#allocation2 + $0x3cd] sm:$0xff]
    %v547 = vld [vmem:[#allocation2 + $0x3e5] sm:$0xff]
    %v548 = vld [vmem:[#allocation2 + $0x3ed] sm:$0xff]
    %v549 = vld [vmem:[#allocation2 + $0x405] sm:$0xff]
    %v550 = vld [vmem:[#allocation2 + $0x40d] sm:$0xff]
    %v551 = vld [vmem:[#allocation2 + $0x425] sm:$0xff]
    %v552 = vld [vmem:[#allocation2 + $0x42d] sm:$0xff]
    %v553 = vld [vmem:[#allocation2 + $0x445] sm:$0xff]
    %v554 = vld [vmem:[#allocation2 + $0x44d] sm:$0xff]
    %v555 = vld [vmem:[#allocation2 + $0x465] sm:$0xff]
    %v556 = vld [vmem:[#allocation2 + $0x46d] sm:$0xff]
    %v557 = vld [vmem:[#allocation6 + $0x2] sm:$0x1]
    %v558 = vperm.slane %v557, 0
    %v559 = vmul.f32 %v493, %v558
    %v560 = vmul.f32 %v494, %v558
    %v561 = vmul.f32 %v495, %v558
    %v562 = vmul.f32 %v496, %v558
    %v563 = vmul.f32 %v497, %v558
    %v564 = vmul.f32 %v498, %v558
    %v565 = vmul.f32 %v499, %v558
    %v566 = vmul.f32 %v500, %v558
    %v567 = vmul.f32 %v501, %v558
    %v568 = vmul.f32 %v502, %v558
    %v569 = vmul.f32 %v503, %v558
    %v570 = vmul.f32 %v504, %v558
    %v571 = vmul.f32 %v505, %v558
    %v572 = vmul.f32 %v506, %v558
    %v573 = vmul.f32 %v507, %v558
    %v574 = vmul.f32 %v508, %v558
    %v575 = vmul.f32 %v509, %v558
    %v576 = vmul.f32 %v510, %v558
    %v577 = vmul.f32 %v511, %v558
    %v578 = vmul.f32 %v512, %v558
    %v579 = vmul.f32 %v513, %v558
    %v580 = vmul.f32 %v514, %v558
    %v581 = vmul.f32 %v515, %v558
    %v582 = vmul.f32 %v516, %v558
    %v583 = vmul.f32 %v517, %v558
    %v584 = vmul.f32 %v518, %v558
    %v585 = vmul.f32 %v519, %v558
    %v586 = vmul.f32 %v520, %v558
    %v587 = vmul.f32 %v521, %v558
    %v588 = vmul.f32 %v522, %v558
    %v589 = vmul.f32 %v523, %v558
    %v590 = vmul.f32 %v524, %v558
    %v591 = vmul.f32 %v525, %v558
    %v592 = vmul.f32 %v526, %v558
    %v593 = vmul.f32 %v527, %v558
    %v594 = vmul.f32 %v528, %v558
    %v595 = vmul.f32 %v529, %v558
    %v596 = vmul.f32 %v530, %v558
    %v597 = vmul.f32 %v531, %v558
    %v598 = vmul.f32 %v532, %v558
    %v599 = vmul.f32 %v533, %v558
    %v600 = vmul.f32 %v534, %v558
    %v601 = vmul.f32 %v535, %v558
    %v602 = vmul.f32 %v536, %v558
    %v603 = vmul.f32 %v537, %v558
    %v604 = vmul.f32 %v538, %v558
    %v605 = vmul.f32 %v539, %v558
    %v606 = vmul.f32 %v540, %v558
    %v607 = vmul.f32 %v541, %v558
    %v608 = vmul.f32 %v542, %v558
    %v609 = vmul.f32 %v543, %v558
    %v610 = vmul.f32 %v544, %v558
    %v611 = vmul.f32 %v545, %v558
    %v612 = vmul.f32 %v546, %v558
    %v613 = vmul.f32 %v547, %v558
    %v614 = vmul.f32 %v548, %v558
    %v615 = vmul.f32 %v549, %v558
    %v616 = vmul.f32 %v550, %v558
    %v617 = vmul.f32 %v551, %v558
    %v618 = vmul.f32 %v552, %v558
    %v619 = vmul.f32 %v553, %v558
    %v620 = vmul.f32 %v554, %v558
    %v621 = vmul.f32 %v555, %v558
    %v622 = vmul.f32 %v556, %v558
    %v623 = vld [vmem:[#allocation2 + $0x8] sm:$0xff]
    %v624 = vld [vmem:[#allocation2 + $0x10] sm:$0xff]
    %v625 = vld [vmem:[#allocation2 + $0x28] sm:$0xff]
    %v626 = vld [vmem:[#allocation2 + $0x30] sm:$0xff]
    %v627 = vld [vmem:[#allocation2 + $0x48] sm:$0xff]
    %v628 = vld [vmem:[#allocation2 + $0x50] sm:$0xff]
    %v629 = vld [vmem:[#allocation2 + $0x68] sm:$0xff]
    %v630 = vld [vmem:[#allocation2 + $0x70] sm:$0xff]
    %v631 = vld [vmem:[#allocation2 + $0x88] sm:$0xff]
    %v632 = vld [vmem:[#allocation2 + $0x90] sm:$0xff]
    %v633 = vld [vmem:[#allocation2 + $0xa8] sm:$0xff]
    %v634 = vld [vmem:[#allocation2 + $0xb0] sm:$0xff]
    %v635 = vld [vmem:[#allocation2 + $0xc8] sm:$0xff]
    %v636 = vld [vmem:[#allocation2 + $0xd0] sm:$0xff]
    %v637 = vld [vmem:[#allocation2 + $0xe8] sm:$0xff]
    %v638 = vld [vmem:[#allocation2 + $0xf0] sm:$0xff]
    %v639 = vld [vmem:[#allocation2 + $0x108] sm:$0xff]
    %v640 = vld [vmem:[#allocation2 + $0x110] sm:$0xff]
    %v641 = vld [vmem:[#allocation2 + $0x128] sm:$0xff]
    %v642 = vld [vmem:[#allocation2 + $0x130] sm:$0xff]
    %v643 = vld [vmem:[#allocation2 + $0x148] sm:$0xff]
    %v644 = vld [vmem:[#allocation2 + $0x150] sm:$0xff]
    %v645 = vld [vmem:[#allocation2 + $0x168] sm:$0xff]
    %v646 = vld [vmem:[#allocation2 + $0x170] sm:$0xff]
    %v647 = vld [vmem:[#allocation2 + $0x188] sm:$0xff]
    %v648 = vld [vmem:[#allocation2 + $0x190] sm:$0xff]
    %v649 = vld [vmem:[#allocation2 + $0x1a8] sm:$0xff]
    %v650 = vld [vmem:[#allocation2 + $0x1b0] sm:$0xff]
    %v651 = vld [vmem:[#allocation2 + $0x1c8] sm:$0xff]
    %v652 = vld [vmem:[#allocation2 + $0x1d0] sm:$0xff]
    %v653 = vld [vmem:[#allocation2 + $0x1e8] sm:$0xff]
    %v654 = vld [vmem:[#allocation2 + $0x1f0] sm:$0xff]
    %v655 = vld [vmem:[#allocation2 + $0x288] sm:$0xff]
    %v656 = vld [vmem:[#allocation2 + $0x290] sm:$0xff]
    %v657 = vld [vmem:[#allocation2 + $0x2a8] sm:$0xff]
    %v658 = vld [vmem:[#allocation2 + $0x2b0] sm:$0xff]
    %v659 = vld [vmem:[#allocation2 + $0x2c8] sm:$0xff]
    %v660 = vld [vmem:[#allocation2 + $0x2d0] sm:$0xff]
    %v661 = vld [vmem:[#allocation2 + $0x2e8] sm:$0xff]
    %v662 = vld [vmem:[#allocation2 + $0x2f0] sm:$0xff]
    %v663 = vld [vmem:[#allocation2 + $0x308] sm:$0xff]
    %v664 = vld [vmem:[#allocation2 + $0x310] sm:$0xff]
    %v665 = vld [vmem:[#allocation2 + $0x328] sm:$0xff]
    %v666 = vld [vmem:[#allocation2 + $0x330] sm:$0xff]
    %v667 = vld [vmem:[#allocation2 + $0x348] sm:$0xff]
    %v668 = vld [vmem:[#allocation2 + $0x350] sm:$0xff]
    %v669 = vld [vmem:[#allocation2 + $0x368] sm:$0xff]
    %v670 = vld [vmem:[#allocation2 + $0x370] sm:$0xff]
    %v671 = vld [vmem:[#allocation2 + $0x388] sm:$0xff]
    %v672 = vld [vmem:[#allocation2 + $0x390] sm:$0xff]
    %v673 = vld [vmem:[#allocation2 + $0x3a8] sm:$0xff]
    %v674 = vld [vmem:[#allocation2 + $0x3b0] sm:$0xff]
    %v675 = vld [vmem:[#allocation2 + $0x3c8] sm:$0xff]
    %v676 = vld [vmem:[#allocation2 + $0x3d0] sm:$0xff]
    %v677 = vld [vmem:[#allocation2 + $0x3e8] sm:$0xff]
    %v678 = vld [vmem:[#allocation2 + $0x3f0] sm:$0xff]
    %v679 = vld [vmem:[#allocation2 + $0x408] sm:$0xff]
    %v680 = vld [vmem:[#allocation2 + $0x410] sm:$0xff]
    %v681 = vld [vmem:[#allocation2 + $0x428] sm:$0xff]
    %v682 = vld [vmem:[#allocation2 + $0x430] sm:$0xff]
    %v683 = vld [vmem:[#allocation2 + $0x448] sm:$0xff]
    %v684 = vld [vmem:[#allocation2 + $0x450] sm:$0xff]
    %v685 = vld [vmem:[#allocation2 + $0x468] sm:$0xff]
    %v686 = vld [vmem:[#allocation2 + $0x470] sm:$0xff]
    %v687 = vld [vmem:[#allocation6 + $0x3] sm:$0x1]
    %v688 = vperm.slane %v687, 0
    %v689 = vmul.f32 %v623, %v688
    %v690 = vmul.f32 %v624, %v688
    %v691 = vmul.f32 %v625, %v688
    %v692 = vmul.f32 %v626, %v688
    %v693 = vmul.f32 %v627, %v688
    %v694 = vmul.f32 %v628, %v688
    %v695 = vmul.f32 %v629, %v688
    %v696 = vmul.f32 %v630, %v688
    %v697 = vmul.f32 %v631, %v688
    %v698 = vmul.f32 %v632, %v688
    %v699 = vmul.f32 %v633, %v688
    %v700 = vmul.f32 %v634, %v688
    %v701 = vmul.f32 %v635, %v688
    %v702 = vmul.f32 %v636, %v688
    %v703 = vmul.f32 %v637, %v688
    %v704 = vmul.f32 %v638, %v688
    %v705 = vmul.f32 %v639, %v688
    %v706 = vmul.f32 %v640, %v688
    %v707 = vmul.f32 %v641, %v688
    %v708 = vmul.f32 %v642, %v688
    %v709 = vmul.f32 %v643, %v688
    %v710 = vmul.f32 %v644, %v688
    %v711 = vmul.f32 %v645, %v688
    %v712 = vmul.f32 %v646, %v688
    %v713 = vmul.f32 %v647, %v688
    %v714 = vmul.f32 %v648, %v688
    %v715 = vmul.f32 %v649, %v688
    %v716 = vmul.f32 %v650, %v688
    %v717 = vmul.f32 %v651, %v688
    %v718 = vmul.f32 %v652, %v688
    %v719 = vmul.f32 %v653, %v688
    %v720 = vmul.f32 %v654, %v688
    %v721 = vmul.f32 %v655, %v688
    %v722 = vmul.f32 %v656, %v688
    %v723 = vmul.f32 %v657, %v688
    %v724 = vmul.f32 %v658, %v688
    %v725 = vmul.f32 %v659, %v688
    %v726 = vmul.f32 %v660, %v688
    %v727 = vmul.f32 %v661, %v688
    %v728 = vmul.f32 %v662, %v688
    %v729 = vmul.f32 %v663, %v688
    %v730 = vmul.f32 %v664, %v688
    %v731 = vmul.f32 %v665, %v688
    %v732 = vmul.f32 %v666, %v688
    %v733 = vmul.f32 %v667, %v688
    %v734 = vmul.f32 %v668, %v688
    %v735 = vmul.f32 %v669, %v688
    %v736 = vmul.f32 %v670, %v688
    %v737 = vmul.f32 %v671, %v688
    %v738 = vmul.f32 %v672, %v688
    %v739 = vmul.f32 %v673, %v688
    %v740 = vmul.f32 %v674, %v688
    %v741 = vmul.f32 %v675, %v688
    %v742 = vmul.f32 %v676, %v688
    %v743 = vmul.f32 %v677, %v688
    %v744 = vmul.f32 %v678, %v688
    %v745 = vmul.f32 %v679, %v688
    %v746 = vmul.f32 %v680, %v688
    %v747 = vmul.f32 %v681, %v688
    %v748 = vmul.f32 %v682, %v688
    %v749 = vmul.f32 %v683, %v688
    %v750 = vmul.f32 %v684, %v688
    %v751 = vmul.f32 %v685, %v688
    %v752 = vmul.f32 %v686, %v688
    %v753 = vadd.f32 %v559, %v689
    %v754 = vadd.f32 %v560, %v690
    %v755 = vadd.f32 %v561, %v691
    %v756 = vadd.f32 %v562, %v692
    %v757 = vadd.f32 %v563, %v693
    %v758 = vadd.f32 %v564, %v694
    %v759 = vadd.f32 %v565, %v695
    %v760 = vadd.f32 %v566, %v696
    %v761 = vadd.f32 %v567, %v697
    %v762 = vadd.f32 %v568, %v698
    %v763 = vadd.f32 %v569, %v699
    %v764 = vadd.f32 %v570, %v700
    %v765 = vadd.f32 %v571, %v701
    %v766 = vadd.f32 %v572, %v702
    %v767 = vadd.f32 %v573, %v703
    %v768 = vadd.f32 %v574, %v704
    %v769 = vadd.f32 %v575, %v705
    %v770 = vadd.f32 %v576, %v706
    %v771 = vadd.f32 %v577, %v707
    %v772 = vadd.f32 %v578, %v708
    %v773 = vadd.f32 %v579, %v709
    %v774 = vadd.f32 %v580, %v710
    %v775 = vadd.f32 %v581, %v711
    %v776 = vadd.f32 %v582, %v712
    %v777 = vadd.f32 %v583, %v713
    %v778 = vadd.f32 %v584, %v714
    %v779 = vadd.f32 %v585, %v715
    %v780 = vadd.f32 %v586, %v716
    %v781 = vadd.f32 %v587, %v717
    %v782 = vadd.f32 %v588, %v718
    %v783 = vadd.f32 %v589, %v719
    %v784 = vadd.f32 %v590, %v720
    %v785 = vadd.f32 %v591, %v721
    %v786 = vadd.f32 %v592, %v722
    %v787 = vadd.f32 %v593, %v723
    %v788 = vadd.f32 %v594, %v724
    %v789 = vadd.f32 %v595, %v725
    %v790 = vadd.f32 %v596, %v726
    %v791 = vadd.f32 %v597, %v727
    %v792 = vadd.f32 %v598, %v728
    %v793 = vadd.f32 %v599, %v729
    %v794 = vadd.f32 %v600, %v730
    %v795 = vadd.f32 %v601, %v731
    %v796 = vadd.f32 %v602, %v732
    %v797 = vadd.f32 %v603, %v733
    %v798 = vadd.f32 %v604, %v734
    %v799 = vadd.f32 %v605, %v735
    %v800 = vadd.f32 %v606, %v736
    %v801 = vadd.f32 %v607, %v737
    %v802 = vadd.f32 %v608, %v738
    %v803 = vadd.f32 %v609, %v739
    %v804 = vadd.f32 %v610, %v740
    %v805 = vadd.f32 %v611, %v741
    %v806 = vadd.f32 %v612, %v742
    %v807 = vadd.f32 %v613, %v743
    %v808 = vadd.f32 %v614, %v744
    %v809 = vadd.f32 %v615, %v745
    %v810 = vadd.f32 %v616, %v746
    %v811 = vadd.f32 %v617, %v747
    %v812 = vadd.f32 %v618, %v748
    %v813 = vadd.f32 %v619, %v749
    %v814 = vadd.f32 %v620, %v750
    %v815 = vadd.f32 %v621, %v751
    %v816 = vadd.f32 %v622, %v752
    %v817 = vld [vmem:[#allocation2 + $0xb] sm:$0xff]
    %v818 = vld [vmem:[#allocation2 + $0x13] sm:$0xff]
    %v819 = vld [vmem:[#allocation2 + $0x2b] sm:$0xff]
    %v820 = vld [vmem:[#allocation2 + $0x33] sm:$0xff]
    %v821 = vld [vmem:[#allocation2 + $0x4b] sm:$0xff]
    %v822 = vld [vmem:[#allocation2 + $0x53] sm:$0xff]
    %v823 = vld [vmem:[#allocation2 + $0x6b] sm:$0xff]
    %v824 = vld [vmem:[#allocation2 + $0x73] sm:$0xff]
    %v825 = vld [vmem:[#allocation2 + $0x8b] sm:$0xff]
    %v826 = vld [vmem:[#allocation2 + $0x93] sm:$0xff]
    %v827 = vld [vmem:[#allocation2 + $0xab] sm:$0xff]
    %v828 = vld [vmem:[#allocation2 + $0xb3] sm:$0xff]
    %v829 = vld [vmem:[#allocation2 + $0xcb] sm:$0xff]
    %v830 = vld [vmem:[#allocation2 + $0xd3] sm:$0xff]
    %v831 = vld [vmem:[#allocation2 + $0xeb] sm:$0xff]
    %v832 = vld [vmem:[#allocation2 + $0xf3] sm:$0xff]
    %v833 = vld [vmem:[#allocation2 + $0x10b] sm:$0xff]
    %v834 = vld [vmem:[#allocation2 + $0x113] sm:$0xff]
    %v835 = vld [vmem:[#allocation2 + $0x12b] sm:$0xff]
    %v836 = vld [vmem:[#allocation2 + $0x133] sm:$0xff]
    %v837 = vld [vmem:[#allocation2 + $0x14b] sm:$0xff]
    %v838 = vld [vmem:[#allocation2 + $0x153] sm:$0xff]
    %v839 = vld [vmem:[#allocation2 + $0x16b] sm:$0xff]
    %v840 = vld [vmem:[#allocation2 + $0x173] sm:$0xff]
    %v841 = vld [vmem:[#allocation2 + $0x18b] sm:$0xff]
    %v842 = vld [vmem:[#allocation2 + $0x193] sm:$0xff]
    %v843 = vld [vmem:[#allocation2 + $0x1ab] sm:$0xff]
    %v844 = vld [vmem:[#allocation2 + $0x1b3] sm:$0xff]
    %v845 = vld [vmem:[#allocation2 + $0x1cb] sm:$0xff]
    %v846 = vld [vmem:[#allocation2 + $0x1d3] sm:$0xff]
    %v847 = vld [vmem:[#allocation2 + $0x1eb] sm:$0xff]
    %v848 = vld [vmem:[#allocation2 + $0x1f3] sm:$0xff]
    %v849 = vld [vmem:[#allocation2 + $0x28b] sm:$0xff]
    %v850 = vld [vmem:[#allocation2 + $0x293] sm:$0xff]
    %v851 = vld [vmem:[#allocation2 + $0x2ab] sm:$0xff]
    %v852 = vld [vmem:[#allocation2 + $0x2b3] sm:$0xff]
    %v853 = vld [vmem:[#allocation2 + $0x2cb] sm:$0xff]
    %v854 = vld [vmem:[#allocation2 + $0x2d3] sm:$0xff]
    %v855 = vld [vmem:[#allocation2 + $0x2eb] sm:$0xff]
    %v856 = vld [vmem:[#allocation2 + $0x2f3] sm:$0xff]
    %v857 = vld [vmem:[#allocation2 + $0x30b] sm:$0xff]
    %v858 = vld [vmem:[#allocation2 + $0x313] sm:$0xff]
    %v859 = vld [vmem:[#allocation2 + $0x32b] sm:$0xff]
    %v860 = vld [vmem:[#allocation2 + $0x333] sm:$0xff]
    %v861 = vld [vmem:[#allocation2 + $0x34b] sm:$0xff]
    %v862 = vld [vmem:[#allocation2 + $0x353] sm:$0xff]
    %v863 = vld [vmem:[#allocation2 + $0x36b] sm:$0xff]
    %v864 = vld [vmem:[#allocation2 + $0x373] sm:$0xff]
    %v865 = vld [vmem:[#allocation2 + $0x38b] sm:$0xff]
    %v866 = vld [vmem:[#allocation2 + $0x393] sm:$0xff]
    %v867 = vld [vmem:[#allocation2 + $0x3ab] sm:$0xff]
    %v868 = vld [vmem:[#allocation2 + $0x3b3] sm:$0xff]
    %v869 = vld [vmem:[#allocation2 + $0x3cb] sm:$0xff]
    %v870 = vld [vmem:[#allocation2 + $0x3d3] sm:$0xff]
    %v871 = vld [vmem:[#allocation2 + $0x3eb] sm:$0xff]
    %v872 = vld [vmem:[#allocation2 + $0x3f3] sm:$0xff]
    %v873 = vld [vmem:[#allocation2 + $0x40b] sm:$0xff]
    %v874 = vld [vmem:[#allocation2 + $0x413] sm:$0xff]
    %v875 = vld [vmem:[#allocation2 + $0x42b] sm:$0xff]
    %v876 = vld [vmem:[#allocation2 + $0x433] sm:$0xff]
    %v877 = vld [vmem:[#allocation2 + $0x44b] sm:$0xff]
    %v878 = vld [vmem:[#allocation2 + $0x453] sm:$0xff]
    %v879 = vld [vmem:[#allocation2 + $0x46b] sm:$0xff]
    %v880 = vld [vmem:[#allocation2 + $0x473] sm:$0xff]
    %v881 = vld [vmem:[#allocation6 + $0x4] sm:$0x1]
    %v882 = vperm.slane %v881, 0
    %v883 = vmul.f32 %v817, %v882
    %v884 = vmul.f32 %v818, %v882
    %v885 = vmul.f32 %v819, %v882
    %v886 = vmul.f32 %v820, %v882
    %v887 = vmul.f32 %v821, %v882
    %v888 = vmul.f32 %v822, %v882
    %v889 = vmul.f32 %v823, %v882
    %v890 = vmul.f32 %v824, %v882
    %v891 = vmul.f32 %v825, %v882
    %v892 = vmul.f32 %v826, %v882
    %v893 = vmul.f32 %v827, %v882
    %v894 = vmul.f32 %v828, %v882
    %v895 = vmul.f32 %v829, %v882
    %v896 = vmul.f32 %v830, %v882
    %v897 = vmul.f32 %v831, %v882
    %v898 = vmul.f32 %v832, %v882
    %v899 = vmul.f32 %v833, %v882
    %v900 = vmul.f32 %v834, %v882
    %v901 = vmul.f32 %v835, %v882
    %v902 = vmul.f32 %v836, %v882
    %v903 = vmul.f32 %v837, %v882
    %v904 = vmul.f32 %v838, %v882
    %v905 = vmul.f32 %v839, %v882
    %v906 = vmul.f32 %v840, %v882
    %v907 = vmul.f32 %v841, %v882
    %v908 = vmul.f32 %v842, %v882
    %v909 = vmul.f32 %v843, %v882
    %v910 = vmul.f32 %v844, %v882
    %v911 = vmul.f32 %v845, %v882
    %v912 = vmul.f32 %v846, %v882
    %v913 = vmul.f32 %v847, %v882
    %v914 = vmul.f32 %v848, %v882
    %v915 = vmul.f32 %v849, %v882
    %v916 = vmul.f32 %v850, %v882
    %v917 = vmul.f32 %v851, %v882
    %v918 = vmul.f32 %v852, %v882
    %v919 = vmul.f32 %v853, %v882
    %v920 = vmul.f32 %v854, %v882
    %v921 = vmul.f32 %v855, %v882
    %v922 = vmul.f32 %v856, %v882
    %v923 = vmul.f32 %v857, %v882
    %v924 = vmul.f32 %v858, %v882
    %v925 = vmul.f32 %v859, %v882
    %v926 = vmul.f32 %v860, %v882
    %v927 = vmul.f32 %v861, %v882
    %v928 = vmul.f32 %v862, %v882
    %v929 = vmul.f32 %v863, %v882
    %v930 = vmul.f32 %v864, %v882
    %v931 = vmul.f32 %v865, %v882
    %v932 = vmul.f32 %v866, %v882
    %v933 = vmul.f32 %v867, %v882
    %v934 = vmul.f32 %v868, %v882
    %v935 = vmul.f32 %v869, %v882
    %v936 = vmul.f32 %v870, %v882
    %v937 = vmul.f32 %v871, %v882
    %v938 = vmul.f32 %v872, %v882
    %v939 = vmul.f32 %v873, %v882
    %v940 = vmul.f32 %v874, %v882
    %v941 = vmul.f32 %v875, %v882
    %v942 = vmul.f32 %v876, %v882
    %v943 = vmul.f32 %v877, %v882
    %v944 = vmul.f32 %v878, %v882
    %v945 = vmul.f32 %v879, %v882
    %v946 = vmul.f32 %v880, %v882
    %v947 = vadd.f32 %v753, %v883
    %v948 = vadd.f32 %v754, %v884
    %v949 = vadd.f32 %v755, %v885
    %v950 = vadd.f32 %v756, %v886
    %v951 = vadd.f32 %v757, %v887
    %v952 = vadd.f32 %v758, %v888
    %v953 = vadd.f32 %v759, %v889
    %v954 = vadd.f32 %v760, %v890
    %v955 = vadd.f32 %v761, %v891
    %v956 = vadd.f32 %v762, %v892
    %v957 = vadd.f32 %v763, %v893
    %v958 = vadd.f32 %v764, %v894
    %v959 = vadd.f32 %v765, %v895
    %v960 = vadd.f32 %v766, %v896
    %v961 = vadd.f32 %v767, %v897
    %v962 = vadd.f32 %v768, %v898
    %v963 = vadd.f32 %v769, %v899
    %v964 = vadd.f32 %v770, %v900
    %v965 = vadd.f32 %v771, %v901
    %v966 = vadd.f32 %v772, %v902
    %v967 = vadd.f32 %v773, %v903
    %v968 = vadd.f32 %v774, %v904
    %v969 = vadd.f32 %v775, %v905
    %v970 = vadd.f32 %v776, %v906
    %v971 = vadd.f32 %v777, %v907
    %v972 = vadd.f32 %v778, %v908
    %v973 = vadd.f32 %v779, %v909
    %v974 = vadd.f32 %v780, %v910
    %v975 = vadd.f32 %v781, %v911
    %v976 = vadd.f32 %v782, %v912
    %v977 = vadd.f32 %v783, %v913
    %v978 = vadd.f32 %v784, %v914
    %v979 = vadd.f32 %v785, %v915
    %v980 = vadd.f32 %v786, %v916
    %v981 = vadd.f32 %v787, %v917
    %v982 = vadd.f32 %v788, %v918
    %v983 = vadd.f32 %v789, %v919
    %v984 = vadd.f32 %v790, %v920
    %v985 = vadd.f32 %v791, %v921
    %v986 = vadd.f32 %v792, %v922
    %v987 = vadd.f32 %v793, %v923
    %v988 = vadd.f32 %v794, %v924
    %v989 = vadd.f32 %v795, %v925
    %v990 = vadd.f32 %v796, %v926
    %v991 = vadd.f32 %v797, %v927
    %v992 = vadd.f32 %v798, %v928
    %v993 = vadd.f32 %v799, %v929
    %v994 = vadd.f32 %v800, %v930
    %v995 = vadd.f32 %v801, %v931
    %v996 = vadd.f32 %v802, %v932
    %v997 = vadd.f32 %v803, %v933
    %v998 = vadd.f32 %v804, %v934
    %v999 = vadd.f32 %v805, %v935
    %v1000 = vadd.f32 %v806, %v936
    %v1001 = vadd.f32 %v807, %v937
    %v1002 = vadd.f32 %v808, %v938
    %v1003 = vadd.f32 %v809, %v939
    %v1004 = vadd.f32 %v810, %v940
    %v1005 = vadd.f32 %v811, %v941
    %v1006 = vadd.f32 %v812, %v942
    %v1007 = vadd.f32 %v813, %v943
    %v1008 = vadd.f32 %v814, %v944
    %v1009 = vadd.f32 %v815, %v945
    %v1010 = vadd.f32 %v816, %v946
    %v1011 = vld [vmem:[%s364 + $0x5] sm:$0xff]
    %v1012 = vld [vmem:[%s364 + $0xd] sm:$0xff]
    %v1013 = vld [vmem:[%s364 + $0x25] sm:$0xff]
    %v1014 = vld [vmem:[%s364 + $0x2d] sm:$0xff]
    %v1015 = vld [vmem:[%s364 + $0x45] sm:$0xff]
    %v1016 = vld [vmem:[%s364 + $0x4d] sm:$0xff]
    %v1017 = vld [vmem:[%s364 + $0x65] sm:$0xff]
    %v1018 = vld [vmem:[%s364 + $0x6d] sm:$0xff]
    %v1019 = vld [vmem:[%s364 + $0x85] sm:$0xff]
    %v1020 = vld [vmem:[%s364 + $0x8d] sm:$0xff]
    %v1021 = vld [vmem:[%s364 + $0xa5] sm:$0xff]
    %v1022 = vld [vmem:[%s364 + $0xad] sm:$0xff]
    %v1023 = vld [vmem:[%s364 + $0xc5] sm:$0xff]
    %v1024 = vld [vmem:[%s364 + $0xcd] sm:$0xff]
    %v1025 = vld [vmem:[%s364 + $0xe5] sm:$0xff]
    %v1026 = vld [vmem:[%s364 + $0xed] sm:$0xff]
    %v1027 = vld [vmem:[%s364 + $0x105] sm:$0xff]
    %v1028 = vld [vmem:[%s364 + $0x10d] sm:$0xff]
    %v1029 = vld [vmem:[%s364 + $0x125] sm:$0xff]
    %v1030 = vld [vmem:[%s364 + $0x12d] sm:$0xff]
    %v1031 = vld [vmem:[%s364 + $0x145] sm:$0xff]
    %v1032 = vld [vmem:[%s364 + $0x14d] sm:$0xff]
    %v1033 = vld [vmem:[%s364 + $0x165] sm:$0xff]
    %v1034 = vld [vmem:[%s364 + $0x16d] sm:$0xff]
    %v1035 = vld [vmem:[%s364 + $0x185] sm:$0xff]
    %v1036 = vld [vmem:[%s364 + $0x18d] sm:$0xff]
    %v1037 = vld [vmem:[%s364 + $0x1a5] sm:$0xff]
    %v1038 = vld [vmem:[%s364 + $0x1ad] sm:$0xff]
    %v1039 = vld [vmem:[%s364 + $0x1c5] sm:$0xff]
    %v1040 = vld [vmem:[%s364 + $0x1cd] sm:$0xff]
    %v1041 = vld [vmem:[%s364 + $0x1e5] sm:$0xff]
    %v1042 = vld [vmem:[%s364 + $0x1ed] sm:$0xff]
    %v1043 = vld [vmem:[%s364 + $0x285] sm:$0xff]
    %v1044 = vld [vmem:[%s364 + $0x28d] sm:$0xff]
    %v1045 = vld [vmem:[%s364 + $0x2a5] sm:$0xff]
    %v1046 = vld [vmem:[%s364 + $0x2ad] sm:$0xff]
    %v1047 = vld [vmem:[%s364 + $0x2c5] sm:$0xff]
    %v1048 = vld [vmem:[%s364 + $0x2cd] sm:$0xff]
    %v1049 = vld [vmem:[%s364 + $0x2e5] sm:$0xff]
    %v1050 = vld [vmem:[%s364 + $0x2ed] sm:$0xff]
    %v1051 = vld [vmem:[%s364 + $0x305] sm:$0xff]
    %v1052 = vld [vmem:[%s364 + $0x30d] sm:$0xff]
    %v1053 = vld [vmem:[%s364 + $0x325] sm:$0xff]
    %v1054 = vld [vmem:[%s364 + $0x32d] sm:$0xff]
    %v1055 = vld [vmem:[%s364 + $0x345] sm:$0xff]
    %v1056 = vld [vmem:[%s364 + $0x34d] sm:$0xff]
    %v1057 = vld [vmem:[%s364 + $0x365] sm:$0xff]
    %v1058 = vld [vmem:[%s364 + $0x36d] sm:$0xff]
    %v1059 = vld [vmem:[%s364 + $0x385] sm:$0xff]
    %v1060 = vld [vmem:[%s364 + $0x38d] sm:$0xff]
    %v1061 = vld [vmem:[%s364 + $0x3a5] sm:$0xff]
    %v1062 = vld [vmem:[%s364 + $0x3ad] sm:$0xff]
    %v1063 = vld [vmem:[%s364 + $0x3c5] sm:$0xff]
    %v1064 = vld [vmem:[%s364 + $0x3cd] sm:$0xff]
    %v1065 = vld [vmem:[%s364 + $0x3e5] sm:$0xff]
    %v1066 = vld [vmem:[%s364 + $0x3ed] sm:$0xff]
    %v1067 = vld [vmem:[%s364 + $0x405] sm:$0xff]
    %v1068 = vld [vmem:[%s364 + $0x40d] sm:$0xff]
    %v1069 = vld [vmem:[%s364 + $0x425] sm:$0xff]
    %v1070 = vld [vmem:[%s364 + $0x42d] sm:$0xff]
    %v1071 = vld [vmem:[%s364 + $0x445] sm:$0xff]
    %v1072 = vld [vmem:[%s364 + $0x44d] sm:$0xff]
    %v1073 = vld [vmem:[%s364 + $0x465] sm:$0xff]
    %v1074 = vld [vmem:[%s364 + $0x46d] sm:$0xff]
    %v1075 = vld [vmem:[#allocation6 + $0x5] sm:$0x1]
    %v1076 = vperm.slane %v1075, 0
    %v1077 = vmul.f32 %v1011, %v1076
    %v1078 = vmul.f32 %v1012, %v1076
    %v1079 = vmul.f32 %v1013, %v1076
    %v1080 = vmul.f32 %v1014, %v1076
    %v1081 = vmul.f32 %v1015, %v1076
    %v1082 = vmul.f32 %v1016, %v1076
    %v1083 = vmul.f32 %v1017, %v1076
    %v1084 = vmul.f32 %v1018, %v1076
    %v1085 = vmul.f32 %v1019, %v1076
    %v1086 = vmul.f32 %v1020, %v1076
    %v1087 = vmul.f32 %v1021, %v1076
    %v1088 = vmul.f32 %v1022, %v1076
    %v1089 = vmul.f32 %v1023, %v1076
    %v1090 = vmul.f32 %v1024, %v1076
    %v1091 = vmul.f32 %v1025, %v1076
    %v1092 = vmul.f32 %v1026, %v1076
    %v1093 = vmul.f32 %v1027, %v1076
    %v1094 = vmul.f32 %v1028, %v1076
    %v1095 = vmul.f32 %v1029, %v1076
    %v1096 = vmul.f32 %v1030, %v1076
    %v1097 = vmul.f32 %v1031, %v1076
    %v1098 = vmul.f32 %v1032, %v1076
    %v1099 = vmul.f32 %v1033, %v1076
    %v1100 = vmul.f32 %v1034, %v1076
    %v1101 = vmul.f32 %v1035, %v1076
    %v1102 = vmul.f32 %v1036, %v1076
    %v1103 = vmul.f32 %v1037, %v1076
    %v1104 = vmul.f32 %v1038, %v1076
    %v1105 = vmul.f32 %v1039, %v1076
    %v1106 = vmul.f32 %v1040, %v1076
    %v1107 = vmul.f32 %v1041, %v1076
    %v1108 = vmul.f32 %v1042, %v1076
    %v1109 = vmul.f32 %v1043, %v1076
    %v1110 = vmul.f32 %v1044, %v1076
    %v1111 = vmul.f32 %v1045, %v1076
    %v1112 = vmul.f32 %v1046, %v1076
    %v1113 = vmul.f32 %v1047, %v1076
    %v1114 = vmul.f32 %v1048, %v1076
    %v1115 = vmul.f32 %v1049, %v1076
    %v1116 = vmul.f32 %v1050, %v1076
    %v1117 = vmul.f32 %v1051, %v1076
    %v1118 = vmul.f32 %v1052, %v1076
    %v1119 = vmul.f32 %v1053, %v1076
    %v1120 = vmul.f32 %v1054, %v1076
    %v1121 = vmul.f32 %v1055, %v1076
    %v1122 = vmul.f32 %v1056, %v1076
    %v1123 = vmul.f32 %v1057, %v1076
    %v1124 = vmul.f32 %v1058, %v1076
    %v1125 = vmul.f32 %v1059, %v1076
    %v1126 = vmul.f32 %v1060, %v1076
    %v1127 = vmul.f32 %v1061, %v1076
    %v1128 = vmul.f32 %v1062, %v1076
    %v1129 = vmul.f32 %v1063, %v1076
    %v1130 = vmul.f32 %v1064, %v1076
    %v1131 = vmul.f32 %v1065, %v1076
    %v1132 = vmul.f32 %v1066, %v1076
    %v1133 = vmul.f32 %v1067, %v1076
    %v1134 = vmul.f32 %v1068, %v1076
    %v1135 = vmul.f32 %v1069, %v1076
    %v1136 = vmul.f32 %v1070, %v1076
    %v1137 = vmul.f32 %v1071, %v1076
    %v1138 = vmul.f32 %v1072, %v1076
    %v1139 = vmul.f32 %v1073, %v1076
    %v1140 = vmul.f32 %v1074, %v1076
    %v1141 = vadd.f32 %v947, %v1077
    %v1142 = vadd.f32 %v948, %v1078
    %v1143 = vadd.f32 %v949, %v1079
    %v1144 = vadd.f32 %v950, %v1080
    %v1145 = vadd.f32 %v951, %v1081
    %v1146 = vadd.f32 %v952, %v1082
    %v1147 = vadd.f32 %v953, %v1083
    %v1148 = vadd.f32 %v954, %v1084
    %v1149 = vadd.f32 %v955, %v1085
    %v1150 = vadd.f32 %v956, %v1086
    %v1151 = vadd.f32 %v957, %v1087
    %v1152 = vadd.f32 %v958, %v1088
    %v1153 = vadd.f32 %v959, %v1089
    %v1154 = vadd.f32 %v960, %v1090
    %v1155 = vadd.f32 %v961, %v1091
    %v1156 = vadd.f32 %v962, %v1092
    %v1157 = vadd.f32 %v963, %v1093
    %v1158 = vadd.f32 %v964, %v1094
    %v1159 = vadd.f32 %v965, %v1095
    %v1160 = vadd.f32 %v966, %v1096
    %v1161 = vadd.f32 %v967, %v1097
    %v1162 = vadd.f32 %v968, %v1098
    %v1163 = vadd.f32 %v969, %v1099
    %v1164 = vadd.f32 %v970, %v1100
    %v1165 = vadd.f32 %v971, %v1101
    %v1166 = vadd.f32 %v972, %v1102
    %v1167 = vadd.f32 %v973, %v1103
    %v1168 = vadd.f32 %v974, %v1104
    %v1169 = vadd.f32 %v975, %v1105
    %v1170 = vadd.f32 %v976, %v1106
    %v1171 = vadd.f32 %v977, %v1107
    %v1172 = vadd.f32 %v978, %v1108
    %v1173 = vadd.f32 %v979, %v1109
    %v1174 = vadd.f32 %v980, %v1110
    %v1175 = vadd.f32 %v981, %v1111
    %v1176 = vadd.f32 %v982, %v1112
    %v1177 = vadd.f32 %v983, %v1113
    %v1178 = vadd.f32 %v984, %v1114
    %v1179 = vadd.f32 %v985, %v1115
    %v1180 = vadd.f32 %v986, %v1116
    %v1181 = vadd.f32 %v987, %v1117
    %v1182 = vadd.f32 %v988, %v1118
    %v1183 = vadd.f32 %v989, %v1119
    %v1184 = vadd.f32 %v990, %v1120
    %v1185 = vadd.f32 %v991, %v1121
    %v1186 = vadd.f32 %v992, %v1122
    %v1187 = vadd.f32 %v993, %v1123
    %v1188 = vadd.f32 %v994, %v1124
    %v1189 = vadd.f32 %v995, %v1125
    %v1190 = vadd.f32 %v996, %v1126
    %v1191 = vadd.f32 %v997, %v1127
    %v1192 = vadd.f32 %v998, %v1128
    %v1193 = vadd.f32 %v999, %v1129
    %v1194 = vadd.f32 %v1000, %v1130
    %v1195 = vadd.f32 %v1001, %v1131
    %v1196 = vadd.f32 %v1002, %v1132
    %v1197 = vadd.f32 %v1003, %v1133
    %v1198 = vadd.f32 %v1004, %v1134
    %v1199 = vadd.f32 %v1005, %v1135
    %v1200 = vadd.f32 %v1006, %v1136
    %v1201 = vadd.f32 %v1007, %v1137
    %v1202 = vadd.f32 %v1008, %v1138
    %v1203 = vadd.f32 %v1009, %v1139
    %v1204 = vadd.f32 %v1010, %v1140
    %v1205 = vld [vmem:[%s364 + $0x8] sm:$0xff]
    %v1206 = vld [vmem:[%s364 + $0x10] sm:$0xff]
    %v1207 = vld [vmem:[%s364 + $0x28] sm:$0xff]
    %v1208 = vld [vmem:[%s364 + $0x30] sm:$0xff]
    %v1209 = vld [vmem:[%s364 + $0x48] sm:$0xff]
    %v1210 = vld [vmem:[%s364 + $0x50] sm:$0xff]
    %v1211 = vld [vmem:[%s364 + $0x68] sm:$0xff]
    %v1212 = vld [vmem:[%s364 + $0x70] sm:$0xff]
    %v1213 = vld [vmem:[%s364 + $0x88] sm:$0xff]
    %v1214 = vld [vmem:[%s364 + $0x90] sm:$0xff]
    %v1215 = vld [vmem:[%s364 + $0xa8] sm:$0xff]
    %v1216 = vld [vmem:[%s364 + $0xb0] sm:$0xff]
    %v1217 = vld [vmem:[%s364 + $0xc8] sm:$0xff]
    %v1218 = vld [vmem:[%s364 + $0xd0] sm:$0xff]
    %v1219 = vld [vmem:[%s364 + $0xe8] sm:$0xff]
    %v1220 = vld [vmem:[%s364 + $0xf0] sm:$0xff]
    %v1221 = vld [vmem:[%s364 + $0x108] sm:$0xff]
    %v1222 = vld [vmem:[%s364 + $0x110] sm:$0xff]
    %v1223 = vld [vmem:[%s364 + $0x128] sm:$0xff]
    %v1224 = vld [vmem:[%s364 + $0x130] sm:$0xff]
    %v1225 = vld [vmem:[%s364 + $0x148] sm:$0xff]
    %v1226 = vld [vmem:[%s364 + $0x150] sm:$0xff]
    %v1227 = vld [vmem:[%s364 + $0x168] sm:$0xff]
    %v1228 = vld [vmem:[%s364 + $0x170] sm:$0xff]
    %v1229 = vld [vmem:[%s364 + $0x188] sm:$0xff]
    %v1230 = vld [vmem:[%s364 + $0x190] sm:$0xff]
    %v1231 = vld [vmem:[%s364 + $0x1a8] sm:$0xff]
    %v1232 = vld [vmem:[%s364 + $0x1b0] sm:$0xff]
    %v1233 = vld [vmem:[%s364 + $0x1c8] sm:$0xff]
    %v1234 = vld [vmem:[%s364 + $0x1d0] sm:$0xff]
    %v1235 = vld [vmem:[%s364 + $0x1e8] sm:$0xff]
    %v1236 = vld [vmem:[%s364 + $0x1f0] sm:$0xff]
    %v1237 = vld [vmem:[%s364 + $0x288] sm:$0xff]
    %v1238 = vld [vmem:[%s364 + $0x290] sm:$0xff]
    %v1239 = vld [vmem:[%s364 + $0x2a8] sm:$0xff]
    %v1240 = vld [vmem:[%s364 + $0x2b0] sm:$0xff]
    %v1241 = vld [vmem:[%s364 + $0x2c8] sm:$0xff]
    %v1242 = vld [vmem:[%s364 + $0x2d0] sm:$0xff]
    %v1243 = vld [vmem:[%s364 + $0x2e8] sm:$0xff]
    %v1244 = vld [vmem:[%s364 + $0x2f0] sm:$0xff]
    %v1245 = vld [vmem:[%s364 + $0x308] sm:$0xff]
    %v1246 = vld [vmem:[%s364 + $0x310] sm:$0xff]
    %v1247 = vld [vmem:[%s364 + $0x328] sm:$0xff]
    %v1248 = vld [vmem:[%s364 + $0x330] sm:$0xff]
    %v1249 = vld [vmem:[%s364 + $0x348] sm:$0xff]
    %v1250 = vld [vmem:[%s364 + $0x350] sm:$0xff]
    %v1251 = vld [vmem:[%s364 + $0x368] sm:$0xff]
    %v1252 = vld [vmem:[%s364 + $0x370] sm:$0xff]
    %v1253 = vld [vmem:[%s364 + $0x388] sm:$0xff]
    %v1254 = vld [vmem:[%s364 + $0x390] sm:$0xff]
    %v1255 = vld [vmem:[%s364 + $0x3a8] sm:$0xff]
    %v1256 = vld [vmem:[%s364 + $0x3b0] sm:$0xff]
    %v1257 = vld [vmem:[%s364 + $0x3c8] sm:$0xff]
    %v1258 = vld [vmem:[%s364 + $0x3d0] sm:$0xff]
    %v1259 = vld [vmem:[%s364 + $0x3e8] sm:$0xff]
    %v1260 = vld [vmem:[%s364 + $0x3f0] sm:$0xff]
    %v1261 = vld [vmem:[%s364 + $0x408] sm:$0xff]
    %v1262 = vld [vmem:[%s364 + $0x410] sm:$0xff]
    %v1263 = vld [vmem:[%s364 + $0x428] sm:$0xff]
    %v1264 = vld [vmem:[%s364 + $0x430] sm:$0xff]
    %v1265 = vld [vmem:[%s364 + $0x448] sm:$0xff]
    %v1266 = vld [vmem:[%s364 + $0x450] sm:$0xff]
    %v1267 = vld [vmem:[%s364 + $0x468] sm:$0xff]
    %v1268 = vld [vmem:[%s364 + $0x470] sm:$0xff]
    %v1269 = vld [vmem:[#allocation6 + $0x6] sm:$0x1]
    %v1270 = vperm.slane %v1269, 0
    %v1271 = vmul.f32 %v1205, %v1270
    %v1272 = vmul.f32 %v1206, %v1270
    %v1273 = vmul.f32 %v1207, %v1270
    %v1274 = vmul.f32 %v1208, %v1270
    %v1275 = vmul.f32 %v1209, %v1270
    %v1276 = vmul.f32 %v1210, %v1270
    %v1277 = vmul.f32 %v1211, %v1270
    %v1278 = vmul.f32 %v1212, %v1270
    %v1279 = vmul.f32 %v1213, %v1270
    %v1280 = vmul.f32 %v1214, %v1270
    %v1281 = vmul.f32 %v1215, %v1270
    %v1282 = vmul.f32 %v1216, %v1270
    %v1283 = vmul.f32 %v1217, %v1270
    %v1284 = vmul.f32 %v1218, %v1270
    %v1285 = vmul.f32 %v1219, %v1270
    %v1286 = vmul.f32 %v1220, %v1270
    %v1287 = vmul.f32 %v1221, %v1270
    %v1288 = vmul.f32 %v1222, %v1270
    %v1289 = vmul.f32 %v1223, %v1270
    %v1290 = vmul.f32 %v1224, %v1270
    %v1291 = vmul.f32 %v1225, %v1270
    %v1292 = vmul.f32 %v1226, %v1270
    %v1293 = vmul.f32 %v1227, %v1270
    %v1294 = vmul.f32 %v1228, %v1270
    %v1295 = vmul.f32 %v1229, %v1270
    %v1296 = vmul.f32 %v1230, %v1270
    %v1297 = vmul.f32 %v1231, %v1270
    %v1298 = vmul.f32 %v1232, %v1270
    %v1299 = vmul.f32 %v1233, %v1270
    %v1300 = vmul.f32 %v1234, %v1270
    %v1301 = vmul.f32 %v1235, %v1270
    %v1302 = vmul.f32 %v1236, %v1270
    %v1303 = vmul.f32 %v1237, %v1270
    %v1304 = vmul.f32 %v1238, %v1270
    %v1305 = vmul.f32 %v1239, %v1270
    %v1306 = vmul.f32 %v1240, %v1270
    %v1307 = vmul.f32 %v1241, %v1270
    %v1308 = vmul.f32 %v1242, %v1270
    %v1309 = vmul.f32 %v1243, %v1270
    %v1310 = vmul.f32 %v1244, %v1270
    %v1311 = vmul.f32 %v1245, %v1270
    %v1312 = vmul.f32 %v1246, %v1270
    %v1313 = vmul.f32 %v1247, %v1270
    %v1314 = vmul.f32 %v1248, %v1270
    %v1315 = vmul.f32 %v1249, %v1270
    %v1316 = vmul.f32 %v1250, %v1270
    %v1317 = vmul.f32 %v1251, %v1270
    %v1318 = vmul.f32 %v1252, %v1270
    %v1319 = vmul.f32 %v1253, %v1270
    %v1320 = vmul.f32 %v1254, %v1270
    %v1321 = vmul.f32 %v1255, %v1270
    %v1322 = vmul.f32 %v1256, %v1270
    %v1323 = vmul.f32 %v1257, %v1270
    %v1324 = vmul.f32 %v1258, %v1270
    %v1325 = vmul.f32 %v1259, %v1270
    %v1326 = vmul.f32 %v1260, %v1270
    %v1327 = vmul.f32 %v1261, %v1270
    %v1328 = vmul.f32 %v1262, %v1270
    %v1329 = vmul.f32 %v1263, %v1270
    %v1330 = vmul.f32 %v1264, %v1270
    %v1331 = vmul.f32 %v1265, %v1270
    %v1332 = vmul.f32 %v1266, %v1270
    %v1333 = vmul.f32 %v1267, %v1270
    %v1334 = vmul.f32 %v1268, %v1270
    %v1335 = vadd.f32 %v1141, %v1271
    %v1336 = vadd.f32 %v1142, %v1272
    %v1337 = vadd.f32 %v1143, %v1273
    %v1338 = vadd.f32 %v1144, %v1274
    %v1339 = vadd.f32 %v1145, %v1275
    %v1340 = vadd.f32 %v1146, %v1276
    %v1341 = vadd.f32 %v1147, %v1277
    %v1342 = vadd.f32 %v1148, %v1278
    %v1343 = vadd.f32 %v1149, %v1279
    %v1344 = vadd.f32 %v1150, %v1280
    %v1345 = vadd.f32 %v1151, %v1281
    %v1346 = vadd.f32 %v1152, %v1282
    %v1347 = vadd.f32 %v1153, %v1283
    %v1348 = vadd.f32 %v1154, %v1284
    %v1349 = vadd.f32 %v1155, %v1285
    %v1350 = vadd.f32 %v1156, %v1286
    %v1351 = vadd.f32 %v1157, %v1287
    %v1352 = vadd.f32 %v1158, %v1288
    %v1353 = vadd.f32 %v1159, %v1289
    %v1354 = vadd.f32 %v1160, %v1290
    %v1355 = vadd.f32 %v1161, %v1291
    %v1356 = vadd.f32 %v1162, %v1292
    %v1357 = vadd.f32 %v1163, %v1293
    %v1358 = vadd.f32 %v1164, %v1294
    %v1359 = vadd.f32 %v1165, %v1295
    %v1360 = vadd.f32 %v1166, %v1296
    %v1361 = vadd.f32 %v1167, %v1297
    %v1362 = vadd.f32 %v1168, %v1298
    %v1363 = vadd.f32 %v1169, %v1299
    %v1364 = vadd.f32 %v1170, %v1300
    %v1365 = vadd.f32 %v1171, %v1301
    %v1366 = vadd.f32 %v1172, %v1302
    %v1367 = vadd.f32 %v1173, %v1303
    %v1368 = vadd.f32 %v1174, %v1304
    %v1369 = vadd.f32 %v1175, %v1305
    %v1370 = vadd.f32 %v1176, %v1306
    %v1371 = vadd.f32 %v1177, %v1307
    %v1372 = vadd.f32 %v1178, %v1308
    %v1373 = vadd.f32 %v1179, %v1309
    %v1374 = vadd.f32 %v1180, %v1310
    %v1375 = vadd.f32 %v1181, %v1311
    %v1376 = vadd.f32 %v1182, %v1312
    %v1377 = vadd.f32 %v1183, %v1313
    %v1378 = vadd.f32 %v1184, %v1314
    %v1379 = vadd.f32 %v1185, %v1315
    %v1380 = vadd.f32 %v1186, %v1316
    %v1381 = vadd.f32 %v1187, %v1317
    %v1382 = vadd.f32 %v1188, %v1318
    %v1383 = vadd.f32 %v1189, %v1319
    %v1384 = vadd.f32 %v1190, %v1320
    %v1385 = vadd.f32 %v1191, %v1321
    %v1386 = vadd.f32 %v1192, %v1322
    %v1387 = vadd.f32 %v1193, %v1323
    %v1388 = vadd.f32 %v1194, %v1324
    %v1389 = vadd.f32 %v1195, %v1325
    %v1390 = vadd.f32 %v1196, %v1326
    %v1391 = vadd.f32 %v1197, %v1327
    %v1392 = vadd.f32 %v1198, %v1328
    %v1393 = vadd.f32 %v1199, %v1329
    %v1394 = vadd.f32 %v1200, %v1330
    %v1395 = vadd.f32 %v1201, %v1331
    %v1396 = vadd.f32 %v1202, %v1332
    %v1397 = vadd.f32 %v1203, %v1333
    %v1398 = vadd.f32 %v1204, %v1334
    %v1399 = vld [vmem:[%s364 + $0xb] sm:$0xff]
    %v1400 = vld [vmem:[%s364 + $0x13] sm:$0xff]
    %v1401 = vld [vmem:[%s364 + $0x2b] sm:$0xff]
    %v1402 = vld [vmem:[%s364 + $0x33] sm:$0xff]
    %v1403 = vld [vmem:[%s364 + $0x4b] sm:$0xff]
    %v1404 = vld [vmem:[%s364 + $0x53] sm:$0xff]
    %v1405 = vld [vmem:[%s364 + $0x6b] sm:$0xff]
    %v1406 = vld [vmem:[%s364 + $0x73] sm:$0xff]
    %v1407 = vld [vmem:[%s364 + $0x8b] sm:$0xff]
    %v1408 = vld [vmem:[%s364 + $0x93] sm:$0xff]
    %v1409 = vld [vmem:[%s364 + $0xab] sm:$0xff]
    %v1410 = vld [vmem:[%s364 + $0xb3] sm:$0xff]
    %v1411 = vld [vmem:[%s364 + $0xcb] sm:$0xff]
    %v1412 = vld [vmem:[%s364 + $0xd3] sm:$0xff]
    %v1413 = vld [vmem:[%s364 + $0xeb] sm:$0xff]
    %v1414 = vld [vmem:[%s364 + $0xf3] sm:$0xff]
    %v1415 = vld [vmem:[%s364 + $0x10b] sm:$0xff]
    %v1416 = vld [vmem:[%s364 + $0x113] sm:$0xff]
    %v1417 = vld [vmem:[%s364 + $0x12b] sm:$0xff]
    %v1418 = vld [vmem:[%s364 + $0x133] sm:$0xff]
    %v1419 = vld [vmem:[%s364 + $0x14b] sm:$0xff]
    %v1420 = vld [vmem:[%s364 + $0x153] sm:$0xff]
    %v1421 = vld [vmem:[%s364 + $0x16b] sm:$0xff]
    %v1422 = vld [vmem:[%s364 + $0x173] sm:$0xff]
    %v1423 = vld [vmem:[%s364 + $0x18b] sm:$0xff]
    %v1424 = vld [vmem:[%s364 + $0x193] sm:$0xff]
    %v1425 = vld [vmem:[%s364 + $0x1ab] sm:$0xff]
    %v1426 = vld [vmem:[%s364 + $0x1b3] sm:$0xff]
    %v1427 = vld [vmem:[%s364 + $0x1cb] sm:$0xff]
    %v1428 = vld [vmem:[%s364 + $0x1d3] sm:$0xff]
    %v1429 = vld [vmem:[%s364 + $0x1eb] sm:$0xff]
    %v1430 = vld [vmem:[%s364 + $0x1f3] sm:$0xff]
    %v1431 = vld [vmem:[%s364 + $0x28b] sm:$0xff]
    %v1432 = vld [vmem:[%s364 + $0x293] sm:$0xff]
    %v1433 = vld [vmem:[%s364 + $0x2ab] sm:$0xff]
    %v1434 = vld [vmem:[%s364 + $0x2b3] sm:$0xff]
    %v1435 = vld [vmem:[%s364 + $0x2cb] sm:$0xff]
    %v1436 = vld [vmem:[%s364 + $0x2d3] sm:$0xff]
    %v1437 = vld [vmem:[%s364 + $0x2eb] sm:$0xff]
    %v1438 = vld [vmem:[%s364 + $0x2f3] sm:$0xff]
    %v1439 = vld [vmem:[%s364 + $0x30b] sm:$0xff]
    %v1440 = vld [vmem:[%s364 + $0x313] sm:$0xff]
    %v1441 = vld [vmem:[%s364 + $0x32b] sm:$0xff]
    %v1442 = vld [vmem:[%s364 + $0x333] sm:$0xff]
    %v1443 = vld [vmem:[%s364 + $0x34b] sm:$0xff]
    %v1444 = vld [vmem:[%s364 + $0x353] sm:$0xff]
    %v1445 = vld [vmem:[%s364 + $0x36b] sm:$0xff]
    %v1446 = vld [vmem:[%s364 + $0x373] sm:$0xff]
    %v1447 = vld [vmem:[%s364 + $0x38b] sm:$0xff]
    %v1448 = vld [vmem:[%s364 + $0x393] sm:$0xff]
    %v1449 = vld [vmem:[%s364 + $0x3ab] sm:$0xff]
    %v1450 = vld [vmem:[%s364 + $0x3b3] sm:$0xff]
    %v1451 = vld [vmem:[%s364 + $0x3cb] sm:$0xff]
    %v1452 = vld [vmem:[%s364 + $0x3d3] sm:$0xff]
    %v1453 = vld [vmem:[%s364 + $0x3eb] sm:$0xff]
    %v1454 = vld [vmem:[%s364 + $0x3f3] sm:$0xff]
    %v1455 = vld [vmem:[%s364 + $0x40b] sm:$0xff]
    %v1456 = vld [vmem:[%s364 + $0x413] sm:$0xff]
    %v1457 = vld [vmem:[%s364 + $0x42b] sm:$0xff]
    %v1458 = vld [vmem:[%s364 + $0x433] sm:$0xff]
    %v1459 = vld [vmem:[%s364 + $0x44b] sm:$0xff]
    %v1460 = vld [vmem:[%s364 + $0x453] sm:$0xff]
    %v1461 = vld [vmem:[%s364 + $0x46b] sm:$0xff]
    %v1462 = vld [vmem:[%s364 + $0x473] sm:$0xff]
    %v1463 = vld [vmem:[#allocation6 + $0x7] sm:$0x1]
    %v1464 = vperm.slane %v1463, 0
    %v1465 = vmul.f32 %v1399, %v1464
    %v1466 = vmul.f32 %v1400, %v1464
    %v1467 = vmul.f32 %v1401, %v1464
    %v1468 = vmul.f32 %v1402, %v1464
    %v1469 = vmul.f32 %v1403, %v1464
    %v1470 = vmul.f32 %v1404, %v1464
    %v1471 = vmul.f32 %v1405, %v1464
    %v1472 = vmul.f32 %v1406, %v1464
    %v1473 = vmul.f32 %v1407, %v1464
    %v1474 = vmul.f32 %v1408, %v1464
    %v1475 = vmul.f32 %v1409, %v1464
    %v1476 = vmul.f32 %v1410, %v1464
    %v1477 = vmul.f32 %v1411, %v1464
    %v1478 = vmul.f32 %v1412, %v1464
    %v1479 = vmul.f32 %v1413, %v1464
    %v1480 = vmul.f32 %v1414, %v1464
    %v1481 = vmul.f32 %v1415, %v1464
    %v1482 = vmul.f32 %v1416, %v1464
    %v1483 = vmul.f32 %v1417, %v1464
    %v1484 = vmul.f32 %v1418, %v1464
    %v1485 = vmul.f32 %v1419, %v1464
    %v1486 = vmul.f32 %v1420, %v1464
    %v1487 = vmul.f32 %v1421, %v1464
    %v1488 = vmul.f32 %v1422, %v1464
    %v1489 = vmul.f32 %v1423, %v1464
    %v1490 = vmul.f32 %v1424, %v1464
    %v1491 = vmul.f32 %v1425, %v1464
    %v1492 = vmul.f32 %v1426, %v1464
    %v1493 = vmul.f32 %v1427, %v1464
    %v1494 = vmul.f32 %v1428, %v1464
    %v1495 = vmul.f32 %v1429, %v1464
    %v1496 = vmul.f32 %v1430, %v1464
    %v1497 = vmul.f32 %v1431, %v1464
    %v1498 = vmul.f32 %v1432, %v1464
    %v1499 = vmul.f32 %v1433, %v1464
    %v1500 = vmul.f32 %v1434, %v1464
    %v1501 = vmul.f32 %v1435, %v1464
    %v1502 = vmul.f32 %v1436, %v1464
    %v1503 = vmul.f32 %v1437, %v1464
    %v1504 = vmul.f32 %v1438, %v1464
    %v1505 = vmul.f32 %v1439, %v1464
    %v1506 = vmul.f32 %v1440, %v1464
    %v1507 = vmul.f32 %v1441, %v1464
    %v1508 = vmul.f32 %v1442, %v1464
    %v1509 = vmul.f32 %v1443, %v1464
    %v1510 = vmul.f32 %v1444, %v1464
    %v1511 = vmul.f32 %v1445, %v1464
    %v1512 = vmul.f32 %v1446, %v1464
    %v1513 = vmul.f32 %v1447, %v1464
    %v1514 = vmul.f32 %v1448, %v1464
    %v1515 = vmul.f32 %v1449, %v1464
    %v1516 = vmul.f32 %v1450, %v1464
    %v1517 = vmul.f32 %v1451, %v1464
    %v1518 = vmul.f32 %v1452, %v1464
    %v1519 = vmul.f32 %v1453, %v1464
    %v1520 = vmul.f32 %v1454, %v1464
    %v1521 = vmul.f32 %v1455, %v1464
    %v1522 = vmul.f32 %v1456, %v1464
    %v1523 = vmul.f32 %v1457, %v1464
    %v1524 = vmul.f32 %v1458, %v1464
    %v1525 = vmul.f32 %v1459, %v1464
    %v1526 = vmul.f32 %v1460, %v1464
    %v1527 = vmul.f32 %v1461, %v1464
    %v1528 = vmul.f32 %v1462, %v1464
    %v1529 = vadd.f32 %v1335, %v1465
    %v1530 = vadd.f32 %v1336, %v1466
    %v1531 = vadd.f32 %v1337, %v1467
    %v1532 = vadd.f32 %v1338, %v1468
    %v1533 = vadd.f32 %v1339, %v1469
    %v1534 = vadd.f32 %v1340, %v1470
    %v1535 = vadd.f32 %v1341, %v1471
    %v1536 = vadd.f32 %v1342, %v1472
    %v1537 = vadd.f32 %v1343, %v1473
    %v1538 = vadd.f32 %v1344, %v1474
    %v1539 = vadd.f32 %v1345, %v1475
    %v1540 = vadd.f32 %v1346, %v1476
    %v1541 = vadd.f32 %v1347, %v1477
    %v1542 = vadd.f32 %v1348, %v1478
    %v1543 = vadd.f32 %v1349, %v1479
    %v1544 = vadd.f32 %v1350, %v1480
    %v1545 = vadd.f32 %v1351, %v1481
    %v1546 = vadd.f32 %v1352, %v1482
    %v1547 = vadd.f32 %v1353, %v1483
    %v1548 = vadd.f32 %v1354, %v1484
    %v1549 = vadd.f32 %v1355, %v1485
    %v1550 = vadd.f32 %v1356, %v1486
    %v1551 = vadd.f32 %v1357, %v1487
    %v1552 = vadd.f32 %v1358, %v1488
    %v1553 = vadd.f32 %v1359, %v1489
    %v1554 = vadd.f32 %v1360, %v1490
    %v1555 = vadd.f32 %v1361, %v1491
    %v1556 = vadd.f32 %v1362, %v1492
    %v1557 = vadd.f32 %v1363, %v1493
    %v1558 = vadd.f32 %v1364, %v1494
    %v1559 = vadd.f32 %v1365, %v1495
    %v1560 = vadd.f32 %v1366, %v1496
    %v1561 = vadd.f32 %v1367, %v1497
    %v1562 = vadd.f32 %v1368, %v1498
    %v1563 = vadd.f32 %v1369, %v1499
    %v1564 = vadd.f32 %v1370, %v1500
    %v1565 = vadd.f32 %v1371, %v1501
    %v1566 = vadd.f32 %v1372, %v1502
    %v1567 = vadd.f32 %v1373, %v1503
    %v1568 = vadd.f32 %v1374, %v1504
    %v1569 = vadd.f32 %v1375, %v1505
    %v1570 = vadd.f32 %v1376, %v1506
    %v1571 = vadd.f32 %v1377, %v1507
    %v1572 = vadd.f32 %v1378, %v1508
    %v1573 = vadd.f32 %v1379, %v1509
    %v1574 = vadd.f32 %v1380, %v1510
    %v1575 = vadd.f32 %v1381, %v1511
    %v1576 = vadd.f32 %v1382, %v1512
    %v1577 = vadd.f32 %v1383, %v1513
    %v1578 = vadd.f32 %v1384, %v1514
    %v1579 = vadd.f32 %v1385, %v1515
    %v1580 = vadd.f32 %v1386, %v1516
    %v1581 = vadd.f32 %v1387, %v1517
    %v1582 = vadd.f32 %v1388, %v1518
    %v1583 = vadd.f32 %v1389, %v1519
    %v1584 = vadd.f32 %v1390, %v1520
    %v1585 = vadd.f32 %v1391, %v1521
    %v1586 = vadd.f32 %v1392, %v1522
    %v1587 = vadd.f32 %v1393, %v1523
    %v1588 = vadd.f32 %v1394, %v1524
    %v1589 = vadd.f32 %v1395, %v1525
    %v1590 = vadd.f32 %v1396, %v1526
    %v1591 = vadd.f32 %v1397, %v1527
    %v1592 = vadd.f32 %v1398, %v1528
    %s1593 = scalar_lea.vmem [#allocation2], 128
    %v1594 = vld [vmem:[%s1593 + $0x5] sm:$0xff]
    %v1595 = vld [vmem:[%s1593 + $0xd] sm:$0xff]
    %v1596 = vld [vmem:[%s1593 + $0x25] sm:$0xff]
    %v1597 = vld [vmem:[%s1593 + $0x2d] sm:$0xff]
    %v1598 = vld [vmem:[%s1593 + $0x45] sm:$0xff]
    %v1599 = vld [vmem:[%s1593 + $0x4d] sm:$0xff]
    %v1600 = vld [vmem:[%s1593 + $0x65] sm:$0xff]
    %v1601 = vld [vmem:[%s1593 + $0x6d] sm:$0xff]
    %v1602 = vld [vmem:[%s1593 + $0x85] sm:$0xff]
    %v1603 = vld [vmem:[%s1593 + $0x8d] sm:$0xff]
    %v1604 = vld [vmem:[%s1593 + $0xa5] sm:$0xff]
    %v1605 = vld [vmem:[%s1593 + $0xad] sm:$0xff]
    %v1606 = vld [vmem:[%s1593 + $0xc5] sm:$0xff]
    %v1607 = vld [vmem:[%s1593 + $0xcd] sm:$0xff]
    %v1608 = vld [vmem:[%s1593 + $0xe5] sm:$0xff]
    %v1609 = vld [vmem:[%s1593 + $0xed] sm:$0xff]
    %v1610 = vld [vmem:[%s1593 + $0x105] sm:$0xff]
    %v1611 = vld [vmem:[%s1593 + $0x10d] sm:$0xff]
    %v1612 = vld [vmem:[%s1593 + $0x125] sm:$0xff]
    %v1613 = vld [vmem:[%s1593 + $0x12d] sm:$0xff]
    %v1614 = vld [vmem:[%s1593 + $0x145] sm:$0xff]
    %v1615 = vld [vmem:[%s1593 + $0x14d] sm:$0xff]
    %v1616 = vld [vmem:[%s1593 + $0x165] sm:$0xff]
    %v1617 = vld [vmem:[%s1593 + $0x16d] sm:$0xff]
    %v1618 = vld [vmem:[%s1593 + $0x185] sm:$0xff]
    %v1619 = vld [vmem:[%s1593 + $0x18d] sm:$0xff]
    %v1620 = vld [vmem:[%s1593 + $0x1a5] sm:$0xff]
    %v1621 = vld [vmem:[%s1593 + $0x1ad] sm:$0xff]
    %v1622 = vld [vmem:[%s1593 + $0x1c5] sm:$0xff]
    %v1623 = vld [vmem:[%s1593 + $0x1cd] sm:$0xff]
    %v1624 = vld [vmem:[%s1593 + $0x1e5] sm:$0xff]
    %v1625 = vld [vmem:[%s1593 + $0x1ed] sm:$0xff]
    %v1626 = vld [vmem:[%s1593 + $0x285] sm:$0xff]
    %v1627 = vld [vmem:[%s1593 + $0x28d] sm:$0xff]
    %v1628 = vld [vmem:[%s1593 + $0x2a5] sm:$0xff]
    %v1629 = vld [vmem:[%s1593 + $0x2ad] sm:$0xff]
    %v1630 = vld [vmem:[%s1593 + $0x2c5] sm:$0xff]
    %v1631 = vld [vmem:[%s1593 + $0x2cd] sm:$0xff]
    %v1632 = vld [vmem:[%s1593 + $0x2e5] sm:$0xff]
    %v1633 = vld [vmem:[%s1593 + $0x2ed] sm:$0xff]
    %v1634 = vld [vmem:[%s1593 + $0x305] sm:$0xff]
    %v1635 = vld [vmem:[%s1593 + $0x30d] sm:$0xff]
    %v1636 = vld [vmem:[%s1593 + $0x325] sm:$0xff]
    %v1637 = vld [vmem:[%s1593 + $0x32d] sm:$0xff]
    %v1638 = vld [vmem:[%s1593 + $0x345] sm:$0xff]
    %v1639 = vld [vmem:[%s1593 + $0x34d] sm:$0xff]
    %v1640 = vld [vmem:[%s1593 + $0x365] sm:$0xff]
    %v1641 = vld [vmem:[%s1593 + $0x36d] sm:$0xff]
    %v1642 = vld [vmem:[%s1593 + $0x385] sm:$0xff]
    %v1643 = vld [vmem:[%s1593 + $0x38d] sm:$0xff]
    %v1644 = vld [vmem:[%s1593 + $0x3a5] sm:$0xff]
    %v1645 = vld [vmem:[%s1593 + $0x3ad] sm:$0xff]
    %v1646 = vld [vmem:[%s1593 + $0x3c5] sm:$0xff]
    %v1647 = vld [vmem:[%s1593 + $0x3cd] sm:$0xff]
    %v1648 = vld [vmem:[%s1593 + $0x3e5] sm:$0xff]
    %v1649 = vld [vmem:[%s1593 + $0x3ed] sm:$0xff]
    %v1650 = vld [vmem:[%s1593 + $0x405] sm:$0xff]
    %v1651 = vld [vmem:[%s1593 + $0x40d] sm:$0xff]
    %v1652 = vld [vmem:[%s1593 + $0x425] sm:$0xff]
    %v1653 = vld [vmem:[%s1593 + $0x42d] sm:$0xff]
    %v1654 = vld [vmem:[%s1593 + $0x445] sm:$0xff]
    %v1655 = vld [vmem:[%s1593 + $0x44d] sm:$0xff]
    %v1656 = vld [vmem:[%s1593 + $0x465] sm:$0xff]
    %v1657 = vld [vmem:[%s1593 + $0x46d] sm:$0xff]
    %v1658 = vld [vmem:[#allocation6 + $0x8] sm:$0x1]
    %v1659 = vperm.slane %v1658, 0
    %v1660 = vmul.f32 %v1594, %v1659
    %v1661 = vmul.f32 %v1595, %v1659
    %v1662 = vmul.f32 %v1596, %v1659
    %v1663 = vmul.f32 %v1597, %v1659
    %v1664 = vmul.f32 %v1598, %v1659
    %v1665 = vmul.f32 %v1599, %v1659
    %v1666 = vmul.f32 %v1600, %v1659
    %v1667 = vmul.f32 %v1601, %v1659
    %v1668 = vmul.f32 %v1602, %v1659
    %v1669 = vmul.f32 %v1603, %v1659
    %v1670 = vmul.f32 %v1604, %v1659
    %v1671 = vmul.f32 %v1605, %v1659
    %v1672 = vmul.f32 %v1606, %v1659
    %v1673 = vmul.f32 %v1607, %v1659
    %v1674 = vmul.f32 %v1608, %v1659
    %v1675 = vmul.f32 %v1609, %v1659
    %v1676 = vmul.f32 %v1610, %v1659
    %v1677 = vmul.f32 %v1611, %v1659
    %v1678 = vmul.f32 %v1612, %v1659
    %v1679 = vmul.f32 %v1613, %v1659
    %v1680 = vmul.f32 %v1614, %v1659
    %v1681 = vmul.f32 %v1615, %v1659
    %v1682 = vmul.f32 %v1616, %v1659
    %v1683 = vmul.f32 %v1617, %v1659
    %v1684 = vmul.f32 %v1618, %v1659
    %v1685 = vmul.f32 %v1619, %v1659
    %v1686 = vmul.f32 %v1620, %v1659
    %v1687 = vmul.f32 %v1621, %v1659
    %v1688 = vmul.f32 %v1622, %v1659
    %v1689 = vmul.f32 %v1623, %v1659
    %v1690 = vmul.f32 %v1624, %v1659
    %v1691 = vmul.f32 %v1625, %v1659
    %v1692 = vmul.f32 %v1626, %v1659
    %v1693 = vmul.f32 %v1627, %v1659
    %v1694 = vmul.f32 %v1628, %v1659
    %v1695 = vmul.f32 %v1629, %v1659
    %v1696 = vmul.f32 %v1630, %v1659
    %v1697 = vmul.f32 %v1631, %v1659
    %v1698 = vmul.f32 %v1632, %v1659
    %v1699 = vmul.f32 %v1633, %v1659
    %v1700 = vmul.f32 %v1634, %v1659
    %v1701 = vmul.f32 %v1635, %v1659
    %v1702 = vmul.f32 %v1636, %v1659
    %v1703 = vmul.f32 %v1637, %v1659
    %v1704 = vmul.f32 %v1638, %v1659
    %v1705 = vmul.f32 %v1639, %v1659
    %v1706 = vmul.f32 %v1640, %v1659
    %v1707 = vmul.f32 %v1641, %v1659
    %v1708 = vmul.f32 %v1642, %v1659
    %v1709 = vmul.f32 %v1643, %v1659
    %v1710 = vmul.f32 %v1644, %v1659
    %v1711 = vmul.f32 %v1645, %v1659
    %v1712 = vmul.f32 %v1646, %v1659
    %v1713 = vmul.f32 %v1647, %v1659
    %v1714 = vmul.f32 %v1648, %v1659
    %v1715 = vmul.f32 %v1649, %v1659
    %v1716 = vmul.f32 %v1650, %v1659
    %v1717 = vmul.f32 %v1651, %v1659
    %v1718 = vmul.f32 %v1652, %v1659
    %v1719 = vmul.f32 %v1653, %v1659
    %v1720 = vmul.f32 %v1654, %v1659
    %v1721 = vmul.f32 %v1655, %v1659
    %v1722 = vmul.f32 %v1656, %v1659
    %v1723 = vmul.f32 %v1657, %v1659
    %v1724 = vadd.f32 %v1529, %v1660
    %v1725 = vadd.f32 %v1530, %v1661
    %v1726 = vadd.f32 %v1531, %v1662
    %v1727 = vadd.f32 %v1532, %v1663
    %v1728 = vadd.f32 %v1533, %v1664
    %v1729 = vadd.f32 %v1534, %v1665
    %v1730 = vadd.f32 %v1535, %v1666
    %v1731 = vadd.f32 %v1536, %v1667
    %v1732 = vadd.f32 %v1537, %v1668
    %v1733 = vadd.f32 %v1538, %v1669
    %v1734 = vadd.f32 %v1539, %v1670
    %v1735 = vadd.f32 %v1540, %v1671
    %v1736 = vadd.f32 %v1541, %v1672
    %v1737 = vadd.f32 %v1542, %v1673
    %v1738 = vadd.f32 %v1543, %v1674
    %v1739 = vadd.f32 %v1544, %v1675
    %v1740 = vadd.f32 %v1545, %v1676
    %v1741 = vadd.f32 %v1546, %v1677
    %v1742 = vadd.f32 %v1547, %v1678
    %v1743 = vadd.f32 %v1548, %v1679
    %v1744 = vadd.f32 %v1549, %v1680
    %v1745 = vadd.f32 %v1550, %v1681
    %v1746 = vadd.f32 %v1551, %v1682
    %v1747 = vadd.f32 %v1552, %v1683
    %v1748 = vadd.f32 %v1553, %v1684
    %v1749 = vadd.f32 %v1554, %v1685
    %v1750 = vadd.f32 %v1555, %v1686
    %v1751 = vadd.f32 %v1556, %v1687
    %v1752 = vadd.f32 %v1557, %v1688
    %v1753 = vadd.f32 %v1558, %v1689
    %v1754 = vadd.f32 %v1559, %v1690
    %v1755 = vadd.f32 %v1560, %v1691
    %v1756 = vadd.f32 %v1561, %v1692
    %v1757 = vadd.f32 %v1562, %v1693
    %v1758 = vadd.f32 %v1563, %v1694
    %v1759 = vadd.f32 %v1564, %v1695
    %v1760 = vadd.f32 %v1565, %v1696
    %v1761 = vadd.f32 %v1566, %v1697
    %v1762 = vadd.f32 %v1567, %v1698
    %v1763 = vadd.f32 %v1568, %v1699
    %v1764 = vadd.f32 %v1569, %v1700
    %v1765 = vadd.f32 %v1570, %v1701
    %v1766 = vadd.f32 %v1571, %v1702
    %v1767 = vadd.f32 %v1572, %v1703
    %v1768 = vadd.f32 %v1573, %v1704
    %v1769 = vadd.f32 %v1574, %v1705
    %v1770 = vadd.f32 %v1575, %v1706
    %v1771 = vadd.f32 %v1576, %v1707
    %v1772 = vadd.f32 %v1577, %v1708
    %v1773 = vadd.f32 %v1578, %v1709
    %v1774 = vadd.f32 %v1579, %v1710
    %v1775 = vadd.f32 %v1580, %v1711
    %v1776 = vadd.f32 %v1581, %v1712
    %v1777 = vadd.f32 %v1582, %v1713
    %v1778 = vadd.f32 %v1583, %v1714
    %v1779 = vadd.f32 %v1584, %v1715
    %v1780 = vadd.f32 %v1585, %v1716
    %v1781 = vadd.f32 %v1586, %v1717
    %v1782 = vadd.f32 %v1587, %v1718
    %v1783 = vadd.f32 %v1588, %v1719
    %v1784 = vadd.f32 %v1589, %v1720
    %v1785 = vadd.f32 %v1590, %v1721
    %v1786 = vadd.f32 %v1591, %v1722
    %v1787 = vadd.f32 %v1592, %v1723
    %v1788 = vld [vmem:[%s1593 + $0x8] sm:$0xff]
    %v1789 = vld [vmem:[%s1593 + $0x10] sm:$0xff]
    %v1790 = vld [vmem:[%s1593 + $0x28] sm:$0xff]
    %v1791 = vld [vmem:[%s1593 + $0x30] sm:$0xff]
    %v1792 = vld [vmem:[%s1593 + $0x48] sm:$0xff]
    %v1793 = vld [vmem:[%s1593 + $0x50] sm:$0xff]
    %v1794 = vld [vmem:[%s1593 + $0x68] sm:$0xff]
    %v1795 = vld [vmem:[%s1593 + $0x70] sm:$0xff]
    %v1796 = vld [vmem:[%s1593 + $0x88] sm:$0xff]
    %v1797 = vld [vmem:[%s1593 + $0x90] sm:$0xff]
    %v1798 = vld [vmem:[%s1593 + $0xa8] sm:$0xff]
    %v1799 = vld [vmem:[%s1593 + $0xb0] sm:$0xff]
    %v1800 = vld [vmem:[%s1593 + $0xc8] sm:$0xff]
    %v1801 = vld [vmem:[%s1593 + $0xd0] sm:$0xff]
    %v1802 = vld [vmem:[%s1593 + $0xe8] sm:$0xff]
    %v1803 = vld [vmem:[%s1593 + $0xf0] sm:$0xff]
    %v1804 = vld [vmem:[%s1593 + $0x108] sm:$0xff]
    %v1805 = vld [vmem:[%s1593 + $0x110] sm:$0xff]
    %v1806 = vld [vmem:[%s1593 + $0x128] sm:$0xff]
    %v1807 = vld [vmem:[%s1593 + $0x130] sm:$0xff]
    %v1808 = vld [vmem:[%s1593 + $0x148] sm:$0xff]
    %v1809 = vld [vmem:[%s1593 + $0x150] sm:$0xff]
    %v1810 = vld [vmem:[%s1593 + $0x168] sm:$0xff]
    %v1811 = vld [vmem:[%s1593 + $0x170] sm:$0xff]
    %v1812 = vld [vmem:[%s1593 + $0x188] sm:$0xff]
    %v1813 = vld [vmem:[%s1593 + $0x190] sm:$0xff]
    %v1814 = vld [vmem:[%s1593 + $0x1a8] sm:$0xff]
    %v1815 = vld [vmem:[%s1593 + $0x1b0] sm:$0xff]
    %v1816 = vld [vmem:[%s1593 + $0x1c8] sm:$0xff]
    %v1817 = vld [vmem:[%s1593 + $0x1d0] sm:$0xff]
    %v1818 = vld [vmem:[%s1593 + $0x1e8] sm:$0xff]
    %v1819 = vld [vmem:[%s1593 + $0x1f0] sm:$0xff]
    %v1820 = vld [vmem:[%s1593 + $0x288] sm:$0xff]
    %v1821 = vld [vmem:[%s1593 + $0x290] sm:$0xff]
    %v1822 = vld [vmem:[%s1593 + $0x2a8] sm:$0xff]
    %v1823 = vld [vmem:[%s1593 + $0x2b0] sm:$0xff]
    %v1824 = vld [vmem:[%s1593 + $0x2c8] sm:$0xff]
    %v1825 = vld [vmem:[%s1593 + $0x2d0] sm:$0xff]
    %v1826 = vld [vmem:[%s1593 + $0x2e8] sm:$0xff]
    %v1827 = vld [vmem:[%s1593 + $0x2f0] sm:$0xff]
    %v1828 = vld [vmem:[%s1593 + $0x308] sm:$0xff]
    %v1829 = vld [vmem:[%s1593 + $0x310] sm:$0xff]
    %v1830 = vld [vmem:[%s1593 + $0x328] sm:$0xff]
    %v1831 = vld [vmem:[%s1593 + $0x330] sm:$0xff]
    %v1832 = vld [vmem:[%s1593 + $0x348] sm:$0xff]
    %v1833 = vld [vmem:[%s1593 + $0x350] sm:$0xff]
    %v1834 = vld [vmem:[%s1593 + $0x368] sm:$0xff]
    %v1835 = vld [vmem:[%s1593 + $0x370] sm:$0xff]
    %v1836 = vld [vmem:[%s1593 + $0x388] sm:$0xff]
    %v1837 = vld [vmem:[%s1593 + $0x390] sm:$0xff]
    %v1838 = vld [vmem:[%s1593 + $0x3a8] sm:$0xff]
    %v1839 = vld [vmem:[%s1593 + $0x3b0] sm:$0xff]
    %v1840 = vld [vmem:[%s1593 + $0x3c8] sm:$0xff]
    %v1841 = vld [vmem:[%s1593 + $0x3d0] sm:$0xff]
    %v1842 = vld [vmem:[%s1593 + $0x3e8] sm:$0xff]
    %v1843 = vld [vmem:[%s1593 + $0x3f0] sm:$0xff]
    %v1844 = vld [vmem:[%s1593 + $0x408] sm:$0xff]
    %v1845 = vld [vmem:[%s1593 + $0x410] sm:$0xff]
    %v1846 = vld [vmem:[%s1593 + $0x428] sm:$0xff]
    %v1847 = vld [vmem:[%s1593 + $0x430] sm:$0xff]
    %v1848 = vld [vmem:[%s1593 + $0x448] sm:$0xff]
    %v1849 = vld [vmem:[%s1593 + $0x450] sm:$0xff]
    %v1850 = vld [vmem:[%s1593 + $0x468] sm:$0xff]
    %v1851 = vld [vmem:[%s1593 + $0x470] sm:$0xff]
    %v1852 = vld [vmem:[#allocation6 + $0x9] sm:$0x1]
    %v1853 = vperm.slane %v1852, 0
    %v1854 = vmul.f32 %v1788, %v1853
    %v1855 = vmul.f32 %v1789, %v1853
    %v1856 = vmul.f32 %v1790, %v1853
    %v1857 = vmul.f32 %v1791, %v1853
    %v1858 = vmul.f32 %v1792, %v1853
    %v1859 = vmul.f32 %v1793, %v1853
    %v1860 = vmul.f32 %v1794, %v1853
    %v1861 = vmul.f32 %v1795, %v1853
    %v1862 = vmul.f32 %v1796, %v1853
    %v1863 = vmul.f32 %v1797, %v1853
    %v1864 = vmul.f32 %v1798, %v1853
    %v1865 = vmul.f32 %v1799, %v1853
    %v1866 = vmul.f32 %v1800, %v1853
    %v1867 = vmul.f32 %v1801, %v1853
    %v1868 = vmul.f32 %v1802, %v1853
    %v1869 = vmul.f32 %v1803, %v1853
    %v1870 = vmul.f32 %v1804, %v1853
    %v1871 = vmul.f32 %v1805, %v1853
    %v1872 = vmul.f32 %v1806, %v1853
    %v1873 = vmul.f32 %v1807, %v1853
    %v1874 = vmul.f32 %v1808, %v1853
    %v1875 = vmul.f32 %v1809, %v1853
    %v1876 = vmul.f32 %v1810, %v1853
    %v1877 = vmul.f32 %v1811, %v1853
    %v1878 = vmul.f32 %v1812, %v1853
    %v1879 = vmul.f32 %v1813, %v1853
    %v1880 = vmul.f32 %v1814, %v1853
    %v1881 = vmul.f32 %v1815, %v1853
    %v1882 = vmul.f32 %v1816, %v1853
    %v1883 = vmul.f32 %v1817, %v1853
    %v1884 = vmul.f32 %v1818, %v1853
    %v1885 = vmul.f32 %v1819, %v1853
    %v1886 = vmul.f32 %v1820, %v1853
    %v1887 = vmul.f32 %v1821, %v1853
    %v1888 = vmul.f32 %v1822, %v1853
    %v1889 = vmul.f32 %v1823, %v1853
    %v1890 = vmul.f32 %v1824, %v1853
    %v1891 = vmul.f32 %v1825, %v1853
    %v1892 = vmul.f32 %v1826, %v1853
    %v1893 = vmul.f32 %v1827, %v1853
    %v1894 = vmul.f32 %v1828, %v1853
    %v1895 = vmul.f32 %v1829, %v1853
    %v1896 = vmul.f32 %v1830, %v1853
    %v1897 = vmul.f32 %v1831, %v1853
    %v1898 = vmul.f32 %v1832, %v1853
    %v1899 = vmul.f32 %v1833, %v1853
    %v1900 = vmul.f32 %v1834, %v1853
    %v1901 = vmul.f32 %v1835, %v1853
    %v1902 = vmul.f32 %v1836, %v1853
    %v1903 = vmul.f32 %v1837, %v1853
    %v1904 = vmul.f32 %v1838, %v1853
    %v1905 = vmul.f32 %v1839, %v1853
    %v1906 = vmul.f32 %v1840, %v1853
    %v1907 = vmul.f32 %v1841, %v1853
    %v1908 = vmul.f32 %v1842, %v1853
    %v1909 = vmul.f32 %v1843, %v1853
    %v1910 = vmul.f32 %v1844, %v1853
    %v1911 = vmul.f32 %v1845, %v1853
    %v1912 = vmul.f32 %v1846, %v1853
    %v1913 = vmul.f32 %v1847, %v1853
    %v1914 = vmul.f32 %v1848, %v1853
    %v1915 = vmul.f32 %v1849, %v1853
    %v1916 = vmul.f32 %v1850, %v1853
    %v1917 = vmul.f32 %v1851, %v1853
    %v1918 = vadd.f32 %v1724, %v1854
    %v1919 = vadd.f32 %v1725, %v1855
    %v1920 = vadd.f32 %v1726, %v1856
    %v1921 = vadd.f32 %v1727, %v1857
    %v1922 = vadd.f32 %v1728, %v1858
    %v1923 = vadd.f32 %v1729, %v1859
    %v1924 = vadd.f32 %v1730, %v1860
    %v1925 = vadd.f32 %v1731, %v1861
    %v1926 = vadd.f32 %v1732, %v1862
    %v1927 = vadd.f32 %v1733, %v1863
    %v1928 = vadd.f32 %v1734, %v1864
    %v1929 = vadd.f32 %v1735, %v1865
    %v1930 = vadd.f32 %v1736, %v1866
    %v1931 = vadd.f32 %v1737, %v1867
    %v1932 = vadd.f32 %v1738, %v1868
    %v1933 = vadd.f32 %v1739, %v1869
    %v1934 = vadd.f32 %v1740, %v1870
    %v1935 = vadd.f32 %v1741, %v1871
    %v1936 = vadd.f32 %v1742, %v1872
    %v1937 = vadd.f32 %v1743, %v1873
    %v1938 = vadd.f32 %v1744, %v1874
    %v1939 = vadd.f32 %v1745, %v1875
    %v1940 = vadd.f32 %v1746, %v1876
    %v1941 = vadd.f32 %v1747, %v1877
    %v1942 = vadd.f32 %v1748, %v1878
    %v1943 = vadd.f32 %v1749, %v1879
    %v1944 = vadd.f32 %v1750, %v1880
    %v1945 = vadd.f32 %v1751, %v1881
    %v1946 = vadd.f32 %v1752, %v1882
    %v1947 = vadd.f32 %v1753, %v1883
    %v1948 = vadd.f32 %v1754, %v1884
    %v1949 = vadd.f32 %v1755, %v1885
    %v1950 = vadd.f32 %v1756, %v1886
    %v1951 = vadd.f32 %v1757, %v1887
    %v1952 = vadd.f32 %v1758, %v1888
    %v1953 = vadd.f32 %v1759, %v1889
    %v1954 = vadd.f32 %v1760, %v1890
    %v1955 = vadd.f32 %v1761, %v1891
    %v1956 = vadd.f32 %v1762, %v1892
    %v1957 = vadd.f32 %v1763, %v1893
    %v1958 = vadd.f32 %v1764, %v1894
    %v1959 = vadd.f32 %v1765, %v1895
    %v1960 = vadd.f32 %v1766, %v1896
    %v1961 = vadd.f32 %v1767, %v1897
    %v1962 = vadd.f32 %v1768, %v1898
    %v1963 = vadd.f32 %v1769, %v1899
    %v1964 = vadd.f32 %v1770, %v1900
    %v1965 = vadd.f32 %v1771, %v1901
    %v1966 = vadd.f32 %v1772, %v1902
    %v1967 = vadd.f32 %v1773, %v1903
    %v1968 = vadd.f32 %v1774, %v1904
    %v1969 = vadd.f32 %v1775, %v1905
    %v1970 = vadd.f32 %v1776, %v1906
    %v1971 = vadd.f32 %v1777, %v1907
    %v1972 = vadd.f32 %v1778, %v1908
    %v1973 = vadd.f32 %v1779, %v1909
    %v1974 = vadd.f32 %v1780, %v1910
    %v1975 = vadd.f32 %v1781, %v1911
    %v1976 = vadd.f32 %v1782, %v1912
    %v1977 = vadd.f32 %v1783, %v1913
    %v1978 = vadd.f32 %v1784, %v1914
    %v1979 = vadd.f32 %v1785, %v1915
    %v1980 = vadd.f32 %v1786, %v1916
    %v1981 = vadd.f32 %v1787, %v1917
    %v1982 = vld [vmem:[%s1593 + $0xb] sm:$0xff]
    %v1983 = vld [vmem:[%s1593 + $0x13] sm:$0xff]
    %v1984 = vld [vmem:[%s1593 + $0x2b] sm:$0xff]
    %v1985 = vld [vmem:[%s1593 + $0x33] sm:$0xff]
    %v1986 = vld [vmem:[%s1593 + $0x4b] sm:$0xff]
    %v1987 = vld [vmem:[%s1593 + $0x53] sm:$0xff]
    %v1988 = vld [vmem:[%s1593 + $0x6b] sm:$0xff]
    %v1989 = vld [vmem:[%s1593 + $0x73] sm:$0xff]
    %v1990 = vld [vmem:[%s1593 + $0x8b] sm:$0xff]
    %v1991 = vld [vmem:[%s1593 + $0x93] sm:$0xff]
    %v1992 = vld [vmem:[%s1593 + $0xab] sm:$0xff]
    %v1993 = vld [vmem:[%s1593 + $0xb3] sm:$0xff]
    %v1994 = vld [vmem:[%s1593 + $0xcb] sm:$0xff]
    %v1995 = vld [vmem:[%s1593 + $0xd3] sm:$0xff]
    %v1996 = vld [vmem:[%s1593 + $0xeb] sm:$0xff]
    %v1997 = vld [vmem:[%s1593 + $0xf3] sm:$0xff]
    %v1998 = vld [vmem:[%s1593 + $0x10b] sm:$0xff]
    %v1999 = vld [vmem:[%s1593 + $0x113] sm:$0xff]
    %v2000 = vld [vmem:[%s1593 + $0x12b] sm:$0xff]
    %v2001 = vld [vmem:[%s1593 + $0x133] sm:$0xff]
    %v2002 = vld [vmem:[%s1593 + $0x14b] sm:$0xff]
    %v2003 = vld [vmem:[%s1593 + $0x153] sm:$0xff]
    %v2004 = vld [vmem:[%s1593 + $0x16b] sm:$0xff]
    %v2005 = vld [vmem:[%s1593 + $0x173] sm:$0xff]
    %v2006 = vld [vmem:[%s1593 + $0x18b] sm:$0xff]
    %v2007 = vld [vmem:[%s1593 + $0x193] sm:$0xff]
    %v2008 = vld [vmem:[%s1593 + $0x1ab] sm:$0xff]
    %v2009 = vld [vmem:[%s1593 + $0x1b3] sm:$0xff]
    %v2010 = vld [vmem:[%s1593 + $0x1cb] sm:$0xff]
    %v2011 = vld [vmem:[%s1593 + $0x1d3] sm:$0xff]
    %v2012 = vld [vmem:[%s1593 + $0x1eb] sm:$0xff]
    %v2013 = vld [vmem:[%s1593 + $0x1f3] sm:$0xff]
    %v2014 = vld [vmem:[%s1593 + $0x28b] sm:$0xff]
    %v2015 = vld [vmem:[%s1593 + $0x293] sm:$0xff]
    %v2016 = vld [vmem:[%s1593 + $0x2ab] sm:$0xff]
    %v2017 = vld [vmem:[%s1593 + $0x2b3] sm:$0xff]
    %v2018 = vld [vmem:[%s1593 + $0x2cb] sm:$0xff]
    %v2019 = vld [vmem:[%s1593 + $0x2d3] sm:$0xff]
    %v2020 = vld [vmem:[%s1593 + $0x2eb] sm:$0xff]
    %v2021 = vld [vmem:[%s1593 + $0x2f3] sm:$0xff]
    %v2022 = vld [vmem:[%s1593 + $0x30b] sm:$0xff]
    %v2023 = vld [vmem:[%s1593 + $0x313] sm:$0xff]
    %v2024 = vld [vmem:[%s1593 + $0x32b] sm:$0xff]
    %v2025 = vld [vmem:[%s1593 + $0x333] sm:$0xff]
    %v2026 = vld [vmem:[%s1593 + $0x34b] sm:$0xff]
    %v2027 = vld [vmem:[%s1593 + $0x353] sm:$0xff]
    %v2028 = vld [vmem:[%s1593 + $0x36b] sm:$0xff]
    %v2029 = vld [vmem:[%s1593 + $0x373] sm:$0xff]
    %v2030 = vld [vmem:[%s1593 + $0x38b] sm:$0xff]
    %v2031 = vld [vmem:[%s1593 + $0x393] sm:$0xff]
    %v2032 = vld [vmem:[%s1593 + $0x3ab] sm:$0xff]
    %v2033 = vld [vmem:[%s1593 + $0x3b3] sm:$0xff]
    %v2034 = vld [vmem:[%s1593 + $0x3cb] sm:$0xff]
    %v2035 = vld [vmem:[%s1593 + $0x3d3] sm:$0xff]
    %v2036 = vld [vmem:[%s1593 + $0x3eb] sm:$0xff]
    %v2037 = vld [vmem:[%s1593 + $0x3f3] sm:$0xff]
    %v2038 = vld [vmem:[%s1593 + $0x40b] sm:$0xff]
    %v2039 = vld [vmem:[%s1593 + $0x413] sm:$0xff]
    %v2040 = vld [vmem:[%s1593 + $0x42b] sm:$0xff]
    %v2041 = vld [vmem:[%s1593 + $0x433] sm:$0xff]
    %v2042 = vld [vmem:[%s1593 + $0x44b] sm:$0xff]
    %v2043 = vld [vmem:[%s1593 + $0x453] sm:$0xff]
    %v2044 = vld [vmem:[%s1593 + $0x46b] sm:$0xff]
    %v2045 = vld [vmem:[%s1593 + $0x473] sm:$0xff]
    %v2046 = vld [vmem:[#allocation6 + $0xa] sm:$0x1]
    %v2047 = vperm.slane %v2046, 0
    %v2048 = vmul.f32 %v1982, %v2047
    %v2049 = vmul.f32 %v1983, %v2047
    %v2050 = vmul.f32 %v1984, %v2047
    %v2051 = vmul.f32 %v1985, %v2047
    %v2052 = vmul.f32 %v1986, %v2047
    %v2053 = vmul.f32 %v1987, %v2047
    %v2054 = vmul.f32 %v1988, %v2047
    %v2055 = vmul.f32 %v1989, %v2047
    %v2056 = vmul.f32 %v1990, %v2047
    %v2057 = vmul.f32 %v1991, %v2047
    %v2058 = vmul.f32 %v1992, %v2047
    %v2059 = vmul.f32 %v1993, %v2047
    %v2060 = vmul.f32 %v1994, %v2047
    %v2061 = vmul.f32 %v1995, %v2047
    %v2062 = vmul.f32 %v1996, %v2047
    %v2063 = vmul.f32 %v1997, %v2047
    %v2064 = vmul.f32 %v1998, %v2047
    %v2065 = vmul.f32 %v1999, %v2047
    %v2066 = vmul.f32 %v2000, %v2047
    %v2067 = vmul.f32 %v2001, %v2047
    %v2068 = vmul.f32 %v2002, %v2047
    %v2069 = vmul.f32 %v2003, %v2047
    %v2070 = vmul.f32 %v2004, %v2047
    %v2071 = vmul.f32 %v2005, %v2047
    %v2072 = vmul.f32 %v2006, %v2047
    %v2073 = vmul.f32 %v2007, %v2047
    %v2074 = vmul.f32 %v2008, %v2047
    %v2075 = vmul.f32 %v2009, %v2047
    %v2076 = vmul.f32 %v2010, %v2047
    %v2077 = vmul.f32 %v2011, %v2047
    %v2078 = vmul.f32 %v2012, %v2047
    %v2079 = vmul.f32 %v2013, %v2047
    %v2080 = vmul.f32 %v2014, %v2047
    %v2081 = vmul.f32 %v2015, %v2047
    %v2082 = vmul.f32 %v2016, %v2047
    %v2083 = vmul.f32 %v2017, %v2047
    %v2084 = vmul.f32 %v2018, %v2047
    %v2085 = vmul.f32 %v2019, %v2047
    %v2086 = vmul.f32 %v2020, %v2047
    %v2087 = vmul.f32 %v2021, %v2047
    %v2088 = vmul.f32 %v2022, %v2047
    %v2089 = vmul.f32 %v2023, %v2047
    %v2090 = vmul.f32 %v2024, %v2047
    %v2091 = vmul.f32 %v2025, %v2047
    %v2092 = vmul.f32 %v2026, %v2047
    %v2093 = vmul.f32 %v2027, %v2047
    %v2094 = vmul.f32 %v2028, %v2047
    %v2095 = vmul.f32 %v2029, %v2047
    %v2096 = vmul.f32 %v2030, %v2047
    %v2097 = vmul.f32 %v2031, %v2047
    %v2098 = vmul.f32 %v2032, %v2047
    %v2099 = vmul.f32 %v2033, %v2047
    %v2100 = vmul.f32 %v2034, %v2047
    %v2101 = vmul.f32 %v2035, %v2047
    %v2102 = vmul.f32 %v2036, %v2047
    %v2103 = vmul.f32 %v2037, %v2047
    %v2104 = vmul.f32 %v2038, %v2047
    %v2105 = vmul.f32 %v2039, %v2047
    %v2106 = vmul.f32 %v2040, %v2047
    %v2107 = vmul.f32 %v2041, %v2047
    %v2108 = vmul.f32 %v2042, %v2047
    %v2109 = vmul.f32 %v2043, %v2047
    %v2110 = vmul.f32 %v2044, %v2047
    %v2111 = vmul.f32 %v2045, %v2047
    %v2112 = vadd.f32 %v1918, %v2048
    %v2113 = vadd.f32 %v1919, %v2049
    %v2114 = vadd.f32 %v1920, %v2050
    %v2115 = vadd.f32 %v1921, %v2051
    %v2116 = vadd.f32 %v1922, %v2052
    %v2117 = vadd.f32 %v1923, %v2053
    %v2118 = vadd.f32 %v1924, %v2054
    %v2119 = vadd.f32 %v1925, %v2055
    %v2120 = vadd.f32 %v1926, %v2056
    %v2121 = vadd.f32 %v1927, %v2057
    %v2122 = vadd.f32 %v1928, %v2058
    %v2123 = vadd.f32 %v1929, %v2059
    %v2124 = vadd.f32 %v1930, %v2060
    %v2125 = vadd.f32 %v1931, %v2061
    %v2126 = vadd.f32 %v1932, %v2062
    %v2127 = vadd.f32 %v1933, %v2063
    %v2128 = vadd.f32 %v1934, %v2064
    %v2129 = vadd.f32 %v1935, %v2065
    %v2130 = vadd.f32 %v1936, %v2066
    %v2131 = vadd.f32 %v1937, %v2067
    %v2132 = vadd.f32 %v1938, %v2068
    %v2133 = vadd.f32 %v1939, %v2069
    %v2134 = vadd.f32 %v1940, %v2070
    %v2135 = vadd.f32 %v1941, %v2071
    %v2136 = vadd.f32 %v1942, %v2072
    %v2137 = vadd.f32 %v1943, %v2073
    %v2138 = vadd.f32 %v1944, %v2074
    %v2139 = vadd.f32 %v1945, %v2075
    %v2140 = vadd.f32 %v1946, %v2076
    %v2141 = vadd.f32 %v1947, %v2077
    %v2142 = vadd.f32 %v1948, %v2078
    %v2143 = vadd.f32 %v1949, %v2079
    %v2144 = vadd.f32 %v1950, %v2080
    %v2145 = vadd.f32 %v1951, %v2081
    %v2146 = vadd.f32 %v1952, %v2082
    %v2147 = vadd.f32 %v1953, %v2083
    %v2148 = vadd.f32 %v1954, %v2084
    %v2149 = vadd.f32 %v1955, %v2085
    %v2150 = vadd.f32 %v1956, %v2086
    %v2151 = vadd.f32 %v1957, %v2087
    %v2152 = vadd.f32 %v1958, %v2088
    %v2153 = vadd.f32 %v1959, %v2089
    %v2154 = vadd.f32 %v1960, %v2090
    %v2155 = vadd.f32 %v1961, %v2091
    %v2156 = vadd.f32 %v1962, %v2092
    %v2157 = vadd.f32 %v1963, %v2093
    %v2158 = vadd.f32 %v1964, %v2094
    %v2159 = vadd.f32 %v1965, %v2095
    %v2160 = vadd.f32 %v1966, %v2096
    %v2161 = vadd.f32 %v1967, %v2097
    %v2162 = vadd.f32 %v1968, %v2098
    %v2163 = vadd.f32 %v1969, %v2099
    %v2164 = vadd.f32 %v1970, %v2100
    %v2165 = vadd.f32 %v1971, %v2101
    %v2166 = vadd.f32 %v1972, %v2102
    %v2167 = vadd.f32 %v1973, %v2103
    %v2168 = vadd.f32 %v1974, %v2104
    %v2169 = vadd.f32 %v1975, %v2105
    %v2170 = vadd.f32 %v1976, %v2106
    %v2171 = vadd.f32 %v1977, %v2107
    %v2172 = vadd.f32 %v1978, %v2108
    %v2173 = vadd.f32 %v1979, %v2109
    %v2174 = vadd.f32 %v1980, %v2110
    %v2175 = vadd.f32 %v1981, %v2111
    %v2176 = vpack.c.bf16 %v2113, %v2112
    %v2177 = vpack.c.bf16 %v2115, %v2114
    %v2178 = vpack.c.bf16 %v2117, %v2116
    %v2179 = vpack.c.bf16 %v2119, %v2118
    %v2180 = vpack.c.bf16 %v2121, %v2120
    %v2181 = vpack.c.bf16 %v2123, %v2122
    %v2182 = vpack.c.bf16 %v2125, %v2124
    %v2183 = vpack.c.bf16 %v2127, %v2126
    %v2184 = vpack.c.bf16 %v2129, %v2128
    %v2185 = vpack.c.bf16 %v2131, %v2130
    %v2186 = vpack.c.bf16 %v2133, %v2132
    %v2187 = vpack.c.bf16 %v2135, %v2134
    %v2188 = vpack.c.bf16 %v2137, %v2136
    %v2189 = vpack.c.bf16 %v2139, %v2138
    %v2190 = vpack.c.bf16 %v2141, %v2140
    %v2191 = vpack.c.bf16 %v2143, %v2142
    %v2192 = vpack.c.bf16 %v2145, %v2144
    %v2193 = vpack.c.bf16 %v2147, %v2146
    %v2194 = vpack.c.bf16 %v2149, %v2148
    %v2195 = vpack.c.bf16 %v2151, %v2150
    %v2196 = vpack.c.bf16 %v2153, %v2152
    %v2197 = vpack.c.bf16 %v2155, %v2154
    %v2198 = vpack.c.bf16 %v2157, %v2156
    %v2199 = vpack.c.bf16 %v2159, %v2158
    %v2200 = vpack.c.bf16 %v2161, %v2160
    %v2201 = vpack.c.bf16 %v2163, %v2162
    %v2202 = vpack.c.bf16 %v2165, %v2164
    %v2203 = vpack.c.bf16 %v2167, %v2166
    %v2204 = vpack.c.bf16 %v2169, %v2168
    %v2205 = vpack.c.bf16 %v2171, %v2170
    %v2206 = vpack.c.bf16 %v2173, %v2172
    %v2207 = vpack.c.bf16 %v2175, %v2174
    %v2208 = vld [vmem:[#allocation8] sm:$0xf]
    %v2209 = vld [vmem:[#allocation8 + $0x4] sm:$0xf]
    %v2210 = vld [vmem:[#allocation8 + $0x8] sm:$0xf]
    %v2211 = vld [vmem:[#allocation8 + $0xc] sm:$0xf]
    %v2212 = vld [vmem:[#allocation8 + $0x10] sm:$0xf]
    %v2213 = vld [vmem:[#allocation8 + $0x14] sm:$0xf]
    %v2214 = vld [vmem:[#allocation8 + $0x18] sm:$0xf]
    %v2215 = vld [vmem:[#allocation8 + $0x1c] sm:$0xf]
    %v2216 = vld [vmem:[%s3] sm:$0x1]
    %v2218 = vperm.slane %v2216, 0
    %v2228 = vunpack.c.l.b16 %v2208
    %v2229 = vunpack.c.l.b16 %v2209
    %v2230 = vunpack.c.l.b16 %v2210
    %v2231 = vunpack.c.l.b16 %v2211
    %v2232 = vunpack.c.l.b16 %v2212
    %v2233 = vunpack.c.l.b16 %v2213
    %v2234 = vunpack.c.l.b16 %v2214
    %v2235 = vunpack.c.l.b16 %v2215
    %v2236 = vpack.c.b16 %v2229, %v2228
    %v2237 = vpack.c.b16 %v2231, %v2230
    %v2238 = vpack.c.b16 %v2233, %v2232
    %v2239 = vpack.c.b16 %v2235, %v2234
    %v2245 = vsel %vm329, %v2176, 0
    %v2248 = vsel %vm329, %v2177, 0
    %v2251 = vsel %vm329, %v2178, 0
    %v2254 = vsel %vm329, %v2179, 0
    %v2257 = vsel %vm329, %v2180, 0
    %v2260 = vsel %vm329, %v2181, 0
    %v2263 = vsel %vm329, %v2182, 0
    %v2266 = vsel %vm329, %v2183, 0
    %v2269 = vsel %vm329, %v2184, 0
    %v2272 = vsel %vm329, %v2185, 0
    %v2275 = vsel %vm329, %v2186, 0
    %v2278 = vsel %vm329, %v2187, 0
    %v2281 = vsel %vm329, %v2188, 0
    %v2284 = vsel %vm329, %v2189, 0
    %v2287 = vsel %vm329, %v2190, 0
    %v2290 = vsel %vm329, %v2191, 0
    %v2293 = vsel %vm329, %v2192, 0
    %v2296 = vsel %vm329, %v2193, 0
    %v2299 = vsel %vm329, %v2194, 0
    %v2302 = vsel %vm329, %v2195, 0
    %v2305 = vsel %vm329, %v2196, 0
    %v2308 = vsel %vm329, %v2197, 0
    %v2311 = vsel %vm329, %v2198, 0
    %v2314 = vsel %vm329, %v2199, 0
    %v2317 = vsel %vm329, %v2200, 0
    %v2320 = vsel %vm329, %v2201, 0
    %v2323 = vsel %vm329, %v2202, 0
    %v2326 = vsel %vm329, %v2203, 0
    %v2329 = vsel %vm329, %v2204, 0
    %v2332 = vsel %vm329, %v2205, 0
    %v2335 = vsel %vm329, %v2206, 0
    %v2338 = vsel %vm329, %v2207, 0
    %2340 = vmatpush.bf16.msra.mxu0 0
    %2341 = vmatpush.bf16.msra.mxu0 0
    %2342 = vmatpush.bf16.msra.mxu0 0
    %2343 = vmatpush.bf16.msra.mxu0 0
    %2344 = vmatpush.bf16.msra.mxu0 %v2239
    %2345 = vmatpush.bf16.msra.mxu0 %v2238
    %2346 = vmatpush.bf16.msra.mxu0 %v2237
    %2347 = vmatpush.bf16.msra.mxu0 %v2236
    %2348 = vmatmul.bf16.gmra.mxu0 %v2245
    %v2349 = vpop.f32.mrf.mxu0
    %v2350 = vadd.f32 %v2218, %v2349
    %v2351 = vpop.f32.mrf.mxu0
    %v2352 = vadd.f32 %v2218, %v2351
    %2353 = vmatmul.bf16.gmra.mxu0 %v2248
    %v2354 = vpop.f32.mrf.mxu0
    %v2355 = vadd.f32 %v2218, %v2354
    %v2356 = vpop.f32.mrf.mxu0
    %v2357 = vadd.f32 %v2218, %v2356
    %2358 = vmatmul.bf16.gmra.mxu0 %v2251
    %v2359 = vpop.f32.mrf.mxu0
    %v2360 = vadd.f32 %v2218, %v2359
    %v2361 = vpop.f32.mrf.mxu0
    %v2362 = vadd.f32 %v2218, %v2361
    %2363 = vmatmul.bf16.gmra.mxu0 %v2254
    %v2364 = vpop.f32.mrf.mxu0
    %v2365 = vadd.f32 %v2218, %v2364
    %v2366 = vpop.f32.mrf.mxu0
    %v2367 = vadd.f32 %v2218, %v2366
    %2368 = vmatmul.bf16.gmra.mxu0 %v2257
    %v2369 = vpop.f32.mrf.mxu0
    %v2370 = vadd.f32 %v2218, %v2369
    %v2371 = vpop.f32.mrf.mxu0
    %v2372 = vadd.f32 %v2218, %v2371
    %2373 = vmatmul.bf16.gmra.mxu0 %v2260
    %v2374 = vpop.f32.mrf.mxu0
    %v2375 = vadd.f32 %v2218, %v2374
    %v2376 = vpop.f32.mrf.mxu0
    %v2377 = vadd.f32 %v2218, %v2376
    %2378 = vmatmul.bf16.gmra.mxu0 %v2263
    %v2379 = vpop.f32.mrf.mxu0
    %v2380 = vadd.f32 %v2218, %v2379
    %v2381 = vpop.f32.mrf.mxu0
    %v2382 = vadd.f32 %v2218, %v2381
    %2383 = vmatmul.bf16.gmra.mxu0 %v2266
    %v2384 = vpop.f32.mrf.mxu0
    %v2385 = vadd.f32 %v2218, %v2384
    %v2386 = vpop.f32.mrf.mxu0
    %v2387 = vadd.f32 %v2218, %v2386
    %2388 = vmatmul.bf16.gmra.mxu0 %v2269
    %v2389 = vpop.f32.mrf.mxu0
    %v2390 = vadd.f32 %v2218, %v2389
    %v2391 = vpop.f32.mrf.mxu0
    %v2392 = vadd.f32 %v2218, %v2391
    %2393 = vmatmul.bf16.gmra.mxu0 %v2272
    %v2394 = vpop.f32.mrf.mxu0
    %v2395 = vadd.f32 %v2218, %v2394
    %v2396 = vpop.f32.mrf.mxu0
    %v2397 = vadd.f32 %v2218, %v2396
    %2398 = vmatmul.bf16.gmra.mxu0 %v2275
    %v2399 = vpop.f32.mrf.mxu0
    %v2400 = vadd.f32 %v2218, %v2399
    %v2401 = vpop.f32.mrf.mxu0
    %v2402 = vadd.f32 %v2218, %v2401
    %2403 = vmatmul.bf16.gmra.mxu0 %v2278
    %v2404 = vpop.f32.mrf.mxu0
    %v2405 = vadd.f32 %v2218, %v2404
    %v2406 = vpop.f32.mrf.mxu0
    %v2407 = vadd.f32 %v2218, %v2406
    %2408 = vmatmul.bf16.gmra.mxu0 %v2281
    %v2409 = vpop.f32.mrf.mxu0
    %v2410 = vadd.f32 %v2218, %v2409
    %v2411 = vpop.f32.mrf.mxu0
    %v2412 = vadd.f32 %v2218, %v2411
    %2413 = vmatmul.bf16.gmra.mxu0 %v2284
    %v2414 = vpop.f32.mrf.mxu0
    %v2415 = vadd.f32 %v2218, %v2414
    %v2416 = vpop.f32.mrf.mxu0
    %v2417 = vadd.f32 %v2218, %v2416
    %2418 = vmatmul.bf16.gmra.mxu0 %v2287
    %v2419 = vpop.f32.mrf.mxu0
    %v2420 = vadd.f32 %v2218, %v2419
    %v2421 = vpop.f32.mrf.mxu0
    %v2422 = vadd.f32 %v2218, %v2421
    %2423 = vmatmul.bf16.gmra.mxu0 %v2290
    %v2424 = vpop.f32.mrf.mxu0
    %v2425 = vadd.f32 %v2218, %v2424
    %v2426 = vpop.f32.mrf.mxu0
    %v2427 = vadd.f32 %v2218, %v2426
    %2428 = vmatmul.bf16.gmra.mxu0 %v2293
    %v2429 = vpop.f32.mrf.mxu0
    %v2430 = vadd.f32 %v2218, %v2429
    %v2431 = vpop.f32.mrf.mxu0
    %v2432 = vadd.f32 %v2218, %v2431
    %2433 = vmatmul.bf16.gmra.mxu0 %v2296
    %v2434 = vpop.f32.mrf.mxu0
    %v2435 = vadd.f32 %v2218, %v2434
    %v2436 = vpop.f32.mrf.mxu0
    %v2437 = vadd.f32 %v2218, %v2436
    %2438 = vmatmul.bf16.gmra.mxu0 %v2299
    %v2439 = vpop.f32.mrf.mxu0
    %v2440 = vadd.f32 %v2218, %v2439
    %v2441 = vpop.f32.mrf.mxu0
    %v2442 = vadd.f32 %v2218, %v2441
    %2443 = vmatmul.bf16.gmra.mxu0 %v2302
    %v2444 = vpop.f32.mrf.mxu0
    %v2445 = vadd.f32 %v2218, %v2444
    %v2446 = vpop.f32.mrf.mxu0
    %v2447 = vadd.f32 %v2218, %v2446
    %2448 = vmatmul.bf16.gmra.mxu0 %v2305
    %v2449 = vpop.f32.mrf.mxu0
    %v2450 = vadd.f32 %v2218, %v2449
    %v2451 = vpop.f32.mrf.mxu0
    %v2452 = vadd.f32 %v2218, %v2451
    %2453 = vmatmul.bf16.gmra.mxu0 %v2308
    %v2454 = vpop.f32.mrf.mxu0
    %v2455 = vadd.f32 %v2218, %v2454
    %v2456 = vpop.f32.mrf.mxu0
    %v2457 = vadd.f32 %v2218, %v2456
    %2458 = vmatmul.bf16.gmra.mxu0 %v2311
    %v2459 = vpop.f32.mrf.mxu0
    %v2460 = vadd.f32 %v2218, %v2459
    %v2461 = vpop.f32.mrf.mxu0
    %v2462 = vadd.f32 %v2218, %v2461
    %2463 = vmatmul.bf16.gmra.mxu0 %v2314
    %v2464 = vpop.f32.mrf.mxu0
    %v2465 = vadd.f32 %v2218, %v2464
    %v2466 = vpop.f32.mrf.mxu0
    %v2467 = vadd.f32 %v2218, %v2466
    %2468 = vmatmul.bf16.gmra.mxu0 %v2317
    %v2469 = vpop.f32.mrf.mxu0
    %v2470 = vadd.f32 %v2218, %v2469
    %v2471 = vpop.f32.mrf.mxu0
    %v2472 = vadd.f32 %v2218, %v2471
    %2473 = vmatmul.bf16.gmra.mxu0 %v2320
    %v2474 = vpop.f32.mrf.mxu0
    %v2475 = vadd.f32 %v2218, %v2474
    %v2476 = vpop.f32.mrf.mxu0
    %v2477 = vadd.f32 %v2218, %v2476
    %2478 = vmatmul.bf16.gmra.mxu0 %v2323
    %v2479 = vpop.f32.mrf.mxu0
    %v2480 = vadd.f32 %v2218, %v2479
    %v2481 = vpop.f32.mrf.mxu0
    %v2482 = vadd.f32 %v2218, %v2481
    %2483 = vmatmul.bf16.gmra.mxu0 %v2326
    %v2484 = vpop.f32.mrf.mxu0
    %v2485 = vadd.f32 %v2218, %v2484
    %v2486 = vpop.f32.mrf.mxu0
    %v2487 = vadd.f32 %v2218, %v2486
    %2488 = vmatmul.bf16.gmra.mxu0 %v2329
    %v2489 = vpop.f32.mrf.mxu0
    %v2490 = vadd.f32 %v2218, %v2489
    %v2491 = vpop.f32.mrf.mxu0
    %v2492 = vadd.f32 %v2218, %v2491
    %2493 = vmatmul.bf16.gmra.mxu0 %v2332
    %v2494 = vpop.f32.mrf.mxu0
    %v2495 = vadd.f32 %v2218, %v2494
    %v2496 = vpop.f32.mrf.mxu0
    %v2497 = vadd.f32 %v2218, %v2496
    %2498 = vmatmul.bf16.gmra.mxu0 %v2335
    %v2499 = vpop.f32.mrf.mxu0
    %v2500 = vadd.f32 %v2218, %v2499
    %v2501 = vpop.f32.mrf.mxu0
    %v2502 = vadd.f32 %v2218, %v2501
    %2503 = vmatmul.bf16.gmra.mxu0 %v2338
    %v2504 = vpop.f32.mrf.mxu0
    %v2505 = vadd.f32 %v2218, %v2504
    %v2506 = vpop.f32.mrf.mxu0
    %v2507 = vadd.f32 %v2218, %v2506
    %2508 = vdwg.mxu0
    %v2509 = vadd.f32 %v2350, %v2352
    %v2510 = vadd.f32 %v2509, %v2355
    %v2511 = vadd.f32 %v2510, %v2357
    %v2512 = vadd.f32 %v2511, %v2360
    %v2513 = vadd.f32 %v2512, %v2362
    %v2514 = vadd.f32 %v2513, %v2365
    %v2515 = vadd.f32 %v2514, %v2367
    %v2516 = vadd.f32 %v2515, %v2370
    %v2517 = vadd.f32 %v2516, %v2372
    %v2518 = vadd.f32 %v2517, %v2375
    %v2519 = vadd.f32 %v2518, %v2377
    %v2520 = vadd.f32 %v2519, %v2380
    %v2521 = vadd.f32 %v2520, %v2382
    %v2522 = vadd.f32 %v2521, %v2385
    %v2523 = vadd.f32 %v2522, %v2387
    %v2524 = vadd.f32 %v2523, %v2390
    %v2525 = vadd.f32 %v2524, %v2392
    %v2526 = vadd.f32 %v2525, %v2395
    %v2527 = vadd.f32 %v2526, %v2397
    %v2528 = vadd.f32 %v2527, %v2400
    %v2529 = vadd.f32 %v2528, %v2402
    %v2530 = vadd.f32 %v2529, %v2405
    %v2531 = vadd.f32 %v2530, %v2407
    %v2532 = vadd.f32 %v2531, %v2410
    %v2533 = vadd.f32 %v2532, %v2412
    %v2534 = vadd.f32 %v2533, %v2415
    %v2535 = vadd.f32 %v2534, %v2417
    %v2536 = vadd.f32 %v2535, %v2420
    %v2537 = vadd.f32 %v2536, %v2422
    %v2538 = vadd.f32 %v2537, %v2425
    %v2539 = vadd.f32 %v2538, %v2427
    %v2540 = vadd.f32 %v2539, %v2430
    %v2541 = vadd.f32 %v2540, %v2432
    %v2542 = vadd.f32 %v2541, %v2435
    %v2543 = vadd.f32 %v2542, %v2437
    %v2544 = vadd.f32 %v2543, %v2440
    %v2545 = vadd.f32 %v2544, %v2442
    %v2546 = vadd.f32 %v2545, %v2445
    %v2547 = vadd.f32 %v2546, %v2447
    %v2548 = vadd.f32 %v2547, %v2450
    %v2549 = vadd.f32 %v2548, %v2452
    %v2550 = vadd.f32 %v2549, %v2455
    %v2551 = vadd.f32 %v2550, %v2457
    %v2552 = vadd.f32 %v2551, %v2460
    %v2553 = vadd.f32 %v2552, %v2462
    %v2554 = vadd.f32 %v2553, %v2465
    %v2555 = vadd.f32 %v2554, %v2467
    %v2556 = vadd.f32 %v2555, %v2470
    %v2557 = vadd.f32 %v2556, %v2472
    %v2558 = vadd.f32 %v2557, %v2475
    %v2559 = vadd.f32 %v2558, %v2477
    %v2560 = vadd.f32 %v2559, %v2480
    %v2561 = vadd.f32 %v2560, %v2482
    %v2562 = vadd.f32 %v2561, %v2485
    %v2563 = vadd.f32 %v2562, %v2487
    %v2564 = vadd.f32 %v2563, %v2490
    %v2565 = vadd.f32 %v2564, %v2492
    %v2566 = vadd.f32 %v2565, %v2495
    %v2567 = vadd.f32 %v2566, %v2497
    %v2568 = vadd.f32 %v2567, %v2500
    %v2569 = vadd.f32 %v2568, %v2502
    %v2570 = vadd.f32 %v2569, %v2505
    %v2571 = vadd.f32 %v2570, %v2507
    %v2572 = vrot.slane %v2571, 4
    %v2573 = vadd.f32 %v2571, %v2572
    %v2574 = vrot.slane %v2573, 2
    %v2575 = vadd.f32 %v2573, %v2574
    %v2576 = vrot.slane %v2575, 1
    %v2577 = vadd.f32 %v2575, %v2576
    %v2578 = vmul.f32 %v2350, %v2350
    %v2579 = vmul.f32 %v2352, %v2352
    %v2580 = vmul.f32 %v2355, %v2355
    %v2581 = vmul.f32 %v2357, %v2357
    %v2582 = vmul.f32 %v2360, %v2360
    %v2583 = vmul.f32 %v2362, %v2362
    %v2584 = vmul.f32 %v2365, %v2365
    %v2585 = vmul.f32 %v2367, %v2367
    %v2586 = vmul.f32 %v2370, %v2370
    %v2587 = vmul.f32 %v2372, %v2372
    %v2588 = vmul.f32 %v2375, %v2375
    %v2589 = vmul.f32 %v2377, %v2377
    %v2590 = vmul.f32 %v2380, %v2380
    %v2591 = vmul.f32 %v2382, %v2382
    %v2592 = vmul.f32 %v2385, %v2385
    %v2593 = vmul.f32 %v2387, %v2387
    %v2594 = vmul.f32 %v2390, %v2390
    %v2595 = vmul.f32 %v2392, %v2392
    %v2596 = vmul.f32 %v2395, %v2395
    %v2597 = vmul.f32 %v2397, %v2397
    %v2598 = vmul.f32 %v2400, %v2400
    %v2599 = vmul.f32 %v2402, %v2402
    %v2600 = vmul.f32 %v2405, %v2405
    %v2601 = vmul.f32 %v2407, %v2407
    %v2602 = vmul.f32 %v2410, %v2410
    %v2603 = vmul.f32 %v2412, %v2412
    %v2604 = vmul.f32 %v2415, %v2415
    %v2605 = vmul.f32 %v2417, %v2417
    %v2606 = vmul.f32 %v2420, %v2420
    %v2607 = vmul.f32 %v2422, %v2422
    %v2608 = vmul.f32 %v2425, %v2425
    %v2609 = vmul.f32 %v2427, %v2427
    %v2610 = vmul.f32 %v2430, %v2430
    %v2611 = vmul.f32 %v2432, %v2432
    %v2612 = vmul.f32 %v2435, %v2435
    %v2613 = vmul.f32 %v2437, %v2437
    %v2614 = vmul.f32 %v2440, %v2440
    %v2615 = vmul.f32 %v2442, %v2442
    %v2616 = vmul.f32 %v2445, %v2445
    %v2617 = vmul.f32 %v2447, %v2447
    %v2618 = vmul.f32 %v2450, %v2450
    %v2619 = vmul.f32 %v2452, %v2452
    %v2620 = vmul.f32 %v2455, %v2455
    %v2621 = vmul.f32 %v2457, %v2457
    %v2622 = vmul.f32 %v2460, %v2460
    %v2623 = vmul.f32 %v2462, %v2462
    %v2624 = vmul.f32 %v2465, %v2465
    %v2625 = vmul.f32 %v2467, %v2467
    %v2626 = vmul.f32 %v2470, %v2470
    %v2627 = vmul.f32 %v2472, %v2472
    %v2628 = vmul.f32 %v2475, %v2475
    %v2629 = vmul.f32 %v2477, %v2477
    %v2630 = vmul.f32 %v2480, %v2480
    %v2631 = vmul.f32 %v2482, %v2482
    %v2632 = vmul.f32 %v2485, %v2485
    %v2633 = vmul.f32 %v2487, %v2487
    %v2634 = vmul.f32 %v2490, %v2490
    %v2635 = vmul.f32 %v2492, %v2492
    %v2636 = vmul.f32 %v2495, %v2495
    %v2637 = vmul.f32 %v2497, %v2497
    %v2638 = vmul.f32 %v2500, %v2500
    %v2639 = vmul.f32 %v2502, %v2502
    %v2640 = vmul.f32 %v2505, %v2505
    %v2641 = vmul.f32 %v2507, %v2507
    %v2642 = vadd.f32 %v2578, %v2579
    %v2643 = vadd.f32 %v2642, %v2580
    %v2644 = vadd.f32 %v2643, %v2581
    %v2645 = vadd.f32 %v2644, %v2582
    %v2646 = vadd.f32 %v2645, %v2583
    %v2647 = vadd.f32 %v2646, %v2584
    %v2648 = vadd.f32 %v2647, %v2585
    %v2649 = vadd.f32 %v2648, %v2586
    %v2650 = vadd.f32 %v2649, %v2587
    %v2651 = vadd.f32 %v2650, %v2588
    %v2652 = vadd.f32 %v2651, %v2589
    %v2653 = vadd.f32 %v2652, %v2590
    %v2654 = vadd.f32 %v2653, %v2591
    %v2655 = vadd.f32 %v2654, %v2592
    %v2656 = vadd.f32 %v2655, %v2593
    %v2657 = vadd.f32 %v2656, %v2594
    %v2658 = vadd.f32 %v2657, %v2595
    %v2659 = vadd.f32 %v2658, %v2596
    %v2660 = vadd.f32 %v2659, %v2597
    %v2661 = vadd.f32 %v2660, %v2598
    %v2662 = vadd.f32 %v2661, %v2599
    %v2663 = vadd.f32 %v2662, %v2600
    %v2664 = vadd.f32 %v2663, %v2601
    %v2665 = vadd.f32 %v2664, %v2602
    %v2666 = vadd.f32 %v2665, %v2603
    %v2667 = vadd.f32 %v2666, %v2604
    %v2668 = vadd.f32 %v2667, %v2605
    %v2669 = vadd.f32 %v2668, %v2606
    %v2670 = vadd.f32 %v2669, %v2607
    %v2671 = vadd.f32 %v2670, %v2608
    %v2672 = vadd.f32 %v2671, %v2609
    %v2673 = vadd.f32 %v2672, %v2610
    %v2674 = vadd.f32 %v2673, %v2611
    %v2675 = vadd.f32 %v2674, %v2612
    %v2676 = vadd.f32 %v2675, %v2613
    %v2677 = vadd.f32 %v2676, %v2614
    %v2678 = vadd.f32 %v2677, %v2615
    %v2679 = vadd.f32 %v2678, %v2616
    %v2680 = vadd.f32 %v2679, %v2617
    %v2681 = vadd.f32 %v2680, %v2618
    %v2682 = vadd.f32 %v2681, %v2619
    %v2683 = vadd.f32 %v2682, %v2620
    %v2684 = vadd.f32 %v2683, %v2621
    %v2685 = vadd.f32 %v2684, %v2622
    %v2686 = vadd.f32 %v2685, %v2623
    %v2687 = vadd.f32 %v2686, %v2624
    %v2688 = vadd.f32 %v2687, %v2625
    %v2689 = vadd.f32 %v2688, %v2626
    %v2690 = vadd.f32 %v2689, %v2627
    %v2691 = vadd.f32 %v2690, %v2628
    %v2692 = vadd.f32 %v2691, %v2629
    %v2693 = vadd.f32 %v2692, %v2630
    %v2694 = vadd.f32 %v2693, %v2631
    %v2695 = vadd.f32 %v2694, %v2632
    %v2696 = vadd.f32 %v2695, %v2633
    %v2697 = vadd.f32 %v2696, %v2634
    %v2698 = vadd.f32 %v2697, %v2635
    %v2699 = vadd.f32 %v2698, %v2636
    %v2700 = vadd.f32 %v2699, %v2637
    %v2701 = vadd.f32 %v2700, %v2638
    %v2702 = vadd.f32 %v2701, %v2639
    %v2703 = vadd.f32 %v2702, %v2640
    %v2704 = vadd.f32 %v2703, %v2641
    %v2705 = vrot.slane %v2704, 4
    %v2706 = vadd.f32 %v2704, %v2705
    %v2707 = vrot.slane %v2706, 2
    %v2708 = vadd.f32 %v2706, %v2707
    %v2709 = vrot.slane %v2708, 1
    %v2710 = vadd.f32 %v2708, %v2709
    %vm2711 = vcmask 1040384
    %v2712 = vsel %vm2711, %v2577, %v2710
    %2713 = vst [vmem:[#allocation10] sm:$0x3] %v2712
    %v2714 = vpack.c.bf16 %v2350, %v2350
    %v2715 = vpack.c.bf16 %v2352, %v2352
    %v2716 = vpack.c.bf16 %v2355, %v2355
    %v2717 = vpack.c.bf16 %v2357, %v2357
    %v2718 = vpack.c.bf16 %v2360, %v2360
    %v2719 = vpack.c.bf16 %v2362, %v2362
    %v2720 = vpack.c.bf16 %v2365, %v2365
    %v2721 = vpack.c.bf16 %v2367, %v2367
    %v2722 = vpack.c.bf16 %v2370, %v2370
    %v2723 = vpack.c.bf16 %v2372, %v2372
    %v2724 = vpack.c.bf16 %v2375, %v2375
    %v2725 = vpack.c.bf16 %v2377, %v2377
    %v2726 = vpack.c.bf16 %v2380, %v2380
    %v2727 = vpack.c.bf16 %v2382, %v2382
    %v2728 = vpack.c.bf16 %v2385, %v2385
    %v2729 = vpack.c.bf16 %v2387, %v2387
    %v2730 = vpack.c.bf16 %v2390, %v2390
    %v2731 = vpack.c.bf16 %v2392, %v2392
    %v2732 = vpack.c.bf16 %v2395, %v2395
    %v2733 = vpack.c.bf16 %v2397, %v2397
    %v2734 = vpack.c.bf16 %v2400, %v2400
    %v2735 = vpack.c.bf16 %v2402, %v2402
    %v2736 = vpack.c.bf16 %v2405, %v2405
    %v2737 = vpack.c.bf16 %v2407, %v2407
    %v2738 = vpack.c.bf16 %v2410, %v2410
    %v2739 = vpack.c.bf16 %v2412, %v2412
    %v2740 = vpack.c.bf16 %v2415, %v2415
    %v2741 = vpack.c.bf16 %v2417, %v2417
    %v2742 = vpack.c.bf16 %v2420, %v2420
    %v2743 = vpack.c.bf16 %v2422, %v2422
    %v2744 = vpack.c.bf16 %v2425, %v2425
    %v2745 = vpack.c.bf16 %v2427, %v2427
    %v2746 = vpack.c.bf16 %v2430, %v2430
    %v2747 = vpack.c.bf16 %v2432, %v2432
    %v2748 = vpack.c.bf16 %v2435, %v2435
    %v2749 = vpack.c.bf16 %v2437, %v2437
    %v2750 = vpack.c.bf16 %v2440, %v2440
    %v2751 = vpack.c.bf16 %v2442, %v2442
    %v2752 = vpack.c.bf16 %v2445, %v2445
    %v2753 = vpack.c.bf16 %v2447, %v2447
    %v2754 = vpack.c.bf16 %v2450, %v2450
    %v2755 = vpack.c.bf16 %v2452, %v2452
    %v2756 = vpack.c.bf16 %v2455, %v2455
    %v2757 = vpack.c.bf16 %v2457, %v2457
    %v2758 = vpack.c.bf16 %v2460, %v2460
    %v2759 = vpack.c.bf16 %v2462, %v2462
    %v2760 = vpack.c.bf16 %v2465, %v2465
    %v2761 = vpack.c.bf16 %v2467, %v2467
    %v2762 = vpack.c.bf16 %v2470, %v2470
    %v2763 = vpack.c.bf16 %v2472, %v2472
    %v2764 = vpack.c.bf16 %v2475, %v2475
    %v2765 = vpack.c.bf16 %v2477, %v2477
    %v2766 = vpack.c.bf16 %v2480, %v2480
    %v2767 = vpack.c.bf16 %v2482, %v2482
    %v2768 = vpack.c.bf16 %v2485, %v2485
    %v2769 = vpack.c.bf16 %v2487, %v2487
    %v2770 = vpack.c.bf16 %v2490, %v2490
    %v2771 = vpack.c.bf16 %v2492, %v2492
    %v2772 = vpack.c.bf16 %v2495, %v2495
    %v2773 = vpack.c.bf16 %v2497, %v2497
    %v2774 = vpack.c.bf16 %v2500, %v2500
    %v2775 = vpack.c.bf16 %v2502, %v2502
    %v2776 = vpack.c.bf16 %v2505, %v2505
    %v2777 = vpack.c.bf16 %v2507, %v2507
    %2778 = vst [vmem:[#allocation9] sm:$0xf] %v2714
    %2779 = vst [vmem:[#allocation9 + $0x4] sm:$0xf] %v2715
    %2780 = vst [vmem:[#allocation9 + $0x8] sm:$0xf] %v2716
    %2781 = vst [vmem:[#allocation9 + $0xc] sm:$0xf] %v2717
    %2782 = vst [vmem:[#allocation9 + $0x10] sm:$0xf] %v2718
    %2783 = vst [vmem:[#allocation9 + $0x14] sm:$0xf] %v2719
    %2784 = vst [vmem:[#allocation9 + $0x18] sm:$0xf] %v2720
    %2785 = vst [vmem:[#allocation9 + $0x1c] sm:$0xf] %v2721
    %2786 = vst [vmem:[#allocation9 + $0x20] sm:$0xf] %v2722
    %2787 = vst [vmem:[#allocation9 + $0x24] sm:$0xf] %v2723
    %2788 = vst [vmem:[#allocation9 + $0x28] sm:$0xf] %v2724
    %2789 = vst [vmem:[#allocation9 + $0x2c] sm:$0xf] %v2725
    %2790 = vst [vmem:[#allocation9 + $0x30] sm:$0xf] %v2726
    %2791 = vst [vmem:[#allocation9 + $0x34] sm:$0xf] %v2727
    %2792 = vst [vmem:[#allocation9 + $0x38] sm:$0xf] %v2728
    %2793 = vst [vmem:[#allocation9 + $0x3c] sm:$0xf] %v2729
    %2794 = vst [vmem:[#allocation9 + $0x40] sm:$0xf] %v2730
    %2795 = vst [vmem:[#allocation9 + $0x44] sm:$0xf] %v2731
    %2796 = vst [vmem:[#allocation9 + $0x48] sm:$0xf] %v2732
    %2797 = vst [vmem:[#allocation9 + $0x4c] sm:$0xf] %v2733
    %2798 = vst [vmem:[#allocation9 + $0x50] sm:$0xf] %v2734
    %2799 = vst [vmem:[#allocation9 + $0x54] sm:$0xf] %v2735
    %2800 = vst [vmem:[#allocation9 + $0x58] sm:$0xf] %v2736
    %2801 = vst [vmem:[#allocation9 + $0x5c] sm:$0xf] %v2737
    %2802 = vst [vmem:[#allocation9 + $0x60] sm:$0xf] %v2738
    %2803 = vst [vmem:[#allocation9 + $0x64] sm:$0xf] %v2739
    %2804 = vst [vmem:[#allocation9 + $0x68] sm:$0xf] %v2740
    %2805 = vst [vmem:[#allocation9 + $0x6c] sm:$0xf] %v2741
    %2806 = vst [vmem:[#allocation9 + $0x70] sm:$0xf] %v2742
    %2807 = vst [vmem:[#allocation9 + $0x74] sm:$0xf] %v2743
    %2808 = vst [vmem:[#allocation9 + $0x78] sm:$0xf] %v2744
    %2809 = vst [vmem:[#allocation9 + $0x7c] sm:$0xf] %v2745
    %2810 = vst [vmem:[#allocation9 + $0x80] sm:$0xf] %v2746
    %2811 = vst [vmem:[#allocation9 + $0x84] sm:$0xf] %v2747
    %2812 = vst [vmem:[#allocation9 + $0x88] sm:$0xf] %v2748
    %2813 = vst [vmem:[#allocation9 + $0x8c] sm:$0xf] %v2749
    %2814 = vst [vmem:[#allocation9 + $0x90] sm:$0xf] %v2750
    %2815 = vst [vmem:[#allocation9 + $0x94] sm:$0xf] %v2751
    %2816 = vst [vmem:[#allocation9 + $0x98] sm:$0xf] %v2752
    %2817 = vst [vmem:[#allocation9 + $0x9c] sm:$0xf] %v2753
    %2818 = vst [vmem:[#allocation9 + $0xa0] sm:$0xf] %v2754
    %2819 = vst [vmem:[#allocation9 + $0xa4] sm:$0xf] %v2755
    %2820 = vst [vmem:[#allocation9 + $0xa8] sm:$0xf] %v2756
    %2821 = vst [vmem:[#allocation9 + $0xac] sm:$0xf] %v2757
    %2822 = vst [vmem:[#allocation9 + $0xb0] sm:$0xf] %v2758
    %2823 = vst [vmem:[#allocation9 + $0xb4] sm:$0xf] %v2759
    %2824 = vst [vmem:[#allocation9 + $0xb8] sm:$0xf] %v2760
    %2825 = vst [vmem:[#allocation9 + $0xbc] sm:$0xf] %v2761
    %2826 = vst [vmem:[#allocation9 + $0xc0] sm:$0xf] %v2762
    %2827 = vst [vmem:[#allocation9 + $0xc4] sm:$0xf] %v2763
    %2828 = vst [vmem:[#allocation9 + $0xc8] sm:$0xf] %v2764
    %2829 = vst [vmem:[#allocation9 + $0xcc] sm:$0xf] %v2765
    %2830 = vst [vmem:[#allocation9 + $0xd0] sm:$0xf] %v2766
    %2831 = vst [vmem:[#allocation9 + $0xd4] sm:$0xf] %v2767
    %2832 = vst [vmem:[#allocation9 + $0xd8] sm:$0xf] %v2768
    %2833 = vst [vmem:[#allocation9 + $0xdc] sm:$0xf] %v2769
    %2834 = vst [vmem:[#allocation9 + $0xe0] sm:$0xf] %v2770
    %2835 = vst [vmem:[#allocation9 + $0xe4] sm:$0xf] %v2771
    %2836 = vst [vmem:[#allocation9 + $0xe8] sm:$0xf] %v2772
    %2837 = vst [vmem:[#allocation9 + $0xec] sm:$0xf] %v2773
    %2838 = vst [vmem:[#allocation9 + $0xf0] sm:$0xf] %v2774
    %2839 = vst [vmem:[#allocation9 + $0xf4] sm:$0xf] %v2775
    %2840 = vst [vmem:[#allocation9 + $0xf8] sm:$0xf] %v2776
    %2841 = vst [vmem:[#allocation9 + $0xfc] sm:$0xf] %v2777
    // Predicated region
    $region30: #{tpu_custom_call.1} parent=1 // pred_check
      _
    $region31: #{tpu_custom_call.1} parent=1 // pred_check_branch
      %2843 = sbr.rel (0) target = $region33
    $region32: #{tpu_custom_call.1} parent=1 // pred_region
      %2845 = vsyncadd [#allocation5], 0
      %s2846 = sshll.u32 [#allocation9], 4
      %s2847 = int_to_ptr.vmem [resolvable:$true] %s2846
      %s2848 = sshll.u32 %s4, 4
      %s2849 = int_to_ptr.hbm [resolvable:$true] %s2848
      %2854 = dma.vmem_to_hbm [thread:$0]  %s2847, 4096, %s2849, [#allocation5], 64, 64, 4
    $region33: #{tpu_custom_call.1} parent=1 // pred_fallthru
      _
    // Predicated region
    $region34: #{tpu_custom_call.1} parent=1 // pred_check
      _
    $region35: #{tpu_custom_call.1} parent=1 // pred_check_branch
      %2856 = sbr.rel (0) target = $region37
    $region36: #{tpu_custom_call.1} parent=1 // pred_region
      %2858 = vsyncadd [#allocation11], 0
      %s2860 = sshll.u32 [#allocation10], 4
      %s2861 = int_to_ptr.vmem [resolvable:$true] %s2860
      %s2862 = sshll.u32 %s5, 4
      %s2863 = int_to_ptr.hbm [resolvable:$true] %s2862
      %2865 = dma.vmem_to_hbm [thread:$0]  %s2861, 32, %s2863, [#allocation11]
    $region37: #{tpu_custom_call.1} parent=1 // pred_fallthru
      _
    // Predicated region
    $region38: #{tpu_custom_call.1} parent=1 // pred_check
      _
    $region39: #{tpu_custom_call.1} parent=1 // pred_check_branch
      %2867 = sbr.rel (0) target = $region41
    $region40: #{tpu_custom_call.1} parent=1 // pred_region
      %2869 = dma.done [#allocation5], 4096
    $region41: #{tpu_custom_call.1} parent=1 // pred_fallthru
      _
    // Predicated region
    $region42: #{tpu_custom_call.1} parent=1 // pred_check
      _
    $region43: #{tpu_custom_call.1} parent=1 // pred_check_branch
      %2871 = sbr.rel (0) target = $region45
    $region44: #{tpu_custom_call.1} parent=1 // pred_region
      %2873 = dma.done [#allocation11], 32
    $region45: #{tpu_custom_call.1} parent=1 // pred_fallthru
      _
    %2874 = vsyncpa [#allocation4], 1
    %2875 = vsyncpa [#allocation7], 1
    %2876 = vsyncpa [#allocation5], 1
    %2877 = vsyncpa [#allocation11], 1

</llo_original>
